<compile_context>
chip_gen: v5e
topology: v5e:2x2
jax: 0.10.0
libtpu: 0.0.40
codegen_flags: <defaults>
</compile_context>

<pallas_src>
import functools

import jax
import jax.numpy as jnp
from jax.experimental import pallas as pl
from jax.experimental.pallas import tpu as pltpu


# ----------------------------------------------------------------------------
# Config (synthetic, deterministic)
# ----------------------------------------------------------------------------
class Config:
    architecture = ['simple', 'unary', 'max_pool', 'unary',
                    'nearest_upsample', 'last_unary']
    first_subsampling_dl = 0.15
    conv_radius = 2.5
    in_features_dim = 4
    first_features_dim = 32
    num_kernel_points = 8
    KP_extent = 1.2
    output_score = True
    use_batch_norm = False   # BatchNormBlock -> "+ bias" path (as in KPConv)


# ----------------------------------------------------------------------------
# Small helpers
# ----------------------------------------------------------------------------
def _round_up(n, m):
    return ((n + m - 1) // m) * m


def _pad_rows(x, n_pad):
    pad = n_pad - x.shape[0]
    if pad == 0:
        return x
    widths = ((0, pad),) + tuple((0, 0) for _ in range(x.ndim - 1))
    return jnp.pad(x, widths)


def _leaky_relu(x):
    return jnp.where(x >= 0.0, x, 0.1 * x)


def _bf16_dot(a, b):
    # MXU-friendly: bf16 operands, f32 accumulation.
    return jnp.dot(a.astype(jnp.bfloat16), b.astype(jnp.bfloat16),
                   preferred_element_type=jnp.float32)


_PARAMS_PAR = pltpu.CompilerParams(dimension_semantics=("parallel",))


# ----------------------------------------------------------------------------
# Pallas kernels
# ----------------------------------------------------------------------------
def _kpconv_kernel(nf_ref, infl_ref, w_ref, b_ref, o_ref, *, num_kp):
    # nf:   (tn, H, Cin)     gathered neighbor features (shadow/pad rows are zero)
    # infl: (tn, H, K)       kernel-point influence weights
    # w:    (K*Cin, Cout)    kernel weights (k-major rows) ; b: (1, Cout)
    nf = nf_ref[...]
    infl = infl_ref[...]
    # Weighted per-kernel-point features (VPU), stacked on the lane axis so the
    # MXU sees a single matmul with contraction depth K*Cin.
    parts = [jnp.sum(infl[:, :, k:k + 1] * nf, axis=1) for k in range(num_kp)]
    fk = jnp.concatenate(parts, axis=-1)                     # (tn, K*Cin)
    y = _bf16_dot(fk, w_ref[...]) + b_ref[...]
    o_ref[...] = _leaky_relu(y)


def _unary_kernel(x_ref, w_ref, b_ref, o_ref):
    y = _bf16_dot(x_ref[...], w_ref[...]) + b_ref[...]
    o_ref[...] = _leaky_relu(y)


def _linear_kernel(x_ref, w_ref, o_ref):
    o_ref[...] = _bf16_dot(x_ref[...], w_ref[...])


def _final_fused_kernel(x_ref, skip_ref, w1_ref, w2_ref, raw_ref, norm_ref):
    # Fused decoder tail: concat([x, skip]) @ W  ==  x @ W1 + skip @ W2,
    # then L2 row-normalize (F.normalize).  Emits raw (for the score head) and
    # normalized features, saving two extra HBM round trips of (N, C).
    y = _bf16_dot(x_ref[...], w1_ref[...]) + _bf16_dot(skip_ref[...], w2_ref[...])
    raw_ref[...] = y
    n = jnp.sqrt(jnp.sum(y * y, axis=-1, keepdims=True))
    norm_ref[...] = y / jnp.maximum(n, 1e-12)


def _maxpool_kernel(nf_ref, o_ref):
    o_ref[...] = jnp.max(nf_ref[...], axis=1)


def _l2norm_kernel(x_ref, o_ref):
    x = x_ref[...]
    n = jnp.sqrt(jnp.sum(x * x, axis=-1, keepdims=True))
    o_ref[...] = x / jnp.maximum(n, 1e-12)


def _scores_kernel(fs_ref, nf_ref, o_ref, *, training):
    # fs: (tm, C) scaled features; nf: (tm, H, C) gathered neighbor features.
    # All reductions are per-row, so tiling over M is exact.
    fs = fs_ref[...]
    nf = nf_ref[...]
    nf_sum = jnp.sum(nf, axis=-1)                                   # (tm, H)
    valid = (nf_sum != 0.0).astype(jnp.float32)
    neighbor_num = jnp.maximum(jnp.sum(valid, axis=-1, keepdims=True), 1.0)
    mean_features = jnp.sum(nf, axis=1) / neighbor_num              # (tm, C)
    d = fs - mean_features
    # softplus (beta=1, threshold=20) like torch.nn.functional.softplus
    local_max_score = jnp.where(d > 20.0, d,
                                jnp.log(1.0 + jnp.exp(jnp.minimum(d, 20.0))))
    depth_wise_max = jnp.max(fs, axis=1, keepdims=True)             # (tm, 1)
    depth_wise_max_score = fs / (1e-6 + depth_wise_max)
    all_scores = local_max_score * depth_wise_max_score
    scores = jnp.max(all_scores, axis=1, keepdims=True)             # (tm, 1)
    if not training:                                                # eval branch
        local_max = jnp.max(nf, axis=1)                             # (tm, C)
        detected = jnp.max((fs == local_max).astype(jnp.float32),
                           axis=1, keepdims=True)
        scores = scores * detected
    o_ref[...] = scores


# ----------------------------------------------------------------------------
# Pallas wrappers (grid / BlockSpec); rows padded to a tile multiple
# ----------------------------------------------------------------------------
_MAX_TN = 256   # row-tile size cap; sized for v7x's 64 MiB VMEM with headroom


def _pick_tile(n, cap=_MAX_TN):
    return min(cap, _round_up(n, 8))


def pallas_kpconv(nf, infl, W, bias, *, tn=_MAX_TN):
    N, H, Cin = nf.shape
    K = infl.shape[2]
    Cout = W.shape[2]
    tn = _pick_tile(N, tn)
    Np = _round_up(N, tn)
    nf_p, infl_p = _pad_rows(nf, Np), _pad_rows(infl, Np)
    w2d = W.reshape(K * Cin, Cout)
    out = pl.pallas_call(
        functools.partial(_kpconv_kernel, num_kp=K),
        out_shape=jax.ShapeDtypeStruct((Np, Cout), jnp.float32),
        grid=(pl.cdiv(Np, tn),),
        in_specs=[pl.BlockSpec((tn, H, Cin), lambda i: (i, 0, 0)),
                  pl.BlockSpec((tn, H, K), lambda i: (i, 0, 0)),
                  pl.BlockSpec((K * Cin, Cout), lambda i: (0, 0)),
                  pl.BlockSpec((1, Cout), lambda i: (0, 0))],
        out_specs=pl.BlockSpec((tn, Cout), lambda i: (i, 0)),
        compiler_params=_PARAMS_PAR,
    )(nf_p, infl_p, w2d, bias)
    return out[:N]


def pallas_unary(x, W, bias, *, tn=_MAX_TN):
    N, Cin = x.shape
    Cout = W.shape[1]
    tn = _pick_tile(N, tn)
    Np = _round_up(N, tn)
    out = pl.pallas_call(
        _unary_kernel,
        out_shape=jax.ShapeDtypeStruct((Np, Cout), jnp.float32),
        grid=(pl.cdiv(Np, tn),),
        in_specs=[pl.BlockSpec((tn, Cin), lambda i: (i, 0)),
                  pl.BlockSpec((Cin, Cout), lambda i: (0, 0)),
                  pl.BlockSpec((1, Cout), lambda i: (0, 0))],
        out_specs=pl.BlockSpec((tn, Cout), lambda i: (i, 0)),
        compiler_params=_PARAMS_PAR,
    )(_pad_rows(x, Np), W, bias)
    return out[:N]


def pallas_linear(x, W, *, tn=_MAX_TN):
    N, Cin = x.shape
    Cout = W.shape[1]
    tn = _pick_tile(N, tn)
    Np = _round_up(N, tn)
    out = pl.pallas_call(
        _linear_kernel,
        out_shape=jax.ShapeDtypeStruct((Np, Cout), jnp.float32),
        grid=(pl.cdiv(Np, tn),),
        in_specs=[pl.BlockSpec((tn, Cin), lambda i: (i, 0)),
                  pl.BlockSpec((Cin, Cout), lambda i: (0, 0))],
        out_specs=pl.BlockSpec((tn, Cout), lambda i: (i, 0)),
        compiler_params=_PARAMS_PAR,
    )(_pad_rows(x, Np), W)
    return out[:N]


def pallas_final_unary(x, skip, W, *, tn=_MAX_TN):
    # Fused: cat([x, skip], 1) @ W  and  F.normalize of the result.
    N, Cx = x.shape
    Cs = skip.shape[1]
    Cout = W.shape[1]
    W1, W2 = W[:Cx], W[Cx:]
    tn = _pick_tile(N, tn)
    Np = _round_up(N, tn)
    raw, norm = pl.pallas_call(
        _final_fused_kernel,
        out_shape=(jax.ShapeDtypeStruct((Np, Cout), jnp.float32),
                   jax.ShapeDtypeStruct((Np, Cout), jnp.float32)),
        grid=(pl.cdiv(Np, tn),),
        in_specs=[pl.BlockSpec((tn, Cx), lambda i: (i, 0)),
                  pl.BlockSpec((tn, Cs), lambda i: (i, 0)),
                  pl.BlockSpec((Cx, Cout), lambda i: (0, 0)),
                  pl.BlockSpec((Cs, Cout), lambda i: (0, 0))],
        out_specs=(pl.BlockSpec((tn, Cout), lambda i: (i, 0)),
                   pl.BlockSpec((tn, Cout), lambda i: (i, 0))),
        compiler_params=_PARAMS_PAR,
    )(_pad_rows(x, Np), _pad_rows(skip, Np), W1, W2)
    return raw[:N], norm[:N]


def pallas_maxpool(nf, *, tn=_MAX_TN):
    N, Hp, C = nf.shape
    tn = _pick_tile(N, tn)
    Np = _round_up(N, tn)
    out = pl.pallas_call(
        _maxpool_kernel,
        out_shape=jax.ShapeDtypeStruct((Np, C), jnp.float32),
        grid=(pl.cdiv(Np, tn),),
        in_specs=[pl.BlockSpec((tn, Hp, C), lambda i: (i, 0, 0))],
        out_specs=pl.BlockSpec((tn, C), lambda i: (i, 0)),
        compiler_params=_PARAMS_PAR,
    )(_pad_rows(nf, Np))
    return out[:N]


def pallas_l2_normalize(x, *, tn=_MAX_TN):
    N, C = x.shape
    tn = _pick_tile(N, tn)
    Np = _round_up(N, tn)
    out = pl.pallas_call(
        _l2norm_kernel,
        out_shape=jax.ShapeDtypeStruct((Np, C), jnp.float32),
        grid=(pl.cdiv(Np, tn),),
        in_specs=[pl.BlockSpec((tn, C), lambda i: (i, 0))],
        out_specs=pl.BlockSpec((tn, C), lambda i: (i, 0)),
        compiler_params=_PARAMS_PAR,
    )(_pad_rows(x, Np))
    return out[:N]


def pallas_scores(fs, nf, *, training=False, tm=_MAX_TN):
    M, C = fs.shape
    H = nf.shape[1]
    tm = _pick_tile(M, tm)
    Mp = _round_up(M, tm)
    out = pl.pallas_call(
        functools.partial(_scores_kernel, training=training),
        out_shape=jax.ShapeDtypeStruct((Mp, 1), jnp.float32),
        grid=(pl.cdiv(Mp, tm),),
        in_specs=[pl.BlockSpec((tm, C), lambda i: (i, 0)),
                  pl.BlockSpec((tm, H, C), lambda i: (i, 0, 0))],
        out_specs=pl.BlockSpec((tm, 1), lambda i: (i, 0)),
        compiler_params=_PARAMS_PAR,
    )(_pad_rows(fs, Mp), _pad_rows(nf, Mp))
    return out[:M]


# ----------------------------------------------------------------------------
# Plain-JAX glue (gathers, geometry, parameter construction)
# ----------------------------------------------------------------------------
def knn(queries, supports, k):
    d2 = jnp.sum((queries[:, None, :] - supports[None, :, :]) ** 2, axis=-1)
    _, idx = jax.lax.top_k(-d2, k)
    return idx.astype(jnp.int32)


def gather_with_shadow(x, inds):
    # shadow (zero) row appended, indices == x.shape[0] hit the shadow
    x_pad = jnp.concatenate([x, jnp.zeros((1, x.shape[1]), x.dtype)], axis=0)
    return x_pad[inds]


def kpconv_influences(q_pts, s_pts, neighb_inds, kernel_points, kp_extent):
    s_pad = jnp.concatenate([s_pts, jnp.full((1, 3), 1e6, s_pts.dtype)], axis=0)
    neighbors = s_pad[neighb_inds] - q_pts[:, None, :]            # (N, H, 3)
    diffs = neighbors[:, :, None, :] - kernel_points[None, None, :, :]
    sq = jnp.sum(diffs ** 2, axis=-1)                             # (N, H, K)
    return jnp.maximum(1.0 - jnp.sqrt(sq) / kp_extent, 0.0)       # linear influence


def make_block(name, r, in_dim, out_dim, layer, config, key):
    if name == 'simple':
        kmid = out_dim // 2
        K = config.num_kernel_points
        extent = config.KP_extent * r / config.conv_radius
        k1, k2 = jax.random.split(key)
        kp = jax.random.uniform(k1, (K, 3), minval=-0.7 * extent,
                                maxval=0.7 * extent, dtype=jnp.float32)
        kp = kp.at[0].set(0.0)
        W = jax.random.normal(k2, (K, in_dim, kmid), jnp.float32) \
            * (2.0 / (K * in_dim)) ** 0.5
        bias = jnp.zeros((1, kmid), jnp.float32)
        return dict(type='simple', layer=layer, kernel_points=kp,
                    kp_extent=extent, W=W, bias=bias)
    if name == 'unary':
        W = jax.random.normal(key, (in_dim, out_dim), jnp.float32) \
            * (2.0 / in_dim) ** 0.5
        return dict(type='unary', W=W, bias=jnp.zeros((1, out_dim), jnp.float32))
    if name == 'last_unary':
        W = jax.random.normal(key, (in_dim, out_dim), jnp.float32) \
            * (1.0 / in_dim) ** 0.5
        return dict(type='last_unary', W=W)
    if name == 'max_pool':
        return dict(type='max_pool', layer=layer)
    if name == 'nearest_upsample':
        return dict(type='nearest_upsample', layer=layer)
    raise ValueError(f'unknown block {name}')


def build_kpfcnn(config, key):
    """Mirrors KPFCNN.__init__ dim/layer bookkeeping exactly."""
    keys = iter(jax.random.split(key, 16))
    layer = 0
    r = config.first_subsampling_dl * config.conv_radius
    in_dim = config.in_features_dim
    out_dim = config.first_features_dim

    encoder_blocks, encoder_skip_dims, encoder_skips = [], [], []
    for block_i, block in enumerate(config.architecture):
        if any(t in block for t in ['pool', 'strided', 'upsample', 'global']):
            encoder_skips.append(block_i)
            encoder_skip_dims.append(in_dim)
        if 'upsample' in block:
            break
        encoder_blocks.append(make_block(block, r, in_dim, out_dim, layer,
                                         config, next(keys)))
        in_dim = out_dim // 2 if 'simple' in block else out_dim
        if 'pool' in block or 'strided' in block:
            layer += 1
            r *= 2
            out_dim *= 2

    decoder_blocks, decoder_concats = [], []
    start_i = 0
    for block_i, block in enumerate(config.architecture):
        if 'upsample' in block:
            start_i = block_i
            break
    for block_i, block in enumerate(config.architecture[start_i:]):
        if block_i > 0 and 'upsample' in config.architecture[start_i + block_i - 1]:
            in_dim += encoder_skip_dims[layer]
            decoder_concats.append(block_i)
        decoder_blocks.append(make_block(block, r, in_dim, out_dim, layer,
                                         config, next(keys)))
        in_dim = out_dim
        if 'upsample' in block:
            layer -= 1
            r *= 0.5
            out_dim = out_dim // 2

    return dict(config=config, encoder_blocks=encoder_blocks,
                encoder_skips=encoder_skips, decoder_blocks=decoder_blocks,
                decoder_concats=decoder_concats)


def apply_block(block, x, batch):
    t = block['type']
    if t == 'simple':
        layer = block['layer']
        pts = batch['points'][layer]
        neighb = batch['neighbors'][layer]
        infl = kpconv_influences(pts, pts, neighb, block['kernel_points'],
                                 block['kp_extent'])
        nf = gather_with_shadow(x, neighb)
        return pallas_kpconv(nf, infl, block['W'], block['bias'])
    if t == 'unary':
        return pallas_unary(x, block['W'], block['bias'])
    if t == 'last_unary':
        return pallas_linear(x, block['W'])
    if t == 'max_pool':
        nf = gather_with_shadow(x, batch['pools'][block['layer']])
        return pallas_maxpool(nf)
    if t == 'nearest_upsample':
        inds = batch['upsamples'][block['layer'] - 1]
        x_pad = jnp.concatenate([x, jnp.zeros_like(x[:1])], axis=0)
        return x_pad[inds[:, 0]]          # closest_pool: pure gather (glue)
    raise ValueError(t)


def detection_scores(batch, features, *, training=False):
    neighbor = batch['neighbors'][0]
    first_len, second_len = batch['stack_lengths'][0]
    shadow_features = jnp.zeros_like(features[:1, :])
    features_ext = jnp.concatenate([features, shadow_features], axis=0)
    shadow_neighbor = jnp.ones_like(neighbor[:1, :]) * (first_len + second_len)
    neighbor_ext = jnp.concatenate([neighbor, shadow_neighbor], axis=0)
    fs = features_ext / (jnp.max(features_ext) + 1e-6)   # global max: JAX glue
    nf = fs[neighbor_ext]                                # data-dependent gather: glue
    scores = pallas_scores(fs, nf, training=training)
    return scores[:-1, :]


def kpfcnn_forward(model, batch, *, training=False):
    x = batch['features']
    skip_x = []
    for block_i, block in enumerate(model['encoder_blocks']):
        if block_i in model['encoder_skips']:
            skip_x.append(x)
        x = apply_block(block, x, batch)

    dec = model['decoder_blocks']
    features_norm = None
    for block_i, block in enumerate(dec):
        needs_concat = block_i in model['decoder_concats']
        is_last = block_i == len(dec) - 1
        if is_last and block['type'] == 'last_unary' and needs_concat:
            # Fused concat + last_unary + L2-normalize.
            skip = skip_x.pop()
            x, features_norm = pallas_final_unary(x, skip, block['W'])
        else:
            if needs_concat:
                x = jnp.concatenate([x, skip_x.pop()], axis=1)
            x = apply_block(block, x, batch)

    if model['config'].output_score:
        scores = detection_scores(batch, x, training=training)
    else:
        scores = None
    if features_norm is None:
        features_norm = pallas_l2_normalize(x)     # F.normalize(x, p=2, dim=-1)
    return features_norm, scores


# ----------------------------------------------------------------------------
# Synthetic batch (deterministic)
# ----------------------------------------------------------------------------
def make_batch(key, config, n1=24, n2=24, num_neighbors=8):
    k_pts, k_feat = jax.random.split(key)
    n0 = n1 + n2
    pts0 = jax.random.uniform(k_pts, (n0, 3), dtype=jnp.float32)
    pts1 = pts0[::2]                                     # layer-1 subsampling
    neighbors0 = knn(pts0, pts0, num_neighbors)          # (n0, H)
    pools0 = knn(pts1, pts0, num_neighbors)              # (n1_sub, H): layer0 -> 1
    upsamples0 = knn(pts0, pts1, 1)                      # (n0, 1): layer1 -> 0
    features = jax.random.normal(k_feat, (n0, config.in_features_dim),
                                 jnp.float32)
    return dict(features=features, points=[pts0, pts1],
                neighbors=[neighbors0], pools=[pools0], upsamples=[upsamples0],
                stack_lengths=[(n1, n2)])


# ----------------------------------------------------------------------------
if __name__ == "__main__":
    config = Config()
    key = jax.random.PRNGKey(0)
    k_model, k_batch = jax.random.split(key)

    batch = make_batch(k_batch, config)
    model = build_kpfcnn(config, k_model)

    # TODO(synk): self.training defaults to True in nn.Module; we run the richer
    # eval-mode (training=False) branch of detection_scores here.
    features, scores = kpfcnn_forward(model, batch, training=False)
    features, scores = jax.block_until_ready((features, scores))

    n0 = batch['features'].shape[0]
    assert features.shape == (n0, 32), features.shape
    assert scores.shape == (n0, 1), scores.shape
    assert bool(jnp.all(jnp.isfinite(features)))
    assert bool(jnp.all(jnp.isfinite(scores)))
    print("KERNEL_OK")
</pallas_src>

<mosaic_0001>
module attributes {stable_mosaic.version = 11 : i64} {
  func.func @_kpconv_kernel(%arg0: i32, %arg1: memref<48x8x4xf32, #tpu.memory_space<vmem>>, %arg2: memref<48x8x8xf32, #tpu.memory_space<vmem>>, %arg3: memref<32x16xf32, #tpu.memory_space<vmem>>, %arg4: memref<1x16xf32, #tpu.memory_space<vmem>>, %arg5: memref<48x16xf32, #tpu.memory_space<vmem>>) attributes {dimension_semantics = [#tpu.dimension_semantics<parallel>], iteration_bounds = array<i64: 1>, scalar_prefetch = 0 : i64, scratch_operands = 0 : i64, tpu.core_type = #tpu.core_type<tc>, window_params = [{transform_indices = @transform_0, window_bounds = array<i64: 48, 8, 4>}, {transform_indices = @transform_1, window_bounds = array<i64: 48, 8, 8>}, {pipeline_mode = #tpu.pipeline_mode<synchronous>, transform_indices = @transform_2, window_bounds = array<i64: 32, 16>}, {pipeline_mode = #tpu.pipeline_mode<synchronous>, transform_indices = @transform_3, window_bounds = array<i64: 1, 16>}, {transform_indices = @transform_4, window_bounds = array<i64: 48, 16>}]} {
    %c0 = arith.constant 0 : index
    %c0_0 = arith.constant 0 : index
    %c0_1 = arith.constant 0 : index
    %0 = vector.load %arg1[%c0, %c0_0, %c0_1] : memref<48x8x4xf32, #tpu.memory_space<vmem>>, vector<48x8x4xf32>
    %c0_2 = arith.constant 0 : index
    %c0_3 = arith.constant 0 : index
    %c0_4 = arith.constant 0 : index
    %1 = vector.load %arg2[%c0_2, %c0_3, %c0_4] : memref<48x8x8xf32, #tpu.memory_space<vmem>>, vector<48x8x8xf32>
    %2 = vector.extract_strided_slice %1 {offsets = [0, 0, 0], sizes = [48, 8, 1], strides = [1, 1, 1]} : vector<48x8x8xf32> to vector<48x8x1xf32>
    %3 = vector.broadcast %2 : vector<48x8x1xf32> to vector<48x8x4xf32>
    %4 = arith.mulf %3, %0 : vector<48x8x4xf32>
    %cst = arith.constant dense<0.000000e+00> : vector<48x4xf32>
    %5 = vector.multi_reduction <add>, %4, %cst [1] : vector<48x8x4xf32> to vector<48x4xf32>
    %6 = vector.extract_strided_slice %1 {offsets = [0, 0, 1], sizes = [48, 8, 1], strides = [1, 1, 1]} : vector<48x8x8xf32> to vector<48x8x1xf32>
    %7 = vector.broadcast %6 : vector<48x8x1xf32> to vector<48x8x4xf32>
    %8 = arith.mulf %7, %0 : vector<48x8x4xf32>
    %cst_5 = arith.constant dense<0.000000e+00> : vector<48x4xf32>
    %9 = vector.multi_reduction <add>, %8, %cst_5 [1] : vector<48x8x4xf32> to vector<48x4xf32>
    %10 = vector.extract_strided_slice %1 {offsets = [0, 0, 2], sizes = [48, 8, 1], strides = [1, 1, 1]} : vector<48x8x8xf32> to vector<48x8x1xf32>
    %11 = vector.broadcast %10 : vector<48x8x1xf32> to vector<48x8x4xf32>
    %12 = arith.mulf %11, %0 : vector<48x8x4xf32>
    %cst_6 = arith.constant dense<0.000000e+00> : vector<48x4xf32>
    %13 = vector.multi_reduction <add>, %12, %cst_6 [1] : vector<48x8x4xf32> to vector<48x4xf32>
    %14 = vector.extract_strided_slice %1 {offsets = [0, 0, 3], sizes = [48, 8, 1], strides = [1, 1, 1]} : vector<48x8x8xf32> to vector<48x8x1xf32>
    %15 = vector.broadcast %14 : vector<48x8x1xf32> to vector<48x8x4xf32>
    %16 = arith.mulf %15, %0 : vector<48x8x4xf32>
    %cst_7 = arith.constant dense<0.000000e+00> : vector<48x4xf32>
    %17 = vector.multi_reduction <add>, %16, %cst_7 [1] : vector<48x8x4xf32> to vector<48x4xf32>
    %18 = vector.extract_strided_slice %1 {offsets = [0, 0, 4], sizes = [48, 8, 1], strides = [1, 1, 1]} : vector<48x8x8xf32> to vector<48x8x1xf32>
    %19 = vector.broadcast %18 : vector<48x8x1xf32> to vector<48x8x4xf32>
    %20 = arith.mulf %19, %0 : vector<48x8x4xf32>
    %cst_8 = arith.constant dense<0.000000e+00> : vector<48x4xf32>
    %21 = vector.multi_reduction <add>, %20, %cst_8 [1] : vector<48x8x4xf32> to vector<48x4xf32>
    %22 = vector.extract_strided_slice %1 {offsets = [0, 0, 5], sizes = [48, 8, 1], strides = [1, 1, 1]} : vector<48x8x8xf32> to vector<48x8x1xf32>
    %23 = vector.broadcast %22 : vector<48x8x1xf32> to vector<48x8x4xf32>
    %24 = arith.mulf %23, %0 : vector<48x8x4xf32>
    %cst_9 = arith.constant dense<0.000000e+00> : vector<48x4xf32>
    %25 = vector.multi_reduction <add>, %24, %cst_9 [1] : vector<48x8x4xf32> to vector<48x4xf32>
    %26 = vector.extract_strided_slice %1 {offsets = [0, 0, 6], sizes = [48, 8, 1], strides = [1, 1, 1]} : vector<48x8x8xf32> to vector<48x8x1xf32>
    %27 = vector.broadcast %26 : vector<48x8x1xf32> to vector<48x8x4xf32>
    %28 = arith.mulf %27, %0 : vector<48x8x4xf32>
    %cst_10 = arith.constant dense<0.000000e+00> : vector<48x4xf32>
    %29 = vector.multi_reduction <add>, %28, %cst_10 [1] : vector<48x8x4xf32> to vector<48x4xf32>
    %30 = vector.extract_strided_slice %1 {offsets = [0, 0, 7], sizes = [48, 8, 1], strides = [1, 1, 1]} : vector<48x8x8xf32> to vector<48x8x1xf32>
    %31 = vector.broadcast %30 : vector<48x8x1xf32> to vector<48x8x4xf32>
    %32 = arith.mulf %31, %0 : vector<48x8x4xf32>
    %cst_11 = arith.constant dense<0.000000e+00> : vector<48x4xf32>
    %33 = vector.multi_reduction <add>, %32, %cst_11 [1] : vector<48x8x4xf32> to vector<48x4xf32>
    %34 = tpu.concatenate %5, %9, %13, %17, %21, %25, %29, %33 in 1 : vector<48x4xf32>, vector<48x4xf32>, vector<48x4xf32>, vector<48x4xf32>, vector<48x4xf32>, vector<48x4xf32>, vector<48x4xf32>, vector<48x4xf32> -> vector<48x32xf32>
    %c0_12 = arith.constant 0 : index
    %c0_13 = arith.constant 0 : index
    %35 = vector.load %arg3[%c0_12, %c0_13] : memref<32x16xf32, #tpu.memory_space<vmem>>, vector<32x16xf32>
    %36 = arith.truncf %34 : vector<48x32xf32> to vector<48x32xbf16>
    %37 = arith.truncf %35 : vector<32x16xf32> to vector<32x16xbf16>
    %cst_14 = arith.constant dense<0.000000e+00> : vector<48x16xf32>
    %38 = tpu.matmul %36, %37, %cst_14 {dimension_numbers = #tpu.dot_dimension_numbers<[1], [0], [0], [1], [0, 0, 1, 1], [], []>} : vector<48x32xbf16>, vector<32x16xbf16>, vector<48x16xf32> -> vector<48x16xf32>
    %c0_15 = arith.constant 0 : index
    %c0_16 = arith.constant 0 : index
    %39 = vector.load %arg4[%c0_15, %c0_16] : memref<1x16xf32, #tpu.memory_space<vmem>>, vector<1x16xf32>
    %40 = vector.broadcast %39 : vector<1x16xf32> to vector<48x16xf32>
    %41 = arith.addf %38, %40 : vector<48x16xf32>
    %cst_17 = arith.constant 0.000000e+00 : f32
    %42 = vector.broadcast %cst_17 : f32 to vector<48x16xf32>
    %43 = arith.cmpf oge, %41, %42 : vector<48x16xf32>
    %cst_18 = arith.constant 1.000000e-01 : f32
    %44 = vector.broadcast %cst_18 : f32 to vector<48x16xf32>
    %45 = arith.mulf %44, %41 : vector<48x16xf32>
    %46 = arith.select %43, %41, %45 : vector<48x16xi1>, vector<48x16xf32>
    %c0_19 = arith.constant 0 : index
    %c0_20 = arith.constant 0 : index
    %47 = vector.load %arg5[%c0_19, %c0_20] : memref<48x16xf32, #tpu.memory_space<vmem>>, vector<48x16xf32>
    tpu.vector_store %arg5[%c0_19, %c0_20], %46 {strides = array<i32>} : memref<48x16xf32, #tpu.memory_space<vmem>>, vector<48x16xf32>,
    return
  }
  func.func @transform_0(%arg0: i32) -> (i32, i32, i32) {
    %c0_i32 = arith.constant 0 : i32
    %c0_i32_0 = arith.constant 0 : i32
    %c0_i32_1 = arith.constant 0 : i32
    return %arg0, %c0_i32, %c0_i32_0 : i32, i32, i32
  }
  func.func @transform_1(%arg0: i32) -> (i32, i32, i32) {
    %c0_i32 = arith.constant 0 : i32
    %c0_i32_0 = arith.constant 0 : i32
    %c0_i32_1 = arith.constant 0 : i32
    return %arg0, %c0_i32, %c0_i32_0 : i32, i32, i32
  }
  func.func @transform_2(%arg0: i32) -> (i32, i32) {
    %c0_i32 = arith.constant 0 : i32
    %c0_i32_0 = arith.constant 0 : i32
    %c0_i32_1 = arith.constant 0 : i32
    return %c0_i32, %c0_i32_0 : i32, i32
  }
  func.func @transform_3(%arg0: i32) -> (i32, i32) {
    %c0_i32 = arith.constant 0 : i32
    %c0_i32_0 = arith.constant 0 : i32
    %c0_i32_1 = arith.constant 0 : i32
    return %c0_i32, %c0_i32_0 : i32, i32
  }
  func.func @transform_4(%arg0: i32) -> (i32, i32) {
    %c0_i32 = arith.constant 0 : i32
    %c0_i32_0 = arith.constant 0 : i32
    return %arg0, %c0_i32 : i32, i32
  }
}

</mosaic_0001>

<llo_original>
// kernel: tpu_custom_call.1
$region0: #{tpu_custom_call.1}
  #allocation0 [shape = 'u32[]', space=smem, size = 0x4, offset = 0x4, fixed_abs, tag = 'smem constant byte address 0x4 - core index']
  #allocation1 [shape = 'u32[72,128]{1,0:T(1,128)}', space=vmem, size = 0x9000, scoped, tag = 'internal scratch']
  %s0 = inlined_call_operand.vmem [shape: f32[48,8,4], index: 0, kind: input, shape index: {}]
  %s1 = inlined_call_operand.vmem [shape: f32[48,8,8], index: 1, kind: input, shape index: {}]
  %s2 = inlined_call_operand.vmem [shape: f32[32,16], index: 2, kind: input, shape index: {}]
  %s3 = inlined_call_operand.vmem [shape: f32[1,16], index: 3, kind: input, shape index: {}]
  %s4 = inlined_call_operand.vmem [shape: f32[48,16], index: 4, kind: output, shape index: {}]
  %s5 = sld [smem:[#allocation0]]
  $region26: #{tpu_custom_call.1} parent=0
    _
  %s7 = ssub.s32 1, %s5
  %s8 = scalar_select 0, %s7, %s5
  // Predicated region
  $region2: #{tpu_custom_call.1} parent=0 // pred_check
    _
  $region3: #{tpu_custom_call.1} parent=0 // pred_check_branch
    %10 = sbr.rel (0) target = $region5
  $region4: #{tpu_custom_call.1} parent=0 // pred_region
    _
  $region5: #{tpu_custom_call.1} parent=0 // pred_fallthru
    _
  // Predicated region
  $region6: #{tpu_custom_call.1} parent=0 // pred_check
    _
  $region7: #{tpu_custom_call.1} parent=0 // pred_check_branch
    %12 = sbr.rel (0) target = $region9
  $region8: #{tpu_custom_call.1} parent=0 // pred_region
    _
  $region9: #{tpu_custom_call.1} parent=0 // pred_fallthru
    _
  // Predicated region
  $region10: #{tpu_custom_call.1} parent=0 // pred_check
    _
  $region11: #{tpu_custom_call.1} parent=0 // pred_check_branch
    %14 = sbr.rel (0) target = $region13
  $region12: #{tpu_custom_call.1} parent=0 // pred_region
    _
  $region13: #{tpu_custom_call.1} parent=0 // pred_fallthru
    _
  // Predicated region
  $region14: #{tpu_custom_call.1} parent=0 // pred_check
    _
  $region15: #{tpu_custom_call.1} parent=0 // pred_check_branch
    %16 = sbr.rel (0) target = $region17
  $region16: #{tpu_custom_call.1} parent=0 // pred_region
    _
  $region17: #{tpu_custom_call.1} parent=0 // pred_fallthru
    _
  %v18 = vld [vmem:[%s0] sm:$0xff]
  %v19 = vld [vmem:[%s0 + $0x8] sm:$0xff]
  %v20 = vld [vmem:[%s0 + $0x10] sm:$0xff]
  %v21 = vld [vmem:[%s0 + $0x18] sm:$0xff]
  %v22 = vld [vmem:[%s0 + $0x20] sm:$0xff]
  %v23 = vld [vmem:[%s0 + $0x28] sm:$0xff]
  %v24 = vld [vmem:[%s0 + $0x30] sm:$0xff]
  %v25 = vld [vmem:[%s0 + $0x38] sm:$0xff]
  %v26 = vld [vmem:[%s0 + $0x40] sm:$0xff]
  %v27 = vld [vmem:[%s0 + $0x48] sm:$0xff]
  %v28 = vld [vmem:[%s0 + $0x50] sm:$0xff]
  %v29 = vld [vmem:[%s0 + $0x58] sm:$0xff]
  %v30 = vld [vmem:[%s0 + $0x60] sm:$0xff]
  %v31 = vld [vmem:[%s0 + $0x68] sm:$0xff]
  %v32 = vld [vmem:[%s0 + $0x70] sm:$0xff]
  %v33 = vld [vmem:[%s0 + $0x78] sm:$0xff]
  %v34 = vld [vmem:[%s0 + $0x80] sm:$0xff]
  %v35 = vld [vmem:[%s0 + $0x88] sm:$0xff]
  %v36 = vld [vmem:[%s0 + $0x90] sm:$0xff]
  %v37 = vld [vmem:[%s0 + $0x98] sm:$0xff]
  %v38 = vld [vmem:[%s0 + $0xa0] sm:$0xff]
  %v39 = vld [vmem:[%s0 + $0xa8] sm:$0xff]
  %v40 = vld [vmem:[%s0 + $0xb0] sm:$0xff]
  %v41 = vld [vmem:[%s0 + $0xb8] sm:$0xff]
  %v42 = vld [vmem:[%s0 + $0xc0] sm:$0xff]
  %v43 = vld [vmem:[%s0 + $0xc8] sm:$0xff]
  %v44 = vld [vmem:[%s0 + $0xd0] sm:$0xff]
  %v45 = vld [vmem:[%s0 + $0xd8] sm:$0xff]
  %v46 = vld [vmem:[%s0 + $0xe0] sm:$0xff]
  %v47 = vld [vmem:[%s0 + $0xe8] sm:$0xff]
  %v48 = vld [vmem:[%s0 + $0xf0] sm:$0xff]
  %v49 = vld [vmem:[%s0 + $0xf8] sm:$0xff]
  %v50 = vld [vmem:[%s0 + $0x100] sm:$0xff]
  %v51 = vld [vmem:[%s0 + $0x108] sm:$0xff]
  %v52 = vld [vmem:[%s0 + $0x110] sm:$0xff]
  %v53 = vld [vmem:[%s0 + $0x118] sm:$0xff]
  %v54 = vld [vmem:[%s0 + $0x120] sm:$0xff]
  %v55 = vld [vmem:[%s0 + $0x128] sm:$0xff]
  %v56 = vld [vmem:[%s0 + $0x130] sm:$0xff]
  %v57 = vld [vmem:[%s0 + $0x138] sm:$0xff]
  %v58 = vld [vmem:[%s0 + $0x140] sm:$0xff]
  %v59 = vld [vmem:[%s0 + $0x148] sm:$0xff]
  %v60 = vld [vmem:[%s0 + $0x150] sm:$0xff]
  %v61 = vld [vmem:[%s0 + $0x158] sm:$0xff]
  %v62 = vld [vmem:[%s0 + $0x160] sm:$0xff]
  %v63 = vld [vmem:[%s0 + $0x168] sm:$0xff]
  %v64 = vld [vmem:[%s0 + $0x170] sm:$0xff]
  %v65 = vld [vmem:[%s0 + $0x178] sm:$0xff]
  %v66 = vld [vmem:[%s1] sm:$0xff]
  %v67 = vld [vmem:[%s1 + $0x8] sm:$0xff]
  %v68 = vld [vmem:[%s1 + $0x10] sm:$0xff]
  %v69 = vld [vmem:[%s1 + $0x18] sm:$0xff]
  %v70 = vld [vmem:[%s1 + $0x20] sm:$0xff]
  %v71 = vld [vmem:[%s1 + $0x28] sm:$0xff]
  %v72 = vld [vmem:[%s1 + $0x30] sm:$0xff]
  %v73 = vld [vmem:[%s1 + $0x38] sm:$0xff]
  %v74 = vld [vmem:[%s1 + $0x40] sm:$0xff]
  %v75 = vld [vmem:[%s1 + $0x48] sm:$0xff]
  %v76 = vld [vmem:[%s1 + $0x50] sm:$0xff]
  %v77 = vld [vmem:[%s1 + $0x58] sm:$0xff]
  %v78 = vld [vmem:[%s1 + $0x60] sm:$0xff]
  %v79 = vld [vmem:[%s1 + $0x68] sm:$0xff]
  %v80 = vld [vmem:[%s1 + $0x70] sm:$0xff]
  %v81 = vld [vmem:[%s1 + $0x78] sm:$0xff]
  %v82 = vld [vmem:[%s1 + $0x80] sm:$0xff]
  %v83 = vld [vmem:[%s1 + $0x88] sm:$0xff]
  %v84 = vld [vmem:[%s1 + $0x90] sm:$0xff]
  %v85 = vld [vmem:[%s1 + $0x98] sm:$0xff]
  %v86 = vld [vmem:[%s1 + $0xa0] sm:$0xff]
  %v87 = vld [vmem:[%s1 + $0xa8] sm:$0xff]
  %v88 = vld [vmem:[%s1 + $0xb0] sm:$0xff]
  %v89 = vld [vmem:[%s1 + $0xb8] sm:$0xff]
  %v90 = vld [vmem:[%s1 + $0xc0] sm:$0xff]
  %v91 = vld [vmem:[%s1 + $0xc8] sm:$0xff]
  %v92 = vld [vmem:[%s1 + $0xd0] sm:$0xff]
  %v93 = vld [vmem:[%s1 + $0xd8] sm:$0xff]
  %v94 = vld [vmem:[%s1 + $0xe0] sm:$0xff]
  %v95 = vld [vmem:[%s1 + $0xe8] sm:$0xff]
  %v96 = vld [vmem:[%s1 + $0xf0] sm:$0xff]
  %v97 = vld [vmem:[%s1 + $0xf8] sm:$0xff]
  %v98 = vld [vmem:[%s1 + $0x100] sm:$0xff]
  %v99 = vld [vmem:[%s1 + $0x108] sm:$0xff]
  %v100 = vld [vmem:[%s1 + $0x110] sm:$0xff]
  %v101 = vld [vmem:[%s1 + $0x118] sm:$0xff]
  %v102 = vld [vmem:[%s1 + $0x120] sm:$0xff]
  %v103 = vld [vmem:[%s1 + $0x128] sm:$0xff]
  %v104 = vld [vmem:[%s1 + $0x130] sm:$0xff]
  %v105 = vld [vmem:[%s1 + $0x138] sm:$0xff]
  %v106 = vld [vmem:[%s1 + $0x140] sm:$0xff]
  %v107 = vld [vmem:[%s1 + $0x148] sm:$0xff]
  %v108 = vld [vmem:[%s1 + $0x150] sm:$0xff]
  %v109 = vld [vmem:[%s1 + $0x158] sm:$0xff]
  %v110 = vld [vmem:[%s1 + $0x160] sm:$0xff]
  %v111 = vld [vmem:[%s1 + $0x168] sm:$0xff]
  %v112 = vld [vmem:[%s1 + $0x170] sm:$0xff]
  %v113 = vld [vmem:[%s1 + $0x178] sm:$0xff]
  %115 = vset.pattern.permute.xlu0 0
  %116 = vperm.xlu0 %115, %v66
  %v117 = vpop.permute.xlu0 %116
  %120 = vset.pattern.permute.xlu0 0
  %121 = vperm.xlu0 %120, %v67
  %v122 = vpop.permute.xlu0 %121
  %125 = vset.pattern.permute.xlu0 0
  %126 = vperm.xlu0 %125, %v68
  %v127 = vpop.permute.xlu0 %126
  %130 = vset.pattern.permute.xlu0 0
  %131 = vperm.xlu0 %130, %v69
  %v132 = vpop.permute.xlu0 %131
  %135 = vset.pattern.permute.xlu0 0
  %136 = vperm.xlu0 %135, %v70
  %v137 = vpop.permute.xlu0 %136
  %140 = vset.pattern.permute.xlu0 0
  %141 = vperm.xlu0 %140, %v71
  %v142 = vpop.permute.xlu0 %141
  %145 = vset.pattern.permute.xlu0 0
  %146 = vperm.xlu0 %145, %v72
  %v147 = vpop.permute.xlu0 %146
  %150 = vset.pattern.permute.xlu0 0
  %151 = vperm.xlu0 %150, %v73
  %v152 = vpop.permute.xlu0 %151
  %155 = vset.pattern.permute.xlu0 0
  %156 = vperm.xlu0 %155, %v74
  %v157 = vpop.permute.xlu0 %156
  %160 = vset.pattern.permute.xlu0 0
  %161 = vperm.xlu0 %160, %v75
  %v162 = vpop.permute.xlu0 %161
  %165 = vset.pattern.permute.xlu0 0
  %166 = vperm.xlu0 %165, %v76
  %v167 = vpop.permute.xlu0 %166
  %170 = vset.pattern.permute.xlu0 0
  %171 = vperm.xlu0 %170, %v77
  %v172 = vpop.permute.xlu0 %171
  %175 = vset.pattern.permute.xlu0 0
  %176 = vperm.xlu0 %175, %v78
  %v177 = vpop.permute.xlu0 %176
  %180 = vset.pattern.permute.xlu0 0
  %181 = vperm.xlu0 %180, %v79
  %v182 = vpop.permute.xlu0 %181
  %185 = vset.pattern.permute.xlu0 0
  %186 = vperm.xlu0 %185, %v80
  %v187 = vpop.permute.xlu0 %186
  %190 = vset.pattern.permute.xlu0 0
  %191 = vperm.xlu0 %190, %v81
  %v192 = vpop.permute.xlu0 %191
  %195 = vset.pattern.permute.xlu0 0
  %196 = vperm.xlu0 %195, %v82
  %v197 = vpop.permute.xlu0 %196
  %200 = vset.pattern.permute.xlu0 0
  %201 = vperm.xlu0 %200, %v83
  %v202 = vpop.permute.xlu0 %201
  %205 = vset.pattern.permute.xlu0 0
  %206 = vperm.xlu0 %205, %v84
  %v207 = vpop.permute.xlu0 %206
  %210 = vset.pattern.permute.xlu0 0
  %211 = vperm.xlu0 %210, %v85
  %v212 = vpop.permute.xlu0 %211
  %215 = vset.pattern.permute.xlu0 0
  %216 = vperm.xlu0 %215, %v86
  %v217 = vpop.permute.xlu0 %216
  %220 = vset.pattern.permute.xlu0 0
  %221 = vperm.xlu0 %220, %v87
  %v222 = vpop.permute.xlu0 %221
  %225 = vset.pattern.permute.xlu0 0
  %226 = vperm.xlu0 %225, %v88
  %v227 = vpop.permute.xlu0 %226
  %230 = vset.pattern.permute.xlu0 0
  %231 = vperm.xlu0 %230, %v89
  %v232 = vpop.permute.xlu0 %231
  %235 = vset.pattern.permute.xlu0 0
  %236 = vperm.xlu0 %235, %v90
  %v237 = vpop.permute.xlu0 %236
  %240 = vset.pattern.permute.xlu0 0
  %241 = vperm.xlu0 %240, %v91
  %v242 = vpop.permute.xlu0 %241
  %245 = vset.pattern.permute.xlu0 0
  %246 = vperm.xlu0 %245, %v92
  %v247 = vpop.permute.xlu0 %246
  %250 = vset.pattern.permute.xlu0 0
  %251 = vperm.xlu0 %250, %v93
  %v252 = vpop.permute.xlu0 %251
  %255 = vset.pattern.permute.xlu0 0
  %256 = vperm.xlu0 %255, %v94
  %v257 = vpop.permute.xlu0 %256
  %260 = vset.pattern.permute.xlu0 0
  %261 = vperm.xlu0 %260, %v95
  %v262 = vpop.permute.xlu0 %261
  %265 = vset.pattern.permute.xlu0 0
  %266 = vperm.xlu0 %265, %v96
  %v267 = vpop.permute.xlu0 %266
  %270 = vset.pattern.permute.xlu0 0
  %271 = vperm.xlu0 %270, %v97
  %v272 = vpop.permute.xlu0 %271
  %275 = vset.pattern.permute.xlu0 0
  %276 = vperm.xlu0 %275, %v98
  %v277 = vpop.permute.xlu0 %276
  %280 = vset.pattern.permute.xlu0 0
  %281 = vperm.xlu0 %280, %v99
  %v282 = vpop.permute.xlu0 %281
  %285 = vset.pattern.permute.xlu0 0
  %286 = vperm.xlu0 %285, %v100
  %v287 = vpop.permute.xlu0 %286
  %290 = vset.pattern.permute.xlu0 0
  %291 = vperm.xlu0 %290, %v101
  %v292 = vpop.permute.xlu0 %291
  %295 = vset.pattern.permute.xlu0 0
  %296 = vperm.xlu0 %295, %v102
  %v297 = vpop.permute.xlu0 %296
  %300 = vset.pattern.permute.xlu0 0
  %301 = vperm.xlu0 %300, %v103
  %v302 = vpop.permute.xlu0 %301
  %305 = vset.pattern.permute.xlu0 0
  %306 = vperm.xlu0 %305, %v104
  %v307 = vpop.permute.xlu0 %306
  %310 = vset.pattern.permute.xlu0 0
  %311 = vperm.xlu0 %310, %v105
  %v312 = vpop.permute.xlu0 %311
  %315 = vset.pattern.permute.xlu0 0
  %316 = vperm.xlu0 %315, %v106
  %v317 = vpop.permute.xlu0 %316
  %320 = vset.pattern.permute.xlu0 0
  %321 = vperm.xlu0 %320, %v107
  %v322 = vpop.permute.xlu0 %321
  %325 = vset.pattern.permute.xlu0 0
  %326 = vperm.xlu0 %325, %v108
  %v327 = vpop.permute.xlu0 %326
  %330 = vset.pattern.permute.xlu0 0
  %331 = vperm.xlu0 %330, %v109
  %v332 = vpop.permute.xlu0 %331
  %335 = vset.pattern.permute.xlu0 0
  %336 = vperm.xlu0 %335, %v110
  %v337 = vpop.permute.xlu0 %336
  %340 = vset.pattern.permute.xlu0 0
  %341 = vperm.xlu0 %340, %v111
  %v342 = vpop.permute.xlu0 %341
  %345 = vset.pattern.permute.xlu0 0
  %346 = vperm.xlu0 %345, %v112
  %v347 = vpop.permute.xlu0 %346
  %350 = vset.pattern.permute.xlu0 0
  %351 = vperm.xlu0 %350, %v113
  %v352 = vpop.permute.xlu0 %351
  %v354 = vmul.f32 %v117, %v18
  %v355 = vmul.f32 %v122, %v19
  %v356 = vmul.f32 %v127, %v20
  %v357 = vmul.f32 %v132, %v21
  %v358 = vmul.f32 %v137, %v22
  %v359 = vmul.f32 %v142, %v23
  %v360 = vmul.f32 %v147, %v24
  %v361 = vmul.f32 %v152, %v25
  %v362 = vmul.f32 %v157, %v26
  %v363 = vmul.f32 %v162, %v27
  %v364 = vmul.f32 %v167, %v28
  %v365 = vmul.f32 %v172, %v29
  %v366 = vmul.f32 %v177, %v30
  %v367 = vmul.f32 %v182, %v31
  %v368 = vmul.f32 %v187, %v32
  %v369 = vmul.f32 %v192, %v33
  %v370 = vmul.f32 %v197, %v34
  %v371 = vmul.f32 %v202, %v35
  %v372 = vmul.f32 %v207, %v36
  %v373 = vmul.f32 %v212, %v37
  %v374 = vmul.f32 %v217, %v38
  %v375 = vmul.f32 %v222, %v39
  %v376 = vmul.f32 %v227, %v40
  %v377 = vmul.f32 %v232, %v41
  %v378 = vmul.f32 %v237, %v42
  %v379 = vmul.f32 %v242, %v43
  %v380 = vmul.f32 %v247, %v44
  %v381 = vmul.f32 %v252, %v45
  %v382 = vmul.f32 %v257, %v46
  %v383 = vmul.f32 %v262, %v47
  %v384 = vmul.f32 %v267, %v48
  %v385 = vmul.f32 %v272, %v49
  %v386 = vmul.f32 %v277, %v50
  %v387 = vmul.f32 %v282, %v51
  %v388 = vmul.f32 %v287, %v52
  %v389 = vmul.f32 %v292, %v53
  %v390 = vmul.f32 %v297, %v54
  %v391 = vmul.f32 %v302, %v55
  %v392 = vmul.f32 %v307, %v56
  %v393 = vmul.f32 %v312, %v57
  %v394 = vmul.f32 %v317, %v58
  %v395 = vmul.f32 %v322, %v59
  %v396 = vmul.f32 %v327, %v60
  %v397 = vmul.f32 %v332, %v61
  %v398 = vmul.f32 %v337, %v62
  %v399 = vmul.f32 %v342, %v63
  %v400 = vmul.f32 %v347, %v64
  %v401 = vmul.f32 %v352, %v65
  %vm402 = vcmask 31744
  %v403 = vsel %vm402, %v354, 0.0
  %v404 = vrot.slane %v403, 4
  %v405 = vadd.f32 %v403, %v404
  %v406 = vrot.slane %v405, 2
  %v407 = vadd.f32 %v405, %v406
  %v408 = vrot.slane %v407, 1
  %v409 = vadd.f32 %v407, %v408
  %v410 = vsel %vm402, %v355, 0.0
  %v411 = vrot.slane %v410, 4
  %v412 = vadd.f32 %v410, %v411
  %v413 = vrot.slane %v412, 2
  %v414 = vadd.f32 %v412, %v413
  %v415 = vrot.slane %v414, 1
  %v416 = vadd.f32 %v414, %v415
  %v417 = vsel %vm402, %v356, 0.0
  %v418 = vrot.slane %v417, 4
  %v419 = vadd.f32 %v417, %v418
  %v420 = vrot.slane %v419, 2
  %v421 = vadd.f32 %v419, %v420
  %v422 = vrot.slane %v421, 1
  %v423 = vadd.f32 %v421, %v422
  %v424 = vsel %vm402, %v357, 0.0
  %v425 = vrot.slane %v424, 4
  %v426 = vadd.f32 %v424, %v425
  %v427 = vrot.slane %v426, 2
  %v428 = vadd.f32 %v426, %v427
  %v429 = vrot.slane %v428, 1
  %v430 = vadd.f32 %v428, %v429
  %v431 = vsel %vm402, %v358, 0.0
  %v432 = vrot.slane %v431, 4
  %v433 = vadd.f32 %v431, %v432
  %v434 = vrot.slane %v433, 2
  %v435 = vadd.f32 %v433, %v434
  %v436 = vrot.slane %v435, 1
  %v437 = vadd.f32 %v435, %v436
  %v438 = vsel %vm402, %v359, 0.0
  %v439 = vrot.slane %v438, 4
  %v440 = vadd.f32 %v438, %v439
  %v441 = vrot.slane %v440, 2
  %v442 = vadd.f32 %v440, %v441
  %v443 = vrot.slane %v442, 1
  %v444 = vadd.f32 %v442, %v443
  %v445 = vsel %vm402, %v360, 0.0
  %v446 = vrot.slane %v445, 4
  %v447 = vadd.f32 %v445, %v446
  %v448 = vrot.slane %v447, 2
  %v449 = vadd.f32 %v447, %v448
  %v450 = vrot.slane %v449, 1
  %v451 = vadd.f32 %v449, %v450
  %v452 = vsel %vm402, %v361, 0.0
  %v453 = vrot.slane %v452, 4
  %v454 = vadd.f32 %v452, %v453
  %v455 = vrot.slane %v454, 2
  %v456 = vadd.f32 %v454, %v455
  %v457 = vrot.slane %v456, 1
  %v458 = vadd.f32 %v456, %v457
  %v459 = vsel %vm402, %v362, 0.0
  %v460 = vrot.slane %v459, 4
  %v461 = vadd.f32 %v459, %v460
  %v462 = vrot.slane %v461, 2
  %v463 = vadd.f32 %v461, %v462
  %v464 = vrot.slane %v463, 1
  %v465 = vadd.f32 %v463, %v464
  %v466 = vsel %vm402, %v363, 0.0
  %v467 = vrot.slane %v466, 4
  %v468 = vadd.f32 %v466, %v467
  %v469 = vrot.slane %v468, 2
  %v470 = vadd.f32 %v468, %v469
  %v471 = vrot.slane %v470, 1
  %v472 = vadd.f32 %v470, %v471
  %v473 = vsel %vm402, %v364, 0.0
  %v474 = vrot.slane %v473, 4
  %v475 = vadd.f32 %v473, %v474
  %v476 = vrot.slane %v475, 2
  %v477 = vadd.f32 %v475, %v476
  %v478 = vrot.slane %v477, 1
  %v479 = vadd.f32 %v477, %v478
  %v480 = vsel %vm402, %v365, 0.0
  %v481 = vrot.slane %v480, 4
  %v482 = vadd.f32 %v480, %v481
  %v483 = vrot.slane %v482, 2
  %v484 = vadd.f32 %v482, %v483
  %v485 = vrot.slane %v484, 1
  %v486 = vadd.f32 %v484, %v485
  %v487 = vsel %vm402, %v366, 0.0
  %v488 = vrot.slane %v487, 4
  %v489 = vadd.f32 %v487, %v488
  %v490 = vrot.slane %v489, 2
  %v491 = vadd.f32 %v489, %v490
  %v492 = vrot.slane %v491, 1
  %v493 = vadd.f32 %v491, %v492
  %v494 = vsel %vm402, %v367, 0.0
  %v495 = vrot.slane %v494, 4
  %v496 = vadd.f32 %v494, %v495
  %v497 = vrot.slane %v496, 2
  %v498 = vadd.f32 %v496, %v497
  %v499 = vrot.slane %v498, 1
  %v500 = vadd.f32 %v498, %v499
  %v501 = vsel %vm402, %v368, 0.0
  %v502 = vrot.slane %v501, 4
  %v503 = vadd.f32 %v501, %v502
  %v504 = vrot.slane %v503, 2
  %v505 = vadd.f32 %v503, %v504
  %v506 = vrot.slane %v505, 1
  %v507 = vadd.f32 %v505, %v506
  %v508 = vsel %vm402, %v369, 0.0
  %v509 = vrot.slane %v508, 4
  %v510 = vadd.f32 %v508, %v509
  %v511 = vrot.slane %v510, 2
  %v512 = vadd.f32 %v510, %v511
  %v513 = vrot.slane %v512, 1
  %v514 = vadd.f32 %v512, %v513
  %v515 = vsel %vm402, %v370, 0.0
  %v516 = vrot.slane %v515, 4
  %v517 = vadd.f32 %v515, %v516
  %v518 = vrot.slane %v517, 2
  %v519 = vadd.f32 %v517, %v518
  %v520 = vrot.slane %v519, 1
  %v521 = vadd.f32 %v519, %v520
  %v522 = vsel %vm402, %v371, 0.0
  %v523 = vrot.slane %v522, 4
  %v524 = vadd.f32 %v522, %v523
  %v525 = vrot.slane %v524, 2
  %v526 = vadd.f32 %v524, %v525
  %v527 = vrot.slane %v526, 1
  %v528 = vadd.f32 %v526, %v527
  %v529 = vsel %vm402, %v372, 0.0
  %v530 = vrot.slane %v529, 4
  %v531 = vadd.f32 %v529, %v530
  %v532 = vrot.slane %v531, 2
  %v533 = vadd.f32 %v531, %v532
  %v534 = vrot.slane %v533, 1
  %v535 = vadd.f32 %v533, %v534
  %v536 = vsel %vm402, %v373, 0.0
  %v537 = vrot.slane %v536, 4
  %v538 = vadd.f32 %v536, %v537
  %v539 = vrot.slane %v538, 2
  %v540 = vadd.f32 %v538, %v539
  %v541 = vrot.slane %v540, 1
  %v542 = vadd.f32 %v540, %v541
  %v543 = vsel %vm402, %v374, 0.0
  %v544 = vrot.slane %v543, 4
  %v545 = vadd.f32 %v543, %v544
  %v546 = vrot.slane %v545, 2
  %v547 = vadd.f32 %v545, %v546
  %v548 = vrot.slane %v547, 1
  %v549 = vadd.f32 %v547, %v548
  %v550 = vsel %vm402, %v375, 0.0
  %v551 = vrot.slane %v550, 4
  %v552 = vadd.f32 %v550, %v551
  %v553 = vrot.slane %v552, 2
  %v554 = vadd.f32 %v552, %v553
  %v555 = vrot.slane %v554, 1
  %v556 = vadd.f32 %v554, %v555
  %v557 = vsel %vm402, %v376, 0.0
  %v558 = vrot.slane %v557, 4
  %v559 = vadd.f32 %v557, %v558
  %v560 = vrot.slane %v559, 2
  %v561 = vadd.f32 %v559, %v560
  %v562 = vrot.slane %v561, 1
  %v563 = vadd.f32 %v561, %v562
  %v564 = vsel %vm402, %v377, 0.0
  %v565 = vrot.slane %v564, 4
  %v566 = vadd.f32 %v564, %v565
  %v567 = vrot.slane %v566, 2
  %v568 = vadd.f32 %v566, %v567
  %v569 = vrot.slane %v568, 1
  %v570 = vadd.f32 %v568, %v569
  %v571 = vsel %vm402, %v378, 0.0
  %v572 = vrot.slane %v571, 4
  %v573 = vadd.f32 %v571, %v572
  %v574 = vrot.slane %v573, 2
  %v575 = vadd.f32 %v573, %v574
  %v576 = vrot.slane %v575, 1
  %v577 = vadd.f32 %v575, %v576
  %v578 = vsel %vm402, %v379, 0.0
  %v579 = vrot.slane %v578, 4
  %v580 = vadd.f32 %v578, %v579
  %v581 = vrot.slane %v580, 2
  %v582 = vadd.f32 %v580, %v581
  %v583 = vrot.slane %v582, 1
  %v584 = vadd.f32 %v582, %v583
  %v585 = vsel %vm402, %v380, 0.0
  %v586 = vrot.slane %v585, 4
  %v587 = vadd.f32 %v585, %v586
  %v588 = vrot.slane %v587, 2
  %v589 = vadd.f32 %v587, %v588
  %v590 = vrot.slane %v589, 1
  %v591 = vadd.f32 %v589, %v590
  %v592 = vsel %vm402, %v381, 0.0
  %v593 = vrot.slane %v592, 4
  %v594 = vadd.f32 %v592, %v593
  %v595 = vrot.slane %v594, 2
  %v596 = vadd.f32 %v594, %v595
  %v597 = vrot.slane %v596, 1
  %v598 = vadd.f32 %v596, %v597
  %v599 = vsel %vm402, %v382, 0.0
  %v600 = vrot.slane %v599, 4
  %v601 = vadd.f32 %v599, %v600
  %v602 = vrot.slane %v601, 2
  %v603 = vadd.f32 %v601, %v602
  %v604 = vrot.slane %v603, 1
  %v605 = vadd.f32 %v603, %v604
  %v606 = vsel %vm402, %v383, 0.0
  %v607 = vrot.slane %v606, 4
  %v608 = vadd.f32 %v606, %v607
  %v609 = vrot.slane %v608, 2
  %v610 = vadd.f32 %v608, %v609
  %v611 = vrot.slane %v610, 1
  %v612 = vadd.f32 %v610, %v611
  %v613 = vsel %vm402, %v384, 0.0
  %v614 = vrot.slane %v613, 4
  %v615 = vadd.f32 %v613, %v614
  %v616 = vrot.slane %v615, 2
  %v617 = vadd.f32 %v615, %v616
  %v618 = vrot.slane %v617, 1
  %v619 = vadd.f32 %v617, %v618
  %v620 = vsel %vm402, %v385, 0.0
  %v621 = vrot.slane %v620, 4
  %v622 = vadd.f32 %v620, %v621
  %v623 = vrot.slane %v622, 2
  %v624 = vadd.f32 %v622, %v623
  %v625 = vrot.slane %v624, 1
  %v626 = vadd.f32 %v624, %v625
  %v627 = vsel %vm402, %v386, 0.0
  %v628 = vrot.slane %v627, 4
  %v629 = vadd.f32 %v627, %v628
  %v630 = vrot.slane %v629, 2
  %v631 = vadd.f32 %v629, %v630
  %v632 = vrot.slane %v631, 1
  %v633 = vadd.f32 %v631, %v632
  %v634 = vsel %vm402, %v387, 0.0
  %v635 = vrot.slane %v634, 4
  %v636 = vadd.f32 %v634, %v635
  %v637 = vrot.slane %v636, 2
  %v638 = vadd.f32 %v636, %v637
  %v639 = vrot.slane %v638, 1
  %v640 = vadd.f32 %v638, %v639
  %v641 = vsel %vm402, %v388, 0.0
  %v642 = vrot.slane %v641, 4
  %v643 = vadd.f32 %v641, %v642
  %v644 = vrot.slane %v643, 2
  %v645 = vadd.f32 %v643, %v644
  %v646 = vrot.slane %v645, 1
  %v647 = vadd.f32 %v645, %v646
  %v648 = vsel %vm402, %v389, 0.0
  %v649 = vrot.slane %v648, 4
  %v650 = vadd.f32 %v648, %v649
  %v651 = vrot.slane %v650, 2
  %v652 = vadd.f32 %v650, %v651
  %v653 = vrot.slane %v652, 1
  %v654 = vadd.f32 %v652, %v653
  %v655 = vsel %vm402, %v390, 0.0
  %v656 = vrot.slane %v655, 4
  %v657 = vadd.f32 %v655, %v656
  %v658 = vrot.slane %v657, 2
  %v659 = vadd.f32 %v657, %v658
  %v660 = vrot.slane %v659, 1
  %v661 = vadd.f32 %v659, %v660
  %v662 = vsel %vm402, %v391, 0.0
  %v663 = vrot.slane %v662, 4
  %v664 = vadd.f32 %v662, %v663
  %v665 = vrot.slane %v664, 2
  %v666 = vadd.f32 %v664, %v665
  %v667 = vrot.slane %v666, 1
  %v668 = vadd.f32 %v666, %v667
  %v669 = vsel %vm402, %v392, 0.0
  %v670 = vrot.slane %v669, 4
  %v671 = vadd.f32 %v669, %v670
  %v672 = vrot.slane %v671, 2
  %v673 = vadd.f32 %v671, %v672
  %v674 = vrot.slane %v673, 1
  %v675 = vadd.f32 %v673, %v674
  %v676 = vsel %vm402, %v393, 0.0
  %v677 = vrot.slane %v676, 4
  %v678 = vadd.f32 %v676, %v677
  %v679 = vrot.slane %v678, 2
  %v680 = vadd.f32 %v678, %v679
  %v681 = vrot.slane %v680, 1
  %v682 = vadd.f32 %v680, %v681
  %v683 = vsel %vm402, %v394, 0.0
  %v684 = vrot.slane %v683, 4
  %v685 = vadd.f32 %v683, %v684
  %v686 = vrot.slane %v685, 2
  %v687 = vadd.f32 %v685, %v686
  %v688 = vrot.slane %v687, 1
  %v689 = vadd.f32 %v687, %v688
  %v690 = vsel %vm402, %v395, 0.0
  %v691 = vrot.slane %v690, 4
  %v692 = vadd.f32 %v690, %v691
  %v693 = vrot.slane %v692, 2
  %v694 = vadd.f32 %v692, %v693
  %v695 = vrot.slane %v694, 1
  %v696 = vadd.f32 %v694, %v695
  %v697 = vsel %vm402, %v396, 0.0
  %v698 = vrot.slane %v697, 4
  %v699 = vadd.f32 %v697, %v698
  %v700 = vrot.slane %v699, 2
  %v701 = vadd.f32 %v699, %v700
  %v702 = vrot.slane %v701, 1
  %v703 = vadd.f32 %v701, %v702
  %v704 = vsel %vm402, %v397, 0.0
  %v705 = vrot.slane %v704, 4
  %v706 = vadd.f32 %v704, %v705
  %v707 = vrot.slane %v706, 2
  %v708 = vadd.f32 %v706, %v707
  %v709 = vrot.slane %v708, 1
  %v710 = vadd.f32 %v708, %v709
  %v711 = vsel %vm402, %v398, 0.0
  %v712 = vrot.slane %v711, 4
  %v713 = vadd.f32 %v711, %v712
  %v714 = vrot.slane %v713, 2
  %v715 = vadd.f32 %v713, %v714
  %v716 = vrot.slane %v715, 1
  %v717 = vadd.f32 %v715, %v716
  %v718 = vsel %vm402, %v399, 0.0
  %v719 = vrot.slane %v718, 4
  %v720 = vadd.f32 %v718, %v719
  %v721 = vrot.slane %v720, 2
  %v722 = vadd.f32 %v720, %v721
  %v723 = vrot.slane %v722, 1
  %v724 = vadd.f32 %v722, %v723
  %v725 = vsel %vm402, %v400, 0.0
  %v726 = vrot.slane %v725, 4
  %v727 = vadd.f32 %v725, %v726
  %v728 = vrot.slane %v727, 2
  %v729 = vadd.f32 %v727, %v728
  %v730 = vrot.slane %v729, 1
  %v731 = vadd.f32 %v729, %v730
  %v732 = vsel %vm402, %v401, 0.0
  %v733 = vrot.slane %v732, 4
  %v734 = vadd.f32 %v732, %v733
  %v735 = vrot.slane %v734, 2
  %v736 = vadd.f32 %v734, %v735
  %v737 = vrot.slane %v736, 1
  %v738 = vadd.f32 %v736, %v737
  %739 = vset.pattern.permute.xlu0 1
  %740 = vperm.xlu0 %739, %v66
  %v741 = vpop.permute.xlu0 %740
  %743 = vset.pattern.permute.xlu0 1
  %744 = vperm.xlu0 %743, %v67
  %v745 = vpop.permute.xlu0 %744
  %747 = vset.pattern.permute.xlu0 1
  %748 = vperm.xlu0 %747, %v68
  %v749 = vpop.permute.xlu0 %748
  %751 = vset.pattern.permute.xlu0 1
  %752 = vperm.xlu0 %751, %v69
  %v753 = vpop.permute.xlu0 %752
  %755 = vset.pattern.permute.xlu0 1
  %756 = vperm.xlu0 %755, %v70
  %v757 = vpop.permute.xlu0 %756
  %759 = vset.pattern.permute.xlu0 1
  %760 = vperm.xlu0 %759, %v71
  %v761 = vpop.permute.xlu0 %760
  %763 = vset.pattern.permute.xlu0 1
  %764 = vperm.xlu0 %763, %v72
  %v765 = vpop.permute.xlu0 %764
  %767 = vset.pattern.permute.xlu0 1
  %768 = vperm.xlu0 %767, %v73
  %v769 = vpop.permute.xlu0 %768
  %771 = vset.pattern.permute.xlu0 1
  %772 = vperm.xlu0 %771, %v74
  %v773 = vpop.permute.xlu0 %772
  %775 = vset.pattern.permute.xlu0 1
  %776 = vperm.xlu0 %775, %v75
  %v777 = vpop.permute.xlu0 %776
  %779 = vset.pattern.permute.xlu0 1
  %780 = vperm.xlu0 %779, %v76
  %v781 = vpop.permute.xlu0 %780
  %783 = vset.pattern.permute.xlu0 1
  %784 = vperm.xlu0 %783, %v77
  %v785 = vpop.permute.xlu0 %784
  %787 = vset.pattern.permute.xlu0 1
  %788 = vperm.xlu0 %787, %v78
  %v789 = vpop.permute.xlu0 %788
  %791 = vset.pattern.permute.xlu0 1
  %792 = vperm.xlu0 %791, %v79
  %v793 = vpop.permute.xlu0 %792
  %795 = vset.pattern.permute.xlu0 1
  %796 = vperm.xlu0 %795, %v80
  %v797 = vpop.permute.xlu0 %796
  %799 = vset.pattern.permute.xlu0 1
  %800 = vperm.xlu0 %799, %v81
  %v801 = vpop.permute.xlu0 %800
  %803 = vset.pattern.permute.xlu0 1
  %804 = vperm.xlu0 %803, %v82
  %v805 = vpop.permute.xlu0 %804
  %807 = vset.pattern.permute.xlu0 1
  %808 = vperm.xlu0 %807, %v83
  %v809 = vpop.permute.xlu0 %808
  %811 = vset.pattern.permute.xlu0 1
  %812 = vperm.xlu0 %811, %v84
  %v813 = vpop.permute.xlu0 %812
  %815 = vset.pattern.permute.xlu0 1
  %816 = vperm.xlu0 %815, %v85
  %v817 = vpop.permute.xlu0 %816
  %819 = vset.pattern.permute.xlu0 1
  %820 = vperm.xlu0 %819, %v86
  %v821 = vpop.permute.xlu0 %820
  %823 = vset.pattern.permute.xlu0 1
  %824 = vperm.xlu0 %823, %v87
  %v825 = vpop.permute.xlu0 %824
  %827 = vset.pattern.permute.xlu0 1
  %828 = vperm.xlu0 %827, %v88
  %v829 = vpop.permute.xlu0 %828
  %831 = vset.pattern.permute.xlu0 1
  %832 = vperm.xlu0 %831, %v89
  %v833 = vpop.permute.xlu0 %832
  %835 = vset.pattern.permute.xlu0 1
  %836 = vperm.xlu0 %835, %v90
  %v837 = vpop.permute.xlu0 %836
  %839 = vset.pattern.permute.xlu0 1
  %840 = vperm.xlu0 %839, %v91
  %v841 = vpop.permute.xlu0 %840
  %843 = vset.pattern.permute.xlu0 1
  %844 = vperm.xlu0 %843, %v92
  %v845 = vpop.permute.xlu0 %844
  %847 = vset.pattern.permute.xlu0 1
  %848 = vperm.xlu0 %847, %v93
  %v849 = vpop.permute.xlu0 %848
  %851 = vset.pattern.permute.xlu0 1
  %852 = vperm.xlu0 %851, %v94
  %v853 = vpop.permute.xlu0 %852
  %855 = vset.pattern.permute.xlu0 1
  %856 = vperm.xlu0 %855, %v95
  %v857 = vpop.permute.xlu0 %856
  %859 = vset.pattern.permute.xlu0 1
  %860 = vperm.xlu0 %859, %v96
  %v861 = vpop.permute.xlu0 %860
  %863 = vset.pattern.permute.xlu0 1
  %864 = vperm.xlu0 %863, %v97
  %v865 = vpop.permute.xlu0 %864
  %867 = vset.pattern.permute.xlu0 1
  %868 = vperm.xlu0 %867, %v98
  %v869 = vpop.permute.xlu0 %868
  %871 = vset.pattern.permute.xlu0 1
  %872 = vperm.xlu0 %871, %v99
  %v873 = vpop.permute.xlu0 %872
  %875 = vset.pattern.permute.xlu0 1
  %876 = vperm.xlu0 %875, %v100
  %v877 = vpop.permute.xlu0 %876
  %879 = vset.pattern.permute.xlu0 1
  %880 = vperm.xlu0 %879, %v101
  %v881 = vpop.permute.xlu0 %880
  %883 = vset.pattern.permute.xlu0 1
  %884 = vperm.xlu0 %883, %v102
  %v885 = vpop.permute.xlu0 %884
  %887 = vset.pattern.permute.xlu0 1
  %888 = vperm.xlu0 %887, %v103
  %v889 = vpop.permute.xlu0 %888
  %891 = vset.pattern.permute.xlu0 1
  %892 = vperm.xlu0 %891, %v104
  %v893 = vpop.permute.xlu0 %892
  %895 = vset.pattern.permute.xlu0 1
  %896 = vperm.xlu0 %895, %v105
  %v897 = vpop.permute.xlu0 %896
  %899 = vset.pattern.permute.xlu0 1
  %900 = vperm.xlu0 %899, %v106
  %v901 = vpop.permute.xlu0 %900
  %903 = vset.pattern.permute.xlu0 1
  %904 = vperm.xlu0 %903, %v107
  %v905 = vpop.permute.xlu0 %904
  %907 = vset.pattern.permute.xlu0 1
  %908 = vperm.xlu0 %907, %v108
  %v909 = vpop.permute.xlu0 %908
  %911 = vset.pattern.permute.xlu0 1
  %912 = vperm.xlu0 %911, %v109
  %v913 = vpop.permute.xlu0 %912
  %915 = vset.pattern.permute.xlu0 1
  %916 = vperm.xlu0 %915, %v110
  %v917 = vpop.permute.xlu0 %916
  %919 = vset.pattern.permute.xlu0 1
  %920 = vperm.xlu0 %919, %v111
  %v921 = vpop.permute.xlu0 %920
  %923 = vset.pattern.permute.xlu0 1
  %924 = vperm.xlu0 %923, %v112
  %v925 = vpop.permute.xlu0 %924
  %927 = vset.pattern.permute.xlu0 1
  %928 = vperm.xlu0 %927, %v113
  %v929 = vpop.permute.xlu0 %928
  %v931 = vmul.f32 %v741, %v18
  %v932 = vmul.f32 %v745, %v19
  %v933 = vmul.f32 %v749, %v20
  %v934 = vmul.f32 %v753, %v21
  %v935 = vmul.f32 %v757, %v22
  %v936 = vmul.f32 %v761, %v23
  %v937 = vmul.f32 %v765, %v24
  %v938 = vmul.f32 %v769, %v25
  %v939 = vmul.f32 %v773, %v26
  %v940 = vmul.f32 %v777, %v27
  %v941 = vmul.f32 %v781, %v28
  %v942 = vmul.f32 %v785, %v29
  %v943 = vmul.f32 %v789, %v30
  %v944 = vmul.f32 %v793, %v31
  %v945 = vmul.f32 %v797, %v32
  %v946 = vmul.f32 %v801, %v33
  %v947 = vmul.f32 %v805, %v34
  %v948 = vmul.f32 %v809, %v35
  %v949 = vmul.f32 %v813, %v36
  %v950 = vmul.f32 %v817, %v37
  %v951 = vmul.f32 %v821, %v38
  %v952 = vmul.f32 %v825, %v39
  %v953 = vmul.f32 %v829, %v40
  %v954 = vmul.f32 %v833, %v41
  %v955 = vmul.f32 %v837, %v42
  %v956 = vmul.f32 %v841, %v43
  %v957 = vmul.f32 %v845, %v44
  %v958 = vmul.f32 %v849, %v45
  %v959 = vmul.f32 %v853, %v46
  %v960 = vmul.f32 %v857, %v47
  %v961 = vmul.f32 %v861, %v48
  %v962 = vmul.f32 %v865, %v49
  %v963 = vmul.f32 %v869, %v50
  %v964 = vmul.f32 %v873, %v51
  %v965 = vmul.f32 %v877, %v52
  %v966 = vmul.f32 %v881, %v53
  %v967 = vmul.f32 %v885, %v54
  %v968 = vmul.f32 %v889, %v55
  %v969 = vmul.f32 %v893, %v56
  %v970 = vmul.f32 %v897, %v57
  %v971 = vmul.f32 %v901, %v58
  %v972 = vmul.f32 %v905, %v59
  %v973 = vmul.f32 %v909, %v60
  %v974 = vmul.f32 %v913, %v61
  %v975 = vmul.f32 %v917, %v62
  %v976 = vmul.f32 %v921, %v63
  %v977 = vmul.f32 %v925, %v64
  %v978 = vmul.f32 %v929, %v65
  %v979 = vsel %vm402, %v931, 0.0
  %v980 = vrot.slane %v979, 4
  %v981 = vadd.f32 %v979, %v980
  %v982 = vrot.slane %v981, 2
  %v983 = vadd.f32 %v981, %v982
  %v984 = vrot.slane %v983, 1
  %v985 = vadd.f32 %v983, %v984
  %v986 = vsel %vm402, %v932, 0.0
  %v987 = vrot.slane %v986, 4
  %v988 = vadd.f32 %v986, %v987
  %v989 = vrot.slane %v988, 2
  %v990 = vadd.f32 %v988, %v989
  %v991 = vrot.slane %v990, 1
  %v992 = vadd.f32 %v990, %v991
  %v993 = vsel %vm402, %v933, 0.0
  %v994 = vrot.slane %v993, 4
  %v995 = vadd.f32 %v993, %v994
  %v996 = vrot.slane %v995, 2
  %v997 = vadd.f32 %v995, %v996
  %v998 = vrot.slane %v997, 1
  %v999 = vadd.f32 %v997, %v998
  %v1000 = vsel %vm402, %v934, 0.0
  %v1001 = vrot.slane %v1000, 4
  %v1002 = vadd.f32 %v1000, %v1001
  %v1003 = vrot.slane %v1002, 2
  %v1004 = vadd.f32 %v1002, %v1003
  %v1005 = vrot.slane %v1004, 1
  %v1006 = vadd.f32 %v1004, %v1005
  %v1007 = vsel %vm402, %v935, 0.0
  %v1008 = vrot.slane %v1007, 4
  %v1009 = vadd.f32 %v1007, %v1008
  %v1010 = vrot.slane %v1009, 2
  %v1011 = vadd.f32 %v1009, %v1010
  %v1012 = vrot.slane %v1011, 1
  %v1013 = vadd.f32 %v1011, %v1012
  %v1014 = vsel %vm402, %v936, 0.0
  %v1015 = vrot.slane %v1014, 4
  %v1016 = vadd.f32 %v1014, %v1015
  %v1017 = vrot.slane %v1016, 2
  %v1018 = vadd.f32 %v1016, %v1017
  %v1019 = vrot.slane %v1018, 1
  %v1020 = vadd.f32 %v1018, %v1019
  %v1021 = vsel %vm402, %v937, 0.0
  %v1022 = vrot.slane %v1021, 4
  %v1023 = vadd.f32 %v1021, %v1022
  %v1024 = vrot.slane %v1023, 2
  %v1025 = vadd.f32 %v1023, %v1024
  %v1026 = vrot.slane %v1025, 1
  %v1027 = vadd.f32 %v1025, %v1026
  %v1028 = vsel %vm402, %v938, 0.0
  %v1029 = vrot.slane %v1028, 4
  %v1030 = vadd.f32 %v1028, %v1029
  %v1031 = vrot.slane %v1030, 2
  %v1032 = vadd.f32 %v1030, %v1031
  %v1033 = vrot.slane %v1032, 1
  %v1034 = vadd.f32 %v1032, %v1033
  %v1035 = vsel %vm402, %v939, 0.0
  %v1036 = vrot.slane %v1035, 4
  %v1037 = vadd.f32 %v1035, %v1036
  %v1038 = vrot.slane %v1037, 2
  %v1039 = vadd.f32 %v1037, %v1038
  %v1040 = vrot.slane %v1039, 1
  %v1041 = vadd.f32 %v1039, %v1040
  %v1042 = vsel %vm402, %v940, 0.0
  %v1043 = vrot.slane %v1042, 4
  %v1044 = vadd.f32 %v1042, %v1043
  %v1045 = vrot.slane %v1044, 2
  %v1046 = vadd.f32 %v1044, %v1045
  %v1047 = vrot.slane %v1046, 1
  %v1048 = vadd.f32 %v1046, %v1047
  %v1049 = vsel %vm402, %v941, 0.0
  %v1050 = vrot.slane %v1049, 4
  %v1051 = vadd.f32 %v1049, %v1050
  %v1052 = vrot.slane %v1051, 2
  %v1053 = vadd.f32 %v1051, %v1052
  %v1054 = vrot.slane %v1053, 1
  %v1055 = vadd.f32 %v1053, %v1054
  %v1056 = vsel %vm402, %v942, 0.0
  %v1057 = vrot.slane %v1056, 4
  %v1058 = vadd.f32 %v1056, %v1057
  %v1059 = vrot.slane %v1058, 2
  %v1060 = vadd.f32 %v1058, %v1059
  %v1061 = vrot.slane %v1060, 1
  %v1062 = vadd.f32 %v1060, %v1061
  %v1063 = vsel %vm402, %v943, 0.0
  %v1064 = vrot.slane %v1063, 4
  %v1065 = vadd.f32 %v1063, %v1064
  %v1066 = vrot.slane %v1065, 2
  %v1067 = vadd.f32 %v1065, %v1066
  %v1068 = vrot.slane %v1067, 1
  %v1069 = vadd.f32 %v1067, %v1068
  %v1070 = vsel %vm402, %v944, 0.0
  %v1071 = vrot.slane %v1070, 4
  %v1072 = vadd.f32 %v1070, %v1071
  %v1073 = vrot.slane %v1072, 2
  %v1074 = vadd.f32 %v1072, %v1073
  %v1075 = vrot.slane %v1074, 1
  %v1076 = vadd.f32 %v1074, %v1075
  %v1077 = vsel %vm402, %v945, 0.0
  %v1078 = vrot.slane %v1077, 4
  %v1079 = vadd.f32 %v1077, %v1078
  %v1080 = vrot.slane %v1079, 2
  %v1081 = vadd.f32 %v1079, %v1080
  %v1082 = vrot.slane %v1081, 1
  %v1083 = vadd.f32 %v1081, %v1082
  %v1084 = vsel %vm402, %v946, 0.0
  %v1085 = vrot.slane %v1084, 4
  %v1086 = vadd.f32 %v1084, %v1085
  %v1087 = vrot.slane %v1086, 2
  %v1088 = vadd.f32 %v1086, %v1087
  %v1089 = vrot.slane %v1088, 1
  %v1090 = vadd.f32 %v1088, %v1089
  %v1091 = vsel %vm402, %v947, 0.0
  %v1092 = vrot.slane %v1091, 4
  %v1093 = vadd.f32 %v1091, %v1092
  %v1094 = vrot.slane %v1093, 2
  %v1095 = vadd.f32 %v1093, %v1094
  %v1096 = vrot.slane %v1095, 1
  %v1097 = vadd.f32 %v1095, %v1096
  %v1098 = vsel %vm402, %v948, 0.0
  %v1099 = vrot.slane %v1098, 4
  %v1100 = vadd.f32 %v1098, %v1099
  %v1101 = vrot.slane %v1100, 2
  %v1102 = vadd.f32 %v1100, %v1101
  %v1103 = vrot.slane %v1102, 1
  %v1104 = vadd.f32 %v1102, %v1103
  %v1105 = vsel %vm402, %v949, 0.0
  %v1106 = vrot.slane %v1105, 4
  %v1107 = vadd.f32 %v1105, %v1106
  %v1108 = vrot.slane %v1107, 2
  %v1109 = vadd.f32 %v1107, %v1108
  %v1110 = vrot.slane %v1109, 1
  %v1111 = vadd.f32 %v1109, %v1110
  %v1112 = vsel %vm402, %v950, 0.0
  %v1113 = vrot.slane %v1112, 4
  %v1114 = vadd.f32 %v1112, %v1113
  %v1115 = vrot.slane %v1114, 2
  %v1116 = vadd.f32 %v1114, %v1115
  %v1117 = vrot.slane %v1116, 1
  %v1118 = vadd.f32 %v1116, %v1117
  %v1119 = vsel %vm402, %v951, 0.0
  %v1120 = vrot.slane %v1119, 4
  %v1121 = vadd.f32 %v1119, %v1120
  %v1122 = vrot.slane %v1121, 2
  %v1123 = vadd.f32 %v1121, %v1122
  %v1124 = vrot.slane %v1123, 1
  %v1125 = vadd.f32 %v1123, %v1124
  %v1126 = vsel %vm402, %v952, 0.0
  %v1127 = vrot.slane %v1126, 4
  %v1128 = vadd.f32 %v1126, %v1127
  %v1129 = vrot.slane %v1128, 2
  %v1130 = vadd.f32 %v1128, %v1129
  %v1131 = vrot.slane %v1130, 1
  %v1132 = vadd.f32 %v1130, %v1131
  %v1133 = vsel %vm402, %v953, 0.0
  %v1134 = vrot.slane %v1133, 4
  %v1135 = vadd.f32 %v1133, %v1134
  %v1136 = vrot.slane %v1135, 2
  %v1137 = vadd.f32 %v1135, %v1136
  %v1138 = vrot.slane %v1137, 1
  %v1139 = vadd.f32 %v1137, %v1138
  %v1140 = vsel %vm402, %v954, 0.0
  %v1141 = vrot.slane %v1140, 4
  %v1142 = vadd.f32 %v1140, %v1141
  %v1143 = vrot.slane %v1142, 2
  %v1144 = vadd.f32 %v1142, %v1143
  %v1145 = vrot.slane %v1144, 1
  %v1146 = vadd.f32 %v1144, %v1145
  %v1147 = vsel %vm402, %v955, 0.0
  %v1148 = vrot.slane %v1147, 4
  %v1149 = vadd.f32 %v1147, %v1148
  %v1150 = vrot.slane %v1149, 2
  %v1151 = vadd.f32 %v1149, %v1150
  %v1152 = vrot.slane %v1151, 1
  %v1153 = vadd.f32 %v1151, %v1152
  %v1154 = vsel %vm402, %v956, 0.0
  %v1155 = vrot.slane %v1154, 4
  %v1156 = vadd.f32 %v1154, %v1155
  %v1157 = vrot.slane %v1156, 2
  %v1158 = vadd.f32 %v1156, %v1157
  %v1159 = vrot.slane %v1158, 1
  %v1160 = vadd.f32 %v1158, %v1159
  %v1161 = vsel %vm402, %v957, 0.0
  %v1162 = vrot.slane %v1161, 4
  %v1163 = vadd.f32 %v1161, %v1162
  %v1164 = vrot.slane %v1163, 2
  %v1165 = vadd.f32 %v1163, %v1164
  %v1166 = vrot.slane %v1165, 1
  %v1167 = vadd.f32 %v1165, %v1166
  %v1168 = vsel %vm402, %v958, 0.0
  %v1169 = vrot.slane %v1168, 4
  %v1170 = vadd.f32 %v1168, %v1169
  %v1171 = vrot.slane %v1170, 2
  %v1172 = vadd.f32 %v1170, %v1171
  %v1173 = vrot.slane %v1172, 1
  %v1174 = vadd.f32 %v1172, %v1173
  %v1175 = vsel %vm402, %v959, 0.0
  %v1176 = vrot.slane %v1175, 4
  %v1177 = vadd.f32 %v1175, %v1176
  %v1178 = vrot.slane %v1177, 2
  %v1179 = vadd.f32 %v1177, %v1178
  %v1180 = vrot.slane %v1179, 1
  %v1181 = vadd.f32 %v1179, %v1180
  %v1182 = vsel %vm402, %v960, 0.0
  %v1183 = vrot.slane %v1182, 4
  %v1184 = vadd.f32 %v1182, %v1183
  %v1185 = vrot.slane %v1184, 2
  %v1186 = vadd.f32 %v1184, %v1185
  %v1187 = vrot.slane %v1186, 1
  %v1188 = vadd.f32 %v1186, %v1187
  %v1189 = vsel %vm402, %v961, 0.0
  %v1190 = vrot.slane %v1189, 4
  %v1191 = vadd.f32 %v1189, %v1190
  %v1192 = vrot.slane %v1191, 2
  %v1193 = vadd.f32 %v1191, %v1192
  %v1194 = vrot.slane %v1193, 1
  %v1195 = vadd.f32 %v1193, %v1194
  %v1196 = vsel %vm402, %v962, 0.0
  %v1197 = vrot.slane %v1196, 4
  %v1198 = vadd.f32 %v1196, %v1197
  %v1199 = vrot.slane %v1198, 2
  %v1200 = vadd.f32 %v1198, %v1199
  %v1201 = vrot.slane %v1200, 1
  %v1202 = vadd.f32 %v1200, %v1201
  %v1203 = vsel %vm402, %v963, 0.0
  %v1204 = vrot.slane %v1203, 4
  %v1205 = vadd.f32 %v1203, %v1204
  %v1206 = vrot.slane %v1205, 2
  %v1207 = vadd.f32 %v1205, %v1206
  %v1208 = vrot.slane %v1207, 1
  %v1209 = vadd.f32 %v1207, %v1208
  %v1210 = vsel %vm402, %v964, 0.0
  %v1211 = vrot.slane %v1210, 4
  %v1212 = vadd.f32 %v1210, %v1211
  %v1213 = vrot.slane %v1212, 2
  %v1214 = vadd.f32 %v1212, %v1213
  %v1215 = vrot.slane %v1214, 1
  %v1216 = vadd.f32 %v1214, %v1215
  %v1217 = vsel %vm402, %v965, 0.0
  %v1218 = vrot.slane %v1217, 4
  %v1219 = vadd.f32 %v1217, %v1218
  %v1220 = vrot.slane %v1219, 2
  %v1221 = vadd.f32 %v1219, %v1220
  %v1222 = vrot.slane %v1221, 1
  %v1223 = vadd.f32 %v1221, %v1222
  %v1224 = vsel %vm402, %v966, 0.0
  %v1225 = vrot.slane %v1224, 4
  %v1226 = vadd.f32 %v1224, %v1225
  %v1227 = vrot.slane %v1226, 2
  %v1228 = vadd.f32 %v1226, %v1227
  %v1229 = vrot.slane %v1228, 1
  %v1230 = vadd.f32 %v1228, %v1229
  %v1231 = vsel %vm402, %v967, 0.0
  %v1232 = vrot.slane %v1231, 4
  %v1233 = vadd.f32 %v1231, %v1232
  %v1234 = vrot.slane %v1233, 2
  %v1235 = vadd.f32 %v1233, %v1234
  %v1236 = vrot.slane %v1235, 1
  %v1237 = vadd.f32 %v1235, %v1236
  %v1238 = vsel %vm402, %v968, 0.0
  %v1239 = vrot.slane %v1238, 4
  %v1240 = vadd.f32 %v1238, %v1239
  %v1241 = vrot.slane %v1240, 2
  %v1242 = vadd.f32 %v1240, %v1241
  %v1243 = vrot.slane %v1242, 1
  %v1244 = vadd.f32 %v1242, %v1243
  %v1245 = vsel %vm402, %v969, 0.0
  %v1246 = vrot.slane %v1245, 4
  %v1247 = vadd.f32 %v1245, %v1246
  %v1248 = vrot.slane %v1247, 2
  %v1249 = vadd.f32 %v1247, %v1248
  %v1250 = vrot.slane %v1249, 1
  %v1251 = vadd.f32 %v1249, %v1250
  %v1252 = vsel %vm402, %v970, 0.0
  %v1253 = vrot.slane %v1252, 4
  %v1254 = vadd.f32 %v1252, %v1253
  %v1255 = vrot.slane %v1254, 2
  %v1256 = vadd.f32 %v1254, %v1255
  %v1257 = vrot.slane %v1256, 1
  %v1258 = vadd.f32 %v1256, %v1257
  %v1259 = vsel %vm402, %v971, 0.0
  %v1260 = vrot.slane %v1259, 4
  %v1261 = vadd.f32 %v1259, %v1260
  %v1262 = vrot.slane %v1261, 2
  %v1263 = vadd.f32 %v1261, %v1262
  %v1264 = vrot.slane %v1263, 1
  %v1265 = vadd.f32 %v1263, %v1264
  %v1266 = vsel %vm402, %v972, 0.0
  %v1267 = vrot.slane %v1266, 4
  %v1268 = vadd.f32 %v1266, %v1267
  %v1269 = vrot.slane %v1268, 2
  %v1270 = vadd.f32 %v1268, %v1269
  %v1271 = vrot.slane %v1270, 1
  %v1272 = vadd.f32 %v1270, %v1271
  %v1273 = vsel %vm402, %v973, 0.0
  %v1274 = vrot.slane %v1273, 4
  %v1275 = vadd.f32 %v1273, %v1274
  %v1276 = vrot.slane %v1275, 2
  %v1277 = vadd.f32 %v1275, %v1276
  %v1278 = vrot.slane %v1277, 1
  %v1279 = vadd.f32 %v1277, %v1278
  %v1280 = vsel %vm402, %v974, 0.0
  %v1281 = vrot.slane %v1280, 4
  %v1282 = vadd.f32 %v1280, %v1281
  %v1283 = vrot.slane %v1282, 2
  %v1284 = vadd.f32 %v1282, %v1283
  %v1285 = vrot.slane %v1284, 1
  %v1286 = vadd.f32 %v1284, %v1285
  %v1287 = vsel %vm402, %v975, 0.0
  %v1288 = vrot.slane %v1287, 4
  %v1289 = vadd.f32 %v1287, %v1288
  %v1290 = vrot.slane %v1289, 2
  %v1291 = vadd.f32 %v1289, %v1290
  %v1292 = vrot.slane %v1291, 1
  %v1293 = vadd.f32 %v1291, %v1292
  %v1294 = vsel %vm402, %v976, 0.0
  %v1295 = vrot.slane %v1294, 4
  %v1296 = vadd.f32 %v1294, %v1295
  %v1297 = vrot.slane %v1296, 2
  %v1298 = vadd.f32 %v1296, %v1297
  %v1299 = vrot.slane %v1298, 1
  %v1300 = vadd.f32 %v1298, %v1299
  %v1301 = vsel %vm402, %v977, 0.0
  %v1302 = vrot.slane %v1301, 4
  %v1303 = vadd.f32 %v1301, %v1302
  %v1304 = vrot.slane %v1303, 2
  %v1305 = vadd.f32 %v1303, %v1304
  %v1306 = vrot.slane %v1305, 1
  %v1307 = vadd.f32 %v1305, %v1306
  %v1308 = vsel %vm402, %v978, 0.0
  %v1309 = vrot.slane %v1308, 4
  %v1310 = vadd.f32 %v1308, %v1309
  %v1311 = vrot.slane %v1310, 2
  %v1312 = vadd.f32 %v1310, %v1311
  %v1313 = vrot.slane %v1312, 1
  %v1314 = vadd.f32 %v1312, %v1313
  %1315 = vset.pattern.permute.xlu0 2
  %1316 = vperm.xlu0 %1315, %v66
  %v1317 = vpop.permute.xlu0 %1316
  %1319 = vset.pattern.permute.xlu0 2
  %1320 = vperm.xlu0 %1319, %v67
  %v1321 = vpop.permute.xlu0 %1320
  %1323 = vset.pattern.permute.xlu0 2
  %1324 = vperm.xlu0 %1323, %v68
  %v1325 = vpop.permute.xlu0 %1324
  %1327 = vset.pattern.permute.xlu0 2
  %1328 = vperm.xlu0 %1327, %v69
  %v1329 = vpop.permute.xlu0 %1328
  %1331 = vset.pattern.permute.xlu0 2
  %1332 = vperm.xlu0 %1331, %v70
  %v1333 = vpop.permute.xlu0 %1332
  %1335 = vset.pattern.permute.xlu0 2
  %1336 = vperm.xlu0 %1335, %v71
  %v1337 = vpop.permute.xlu0 %1336
  %1339 = vset.pattern.permute.xlu0 2
  %1340 = vperm.xlu0 %1339, %v72
  %v1341 = vpop.permute.xlu0 %1340
  %1343 = vset.pattern.permute.xlu0 2
  %1344 = vperm.xlu0 %1343, %v73
  %v1345 = vpop.permute.xlu0 %1344
  %1347 = vset.pattern.permute.xlu0 2
  %1348 = vperm.xlu0 %1347, %v74
  %v1349 = vpop.permute.xlu0 %1348
  %1351 = vset.pattern.permute.xlu0 2
  %1352 = vperm.xlu0 %1351, %v75
  %v1353 = vpop.permute.xlu0 %1352
  %1355 = vset.pattern.permute.xlu0 2
  %1356 = vperm.xlu0 %1355, %v76
  %v1357 = vpop.permute.xlu0 %1356
  %1359 = vset.pattern.permute.xlu0 2
  %1360 = vperm.xlu0 %1359, %v77
  %v1361 = vpop.permute.xlu0 %1360
  %1363 = vset.pattern.permute.xlu0 2
  %1364 = vperm.xlu0 %1363, %v78
  %v1365 = vpop.permute.xlu0 %1364
  %1367 = vset.pattern.permute.xlu0 2
  %1368 = vperm.xlu0 %1367, %v79
  %v1369 = vpop.permute.xlu0 %1368
  %1371 = vset.pattern.permute.xlu0 2
  %1372 = vperm.xlu0 %1371, %v80
  %v1373 = vpop.permute.xlu0 %1372
  %1375 = vset.pattern.permute.xlu0 2
  %1376 = vperm.xlu0 %1375, %v81
  %v1377 = vpop.permute.xlu0 %1376
  %1379 = vset.pattern.permute.xlu0 2
  %1380 = vperm.xlu0 %1379, %v82
  %v1381 = vpop.permute.xlu0 %1380
  %1383 = vset.pattern.permute.xlu0 2
  %1384 = vperm.xlu0 %1383, %v83
  %v1385 = vpop.permute.xlu0 %1384
  %1387 = vset.pattern.permute.xlu0 2
  %1388 = vperm.xlu0 %1387, %v84
  %v1389 = vpop.permute.xlu0 %1388
  %1391 = vset.pattern.permute.xlu0 2
  %1392 = vperm.xlu0 %1391, %v85
  %v1393 = vpop.permute.xlu0 %1392
  %1395 = vset.pattern.permute.xlu0 2
  %1396 = vperm.xlu0 %1395, %v86
  %v1397 = vpop.permute.xlu0 %1396
  %1399 = vset.pattern.permute.xlu0 2
  %1400 = vperm.xlu0 %1399, %v87
  %v1401 = vpop.permute.xlu0 %1400
  %1403 = vset.pattern.permute.xlu0 2
  %1404 = vperm.xlu0 %1403, %v88
  %v1405 = vpop.permute.xlu0 %1404
  %1407 = vset.pattern.permute.xlu0 2
  %1408 = vperm.xlu0 %1407, %v89
  %v1409 = vpop.permute.xlu0 %1408
  %1411 = vset.pattern.permute.xlu0 2
  %1412 = vperm.xlu0 %1411, %v90
  %v1413 = vpop.permute.xlu0 %1412
  %1415 = vset.pattern.permute.xlu0 2
  %1416 = vperm.xlu0 %1415, %v91
  %v1417 = vpop.permute.xlu0 %1416
  %1419 = vset.pattern.permute.xlu0 2
  %1420 = vperm.xlu0 %1419, %v92
  %v1421 = vpop.permute.xlu0 %1420
  %1423 = vset.pattern.permute.xlu0 2
  %1424 = vperm.xlu0 %1423, %v93
  %v1425 = vpop.permute.xlu0 %1424
  %1427 = vset.pattern.permute.xlu0 2
  %1428 = vperm.xlu0 %1427, %v94
  %v1429 = vpop.permute.xlu0 %1428
  %1431 = vset.pattern.permute.xlu0 2
  %1432 = vperm.xlu0 %1431, %v95
  %v1433 = vpop.permute.xlu0 %1432
  %1435 = vset.pattern.permute.xlu0 2
  %1436 = vperm.xlu0 %1435, %v96
  %v1437 = vpop.permute.xlu0 %1436
  %1439 = vset.pattern.permute.xlu0 2
  %1440 = vperm.xlu0 %1439, %v97
  %v1441 = vpop.permute.xlu0 %1440
  %1443 = vset.pattern.permute.xlu0 2
  %1444 = vperm.xlu0 %1443, %v98
  %v1445 = vpop.permute.xlu0 %1444
  %1447 = vset.pattern.permute.xlu0 2
  %1448 = vperm.xlu0 %1447, %v99
  %v1449 = vpop.permute.xlu0 %1448
  %1451 = vset.pattern.permute.xlu0 2
  %1452 = vperm.xlu0 %1451, %v100
  %v1453 = vpop.permute.xlu0 %1452
  %1455 = vset.pattern.permute.xlu0 2
  %1456 = vperm.xlu0 %1455, %v101
  %v1457 = vpop.permute.xlu0 %1456
  %1459 = vset.pattern.permute.xlu0 2
  %1460 = vperm.xlu0 %1459, %v102
  %v1461 = vpop.permute.xlu0 %1460
  %1463 = vset.pattern.permute.xlu0 2
  %1464 = vperm.xlu0 %1463, %v103
  %v1465 = vpop.permute.xlu0 %1464
  %1467 = vset.pattern.permute.xlu0 2
  %1468 = vperm.xlu0 %1467, %v104
  %v1469 = vpop.permute.xlu0 %1468
  %1471 = vset.pattern.permute.xlu0 2
  %1472 = vperm.xlu0 %1471, %v105
  %v1473 = vpop.permute.xlu0 %1472
  %1475 = vset.pattern.permute.xlu0 2
  %1476 = vperm.xlu0 %1475, %v106
  %v1477 = vpop.permute.xlu0 %1476
  %1479 = vset.pattern.permute.xlu0 2
  %1480 = vperm.xlu0 %1479, %v107
  %v1481 = vpop.permute.xlu0 %1480
  %1483 = vset.pattern.permute.xlu0 2
  %1484 = vperm.xlu0 %1483, %v108
  %v1485 = vpop.permute.xlu0 %1484
  %1487 = vset.pattern.permute.xlu0 2
  %1488 = vperm.xlu0 %1487, %v109
  %v1489 = vpop.permute.xlu0 %1488
  %1491 = vset.pattern.permute.xlu0 2
  %1492 = vperm.xlu0 %1491, %v110
  %v1493 = vpop.permute.xlu0 %1492
  %1495 = vset.pattern.permute.xlu0 2
  %1496 = vperm.xlu0 %1495, %v111
  %v1497 = vpop.permute.xlu0 %1496
  %1499 = vset.pattern.permute.xlu0 2
  %1500 = vperm.xlu0 %1499, %v112
  %v1501 = vpop.permute.xlu0 %1500
  %1503 = vset.pattern.permute.xlu0 2
  %1504 = vperm.xlu0 %1503, %v113
  %v1505 = vpop.permute.xlu0 %1504
  %v1507 = vmul.f32 %v1317, %v18
  %v1508 = vmul.f32 %v1321, %v19
  %v1509 = vmul.f32 %v1325, %v20
  %v1510 = vmul.f32 %v1329, %v21
  %v1511 = vmul.f32 %v1333, %v22
  %v1512 = vmul.f32 %v1337, %v23
  %v1513 = vmul.f32 %v1341, %v24
  %v1514 = vmul.f32 %v1345, %v25
  %v1515 = vmul.f32 %v1349, %v26
  %v1516 = vmul.f32 %v1353, %v27
  %v1517 = vmul.f32 %v1357, %v28
  %v1518 = vmul.f32 %v1361, %v29
  %v1519 = vmul.f32 %v1365, %v30
  %v1520 = vmul.f32 %v1369, %v31
  %v1521 = vmul.f32 %v1373, %v32
  %v1522 = vmul.f32 %v1377, %v33
  %v1523 = vmul.f32 %v1381, %v34
  %v1524 = vmul.f32 %v1385, %v35
  %v1525 = vmul.f32 %v1389, %v36
  %v1526 = vmul.f32 %v1393, %v37
  %v1527 = vmul.f32 %v1397, %v38
  %v1528 = vmul.f32 %v1401, %v39
  %v1529 = vmul.f32 %v1405, %v40
  %v1530 = vmul.f32 %v1409, %v41
  %v1531 = vmul.f32 %v1413, %v42
  %v1532 = vmul.f32 %v1417, %v43
  %v1533 = vmul.f32 %v1421, %v44
  %v1534 = vmul.f32 %v1425, %v45
  %v1535 = vmul.f32 %v1429, %v46
  %v1536 = vmul.f32 %v1433, %v47
  %v1537 = vmul.f32 %v1437, %v48
  %v1538 = vmul.f32 %v1441, %v49
  %v1539 = vmul.f32 %v1445, %v50
  %v1540 = vmul.f32 %v1449, %v51
  %v1541 = vmul.f32 %v1453, %v52
  %v1542 = vmul.f32 %v1457, %v53
  %v1543 = vmul.f32 %v1461, %v54
  %v1544 = vmul.f32 %v1465, %v55
  %v1545 = vmul.f32 %v1469, %v56
  %v1546 = vmul.f32 %v1473, %v57
  %v1547 = vmul.f32 %v1477, %v58
  %v1548 = vmul.f32 %v1481, %v59
  %v1549 = vmul.f32 %v1485, %v60
  %v1550 = vmul.f32 %v1489, %v61
  %v1551 = vmul.f32 %v1493, %v62
  %v1552 = vmul.f32 %v1497, %v63
  %v1553 = vmul.f32 %v1501, %v64
  %v1554 = vmul.f32 %v1505, %v65
  %v1555 = vsel %vm402, %v1507, 0.0
  %v1556 = vrot.slane %v1555, 4
  %v1557 = vadd.f32 %v1555, %v1556
  %v1558 = vrot.slane %v1557, 2
  %v1559 = vadd.f32 %v1557, %v1558
  %v1560 = vrot.slane %v1559, 1
  %v1561 = vadd.f32 %v1559, %v1560
  %v1562 = vsel %vm402, %v1508, 0.0
  %v1563 = vrot.slane %v1562, 4
  %v1564 = vadd.f32 %v1562, %v1563
  %v1565 = vrot.slane %v1564, 2
  %v1566 = vadd.f32 %v1564, %v1565
  %v1567 = vrot.slane %v1566, 1
  %v1568 = vadd.f32 %v1566, %v1567
  %v1569 = vsel %vm402, %v1509, 0.0
  %v1570 = vrot.slane %v1569, 4
  %v1571 = vadd.f32 %v1569, %v1570
  %v1572 = vrot.slane %v1571, 2
  %v1573 = vadd.f32 %v1571, %v1572
  %v1574 = vrot.slane %v1573, 1
  %v1575 = vadd.f32 %v1573, %v1574
  %v1576 = vsel %vm402, %v1510, 0.0
  %v1577 = vrot.slane %v1576, 4
  %v1578 = vadd.f32 %v1576, %v1577
  %v1579 = vrot.slane %v1578, 2
  %v1580 = vadd.f32 %v1578, %v1579
  %v1581 = vrot.slane %v1580, 1
  %v1582 = vadd.f32 %v1580, %v1581
  %v1583 = vsel %vm402, %v1511, 0.0
  %v1584 = vrot.slane %v1583, 4
  %v1585 = vadd.f32 %v1583, %v1584
  %v1586 = vrot.slane %v1585, 2
  %v1587 = vadd.f32 %v1585, %v1586
  %v1588 = vrot.slane %v1587, 1
  %v1589 = vadd.f32 %v1587, %v1588
  %v1590 = vsel %vm402, %v1512, 0.0
  %v1591 = vrot.slane %v1590, 4
  %v1592 = vadd.f32 %v1590, %v1591
  %v1593 = vrot.slane %v1592, 2
  %v1594 = vadd.f32 %v1592, %v1593
  %v1595 = vrot.slane %v1594, 1
  %v1596 = vadd.f32 %v1594, %v1595
  %v1597 = vsel %vm402, %v1513, 0.0
  %v1598 = vrot.slane %v1597, 4
  %v1599 = vadd.f32 %v1597, %v1598
  %v1600 = vrot.slane %v1599, 2
  %v1601 = vadd.f32 %v1599, %v1600
  %v1602 = vrot.slane %v1601, 1
  %v1603 = vadd.f32 %v1601, %v1602
  %v1604 = vsel %vm402, %v1514, 0.0
  %v1605 = vrot.slane %v1604, 4
  %v1606 = vadd.f32 %v1604, %v1605
  %v1607 = vrot.slane %v1606, 2
  %v1608 = vadd.f32 %v1606, %v1607
  %v1609 = vrot.slane %v1608, 1
  %v1610 = vadd.f32 %v1608, %v1609
  %v1611 = vsel %vm402, %v1515, 0.0
  %v1612 = vrot.slane %v1611, 4
  %v1613 = vadd.f32 %v1611, %v1612
  %v1614 = vrot.slane %v1613, 2
  %v1615 = vadd.f32 %v1613, %v1614
  %v1616 = vrot.slane %v1615, 1
  %v1617 = vadd.f32 %v1615, %v1616
  %v1618 = vsel %vm402, %v1516, 0.0
  %v1619 = vrot.slane %v1618, 4
  %v1620 = vadd.f32 %v1618, %v1619
  %v1621 = vrot.slane %v1620, 2
  %v1622 = vadd.f32 %v1620, %v1621
  %v1623 = vrot.slane %v1622, 1
  %v1624 = vadd.f32 %v1622, %v1623
  %v1625 = vsel %vm402, %v1517, 0.0
  %v1626 = vrot.slane %v1625, 4
  %v1627 = vadd.f32 %v1625, %v1626
  %v1628 = vrot.slane %v1627, 2
  %v1629 = vadd.f32 %v1627, %v1628
  %v1630 = vrot.slane %v1629, 1
  %v1631 = vadd.f32 %v1629, %v1630
  %v1632 = vsel %vm402, %v1518, 0.0
  %v1633 = vrot.slane %v1632, 4
  %v1634 = vadd.f32 %v1632, %v1633
  %v1635 = vrot.slane %v1634, 2
  %v1636 = vadd.f32 %v1634, %v1635
  %v1637 = vrot.slane %v1636, 1
  %v1638 = vadd.f32 %v1636, %v1637
  %v1639 = vsel %vm402, %v1519, 0.0
  %v1640 = vrot.slane %v1639, 4
  %v1641 = vadd.f32 %v1639, %v1640
  %v1642 = vrot.slane %v1641, 2
  %v1643 = vadd.f32 %v1641, %v1642
  %v1644 = vrot.slane %v1643, 1
  %v1645 = vadd.f32 %v1643, %v1644
  %v1646 = vsel %vm402, %v1520, 0.0
  %v1647 = vrot.slane %v1646, 4
  %v1648 = vadd.f32 %v1646, %v1647
  %v1649 = vrot.slane %v1648, 2
  %v1650 = vadd.f32 %v1648, %v1649
  %v1651 = vrot.slane %v1650, 1
  %v1652 = vadd.f32 %v1650, %v1651
  %v1653 = vsel %vm402, %v1521, 0.0
  %v1654 = vrot.slane %v1653, 4
  %v1655 = vadd.f32 %v1653, %v1654
  %v1656 = vrot.slane %v1655, 2
  %v1657 = vadd.f32 %v1655, %v1656
  %v1658 = vrot.slane %v1657, 1
  %v1659 = vadd.f32 %v1657, %v1658
  %v1660 = vsel %vm402, %v1522, 0.0
  %v1661 = vrot.slane %v1660, 4
  %v1662 = vadd.f32 %v1660, %v1661
  %v1663 = vrot.slane %v1662, 2
  %v1664 = vadd.f32 %v1662, %v1663
  %v1665 = vrot.slane %v1664, 1
  %v1666 = vadd.f32 %v1664, %v1665
  %v1667 = vsel %vm402, %v1523, 0.0
  %v1668 = vrot.slane %v1667, 4
  %v1669 = vadd.f32 %v1667, %v1668
  %v1670 = vrot.slane %v1669, 2
  %v1671 = vadd.f32 %v1669, %v1670
  %v1672 = vrot.slane %v1671, 1
  %v1673 = vadd.f32 %v1671, %v1672
  %v1674 = vsel %vm402, %v1524, 0.0
  %v1675 = vrot.slane %v1674, 4
  %v1676 = vadd.f32 %v1674, %v1675
  %v1677 = vrot.slane %v1676, 2
  %v1678 = vadd.f32 %v1676, %v1677
  %v1679 = vrot.slane %v1678, 1
  %v1680 = vadd.f32 %v1678, %v1679
  %v1681 = vsel %vm402, %v1525, 0.0
  %v1682 = vrot.slane %v1681, 4
  %v1683 = vadd.f32 %v1681, %v1682
  %v1684 = vrot.slane %v1683, 2
  %v1685 = vadd.f32 %v1683, %v1684
  %v1686 = vrot.slane %v1685, 1
  %v1687 = vadd.f32 %v1685, %v1686
  %v1688 = vsel %vm402, %v1526, 0.0
  %v1689 = vrot.slane %v1688, 4
  %v1690 = vadd.f32 %v1688, %v1689
  %v1691 = vrot.slane %v1690, 2
  %v1692 = vadd.f32 %v1690, %v1691
  %v1693 = vrot.slane %v1692, 1
  %v1694 = vadd.f32 %v1692, %v1693
  %v1695 = vsel %vm402, %v1527, 0.0
  %v1696 = vrot.slane %v1695, 4
  %v1697 = vadd.f32 %v1695, %v1696
  %v1698 = vrot.slane %v1697, 2
  %v1699 = vadd.f32 %v1697, %v1698
  %v1700 = vrot.slane %v1699, 1
  %v1701 = vadd.f32 %v1699, %v1700
  %v1702 = vsel %vm402, %v1528, 0.0
  %v1703 = vrot.slane %v1702, 4
  %v1704 = vadd.f32 %v1702, %v1703
  %v1705 = vrot.slane %v1704, 2
  %v1706 = vadd.f32 %v1704, %v1705
  %v1707 = vrot.slane %v1706, 1
  %v1708 = vadd.f32 %v1706, %v1707
  %v1709 = vsel %vm402, %v1529, 0.0
  %v1710 = vrot.slane %v1709, 4
  %v1711 = vadd.f32 %v1709, %v1710
  %v1712 = vrot.slane %v1711, 2
  %v1713 = vadd.f32 %v1711, %v1712
  %v1714 = vrot.slane %v1713, 1
  %v1715 = vadd.f32 %v1713, %v1714
  %v1716 = vsel %vm402, %v1530, 0.0
  %v1717 = vrot.slane %v1716, 4
  %v1718 = vadd.f32 %v1716, %v1717
  %v1719 = vrot.slane %v1718, 2
  %v1720 = vadd.f32 %v1718, %v1719
  %v1721 = vrot.slane %v1720, 1
  %v1722 = vadd.f32 %v1720, %v1721
  %v1723 = vsel %vm402, %v1531, 0.0
  %v1724 = vrot.slane %v1723, 4
  %v1725 = vadd.f32 %v1723, %v1724
  %v1726 = vrot.slane %v1725, 2
  %v1727 = vadd.f32 %v1725, %v1726
  %v1728 = vrot.slane %v1727, 1
  %v1729 = vadd.f32 %v1727, %v1728
  %v1730 = vsel %vm402, %v1532, 0.0
  %v1731 = vrot.slane %v1730, 4
  %v1732 = vadd.f32 %v1730, %v1731
  %v1733 = vrot.slane %v1732, 2
  %v1734 = vadd.f32 %v1732, %v1733
  %v1735 = vrot.slane %v1734, 1
  %v1736 = vadd.f32 %v1734, %v1735
  %v1737 = vsel %vm402, %v1533, 0.0
  %v1738 = vrot.slane %v1737, 4
  %v1739 = vadd.f32 %v1737, %v1738
  %v1740 = vrot.slane %v1739, 2
  %v1741 = vadd.f32 %v1739, %v1740
  %v1742 = vrot.slane %v1741, 1
  %v1743 = vadd.f32 %v1741, %v1742
  %v1744 = vsel %vm402, %v1534, 0.0
  %v1745 = vrot.slane %v1744, 4
  %v1746 = vadd.f32 %v1744, %v1745
  %v1747 = vrot.slane %v1746, 2
  %v1748 = vadd.f32 %v1746, %v1747
  %v1749 = vrot.slane %v1748, 1
  %v1750 = vadd.f32 %v1748, %v1749
  %v1751 = vsel %vm402, %v1535, 0.0
  %v1752 = vrot.slane %v1751, 4
  %v1753 = vadd.f32 %v1751, %v1752
  %v1754 = vrot.slane %v1753, 2
  %v1755 = vadd.f32 %v1753, %v1754
  %v1756 = vrot.slane %v1755, 1
  %v1757 = vadd.f32 %v1755, %v1756
  %v1758 = vsel %vm402, %v1536, 0.0
  %v1759 = vrot.slane %v1758, 4
  %v1760 = vadd.f32 %v1758, %v1759
  %v1761 = vrot.slane %v1760, 2
  %v1762 = vadd.f32 %v1760, %v1761
  %v1763 = vrot.slane %v1762, 1
  %v1764 = vadd.f32 %v1762, %v1763
  %v1765 = vsel %vm402, %v1537, 0.0
  %v1766 = vrot.slane %v1765, 4
  %v1767 = vadd.f32 %v1765, %v1766
  %v1768 = vrot.slane %v1767, 2
  %v1769 = vadd.f32 %v1767, %v1768
  %v1770 = vrot.slane %v1769, 1
  %v1771 = vadd.f32 %v1769, %v1770
  %v1772 = vsel %vm402, %v1538, 0.0
  %v1773 = vrot.slane %v1772, 4
  %v1774 = vadd.f32 %v1772, %v1773
  %v1775 = vrot.slane %v1774, 2
  %v1776 = vadd.f32 %v1774, %v1775
  %v1777 = vrot.slane %v1776, 1
  %v1778 = vadd.f32 %v1776, %v1777
  %v1779 = vsel %vm402, %v1539, 0.0
  %v1780 = vrot.slane %v1779, 4
  %v1781 = vadd.f32 %v1779, %v1780
  %v1782 = vrot.slane %v1781, 2
  %v1783 = vadd.f32 %v1781, %v1782
  %v1784 = vrot.slane %v1783, 1
  %v1785 = vadd.f32 %v1783, %v1784
  %v1786 = vsel %vm402, %v1540, 0.0
  %v1787 = vrot.slane %v1786, 4
  %v1788 = vadd.f32 %v1786, %v1787
  %v1789 = vrot.slane %v1788, 2
  %v1790 = vadd.f32 %v1788, %v1789
  %v1791 = vrot.slane %v1790, 1
  %v1792 = vadd.f32 %v1790, %v1791
  %v1793 = vsel %vm402, %v1541, 0.0
  %v1794 = vrot.slane %v1793, 4
  %v1795 = vadd.f32 %v1793, %v1794
  %v1796 = vrot.slane %v1795, 2
  %v1797 = vadd.f32 %v1795, %v1796
  %v1798 = vrot.slane %v1797, 1
  %v1799 = vadd.f32 %v1797, %v1798
  %v1800 = vsel %vm402, %v1542, 0.0
  %v1801 = vrot.slane %v1800, 4
  %v1802 = vadd.f32 %v1800, %v1801
  %v1803 = vrot.slane %v1802, 2
  %v1804 = vadd.f32 %v1802, %v1803
  %v1805 = vrot.slane %v1804, 1
  %v1806 = vadd.f32 %v1804, %v1805
  %v1807 = vsel %vm402, %v1543, 0.0
  %v1808 = vrot.slane %v1807, 4
  %v1809 = vadd.f32 %v1807, %v1808
  %v1810 = vrot.slane %v1809, 2
  %v1811 = vadd.f32 %v1809, %v1810
  %v1812 = vrot.slane %v1811, 1
  %v1813 = vadd.f32 %v1811, %v1812
  %v1814 = vsel %vm402, %v1544, 0.0
  %v1815 = vrot.slane %v1814, 4
  %v1816 = vadd.f32 %v1814, %v1815
  %v1817 = vrot.slane %v1816, 2
  %v1818 = vadd.f32 %v1816, %v1817
  %v1819 = vrot.slane %v1818, 1
  %v1820 = vadd.f32 %v1818, %v1819
  %v1821 = vsel %vm402, %v1545, 0.0
  %v1822 = vrot.slane %v1821, 4
  %v1823 = vadd.f32 %v1821, %v1822
  %v1824 = vrot.slane %v1823, 2
  %v1825 = vadd.f32 %v1823, %v1824
  %v1826 = vrot.slane %v1825, 1
  %v1827 = vadd.f32 %v1825, %v1826
  %v1828 = vsel %vm402, %v1546, 0.0
  %v1829 = vrot.slane %v1828, 4
  %v1830 = vadd.f32 %v1828, %v1829
  %v1831 = vrot.slane %v1830, 2
  %v1832 = vadd.f32 %v1830, %v1831
  %v1833 = vrot.slane %v1832, 1
  %v1834 = vadd.f32 %v1832, %v1833
  %v1835 = vsel %vm402, %v1547, 0.0
  %v1836 = vrot.slane %v1835, 4
  %v1837 = vadd.f32 %v1835, %v1836
  %v1838 = vrot.slane %v1837, 2
  %v1839 = vadd.f32 %v1837, %v1838
  %v1840 = vrot.slane %v1839, 1
  %v1841 = vadd.f32 %v1839, %v1840
  %v1842 = vsel %vm402, %v1548, 0.0
  %v1843 = vrot.slane %v1842, 4
  %v1844 = vadd.f32 %v1842, %v1843
  %v1845 = vrot.slane %v1844, 2
  %v1846 = vadd.f32 %v1844, %v1845
  %v1847 = vrot.slane %v1846, 1
  %v1848 = vadd.f32 %v1846, %v1847
  %v1849 = vsel %vm402, %v1549, 0.0
  %v1850 = vrot.slane %v1849, 4
  %v1851 = vadd.f32 %v1849, %v1850
  %v1852 = vrot.slane %v1851, 2
  %v1853 = vadd.f32 %v1851, %v1852
  %v1854 = vrot.slane %v1853, 1
  %v1855 = vadd.f32 %v1853, %v1854
  %v1856 = vsel %vm402, %v1550, 0.0
  %v1857 = vrot.slane %v1856, 4
  %v1858 = vadd.f32 %v1856, %v1857
  %v1859 = vrot.slane %v1858, 2
  %v1860 = vadd.f32 %v1858, %v1859
  %v1861 = vrot.slane %v1860, 1
  %v1862 = vadd.f32 %v1860, %v1861
  %v1863 = vsel %vm402, %v1551, 0.0
  %v1864 = vrot.slane %v1863, 4
  %v1865 = vadd.f32 %v1863, %v1864
  %v1866 = vrot.slane %v1865, 2
  %v1867 = vadd.f32 %v1865, %v1866
  %v1868 = vrot.slane %v1867, 1
  %v1869 = vadd.f32 %v1867, %v1868
  %v1870 = vsel %vm402, %v1552, 0.0
  %v1871 = vrot.slane %v1870, 4
  %v1872 = vadd.f32 %v1870, %v1871
  %v1873 = vrot.slane %v1872, 2
  %v1874 = vadd.f32 %v1872, %v1873
  %v1875 = vrot.slane %v1874, 1
  %v1876 = vadd.f32 %v1874, %v1875
  %v1877 = vsel %vm402, %v1553, 0.0
  %v1878 = vrot.slane %v1877, 4
  %v1879 = vadd.f32 %v1877, %v1878
  %v1880 = vrot.slane %v1879, 2
  %v1881 = vadd.f32 %v1879, %v1880
  %v1882 = vrot.slane %v1881, 1
  %v1883 = vadd.f32 %v1881, %v1882
  %v1884 = vsel %vm402, %v1554, 0.0
  %v1885 = vrot.slane %v1884, 4
  %v1886 = vadd.f32 %v1884, %v1885
  %v1887 = vrot.slane %v1886, 2
  %v1888 = vadd.f32 %v1886, %v1887
  %v1889 = vrot.slane %v1888, 1
  %v1890 = vadd.f32 %v1888, %v1889
  %1891 = vset.pattern.permute.xlu0 3
  %1892 = vperm.xlu0 %1891, %v66
  %v1893 = vpop.permute.xlu0 %1892
  %1895 = vset.pattern.permute.xlu0 3
  %1896 = vperm.xlu0 %1895, %v67
  %v1897 = vpop.permute.xlu0 %1896
  %1899 = vset.pattern.permute.xlu0 3
  %1900 = vperm.xlu0 %1899, %v68
  %v1901 = vpop.permute.xlu0 %1900
  %1903 = vset.pattern.permute.xlu0 3
  %1904 = vperm.xlu0 %1903, %v69
  %v1905 = vpop.permute.xlu0 %1904
  %1907 = vset.pattern.permute.xlu0 3
  %1908 = vperm.xlu0 %1907, %v70
  %v1909 = vpop.permute.xlu0 %1908
  %1911 = vset.pattern.permute.xlu0 3
  %1912 = vperm.xlu0 %1911, %v71
  %v1913 = vpop.permute.xlu0 %1912
  %1915 = vset.pattern.permute.xlu0 3
  %1916 = vperm.xlu0 %1915, %v72
  %v1917 = vpop.permute.xlu0 %1916
  %1919 = vset.pattern.permute.xlu0 3
  %1920 = vperm.xlu0 %1919, %v73
  %v1921 = vpop.permute.xlu0 %1920
  %1923 = vset.pattern.permute.xlu0 3
  %1924 = vperm.xlu0 %1923, %v74
  %v1925 = vpop.permute.xlu0 %1924
  %1927 = vset.pattern.permute.xlu0 3
  %1928 = vperm.xlu0 %1927, %v75
  %v1929 = vpop.permute.xlu0 %1928
  %1931 = vset.pattern.permute.xlu0 3
  %1932 = vperm.xlu0 %1931, %v76
  %v1933 = vpop.permute.xlu0 %1932
  %1935 = vset.pattern.permute.xlu0 3
  %1936 = vperm.xlu0 %1935, %v77
  %v1937 = vpop.permute.xlu0 %1936
  %1939 = vset.pattern.permute.xlu0 3
  %1940 = vperm.xlu0 %1939, %v78
  %v1941 = vpop.permute.xlu0 %1940
  %1943 = vset.pattern.permute.xlu0 3
  %1944 = vperm.xlu0 %1943, %v79
  %v1945 = vpop.permute.xlu0 %1944
  %1947 = vset.pattern.permute.xlu0 3
  %1948 = vperm.xlu0 %1947, %v80
  %v1949 = vpop.permute.xlu0 %1948
  %1951 = vset.pattern.permute.xlu0 3
  %1952 = vperm.xlu0 %1951, %v81
  %v1953 = vpop.permute.xlu0 %1952
  %1955 = vset.pattern.permute.xlu0 3
  %1956 = vperm.xlu0 %1955, %v82
  %v1957 = vpop.permute.xlu0 %1956
  %1959 = vset.pattern.permute.xlu0 3
  %1960 = vperm.xlu0 %1959, %v83
  %v1961 = vpop.permute.xlu0 %1960
  %1963 = vset.pattern.permute.xlu0 3
  %1964 = vperm.xlu0 %1963, %v84
  %v1965 = vpop.permute.xlu0 %1964
  %1967 = vset.pattern.permute.xlu0 3
  %1968 = vperm.xlu0 %1967, %v85
  %v1969 = vpop.permute.xlu0 %1968
  %1971 = vset.pattern.permute.xlu0 3
  %1972 = vperm.xlu0 %1971, %v86
  %v1973 = vpop.permute.xlu0 %1972
  %1975 = vset.pattern.permute.xlu0 3
  %1976 = vperm.xlu0 %1975, %v87
  %v1977 = vpop.permute.xlu0 %1976
  %1979 = vset.pattern.permute.xlu0 3
  %1980 = vperm.xlu0 %1979, %v88
  %v1981 = vpop.permute.xlu0 %1980
  %1983 = vset.pattern.permute.xlu0 3
  %1984 = vperm.xlu0 %1983, %v89
  %v1985 = vpop.permute.xlu0 %1984
  %1987 = vset.pattern.permute.xlu0 3
  %1988 = vperm.xlu0 %1987, %v90
  %v1989 = vpop.permute.xlu0 %1988
  %1991 = vset.pattern.permute.xlu0 3
  %1992 = vperm.xlu0 %1991, %v91
  %v1993 = vpop.permute.xlu0 %1992
  %1995 = vset.pattern.permute.xlu0 3
  %1996 = vperm.xlu0 %1995, %v92
  %v1997 = vpop.permute.xlu0 %1996
  %1999 = vset.pattern.permute.xlu0 3
  %2000 = vperm.xlu0 %1999, %v93
  %v2001 = vpop.permute.xlu0 %2000
  %2003 = vset.pattern.permute.xlu0 3
  %2004 = vperm.xlu0 %2003, %v94
  %v2005 = vpop.permute.xlu0 %2004
  %2007 = vset.pattern.permute.xlu0 3
  %2008 = vperm.xlu0 %2007, %v95
  %v2009 = vpop.permute.xlu0 %2008
  %2011 = vset.pattern.permute.xlu0 3
  %2012 = vperm.xlu0 %2011, %v96
  %v2013 = vpop.permute.xlu0 %2012
  %2015 = vset.pattern.permute.xlu0 3
  %2016 = vperm.xlu0 %2015, %v97
  %v2017 = vpop.permute.xlu0 %2016
  %2019 = vset.pattern.permute.xlu0 3
  %2020 = vperm.xlu0 %2019, %v98
  %v2021 = vpop.permute.xlu0 %2020
  %2023 = vset.pattern.permute.xlu0 3
  %2024 = vperm.xlu0 %2023, %v99
  %v2025 = vpop.permute.xlu0 %2024
  %2027 = vset.pattern.permute.xlu0 3
  %2028 = vperm.xlu0 %2027, %v100
  %v2029 = vpop.permute.xlu0 %2028
  %2031 = vset.pattern.permute.xlu0 3
  %2032 = vperm.xlu0 %2031, %v101
  %v2033 = vpop.permute.xlu0 %2032
  %2035 = vset.pattern.permute.xlu0 3
  %2036 = vperm.xlu0 %2035, %v102
  %v2037 = vpop.permute.xlu0 %2036
  %2039 = vset.pattern.permute.xlu0 3
  %2040 = vperm.xlu0 %2039, %v103
  %v2041 = vpop.permute.xlu0 %2040
  %2043 = vset.pattern.permute.xlu0 3
  %2044 = vperm.xlu0 %2043, %v104
  %v2045 = vpop.permute.xlu0 %2044
  %2047 = vset.pattern.permute.xlu0 3
  %2048 = vperm.xlu0 %2047, %v105
  %v2049 = vpop.permute.xlu0 %2048
  %2051 = vset.pattern.permute.xlu0 3
  %2052 = vperm.xlu0 %2051, %v106
  %v2053 = vpop.permute.xlu0 %2052
  %2055 = vset.pattern.permute.xlu0 3
  %2056 = vperm.xlu0 %2055, %v107
  %v2057 = vpop.permute.xlu0 %2056
  %2059 = vset.pattern.permute.xlu0 3
  %2060 = vperm.xlu0 %2059, %v108
  %v2061 = vpop.permute.xlu0 %2060
  %2063 = vset.pattern.permute.xlu0 3
  %2064 = vperm.xlu0 %2063, %v109
  %v2065 = vpop.permute.xlu0 %2064
  %2067 = vset.pattern.permute.xlu0 3
  %2068 = vperm.xlu0 %2067, %v110
  %v2069 = vpop.permute.xlu0 %2068
  %2071 = vset.pattern.permute.xlu0 3
  %2072 = vperm.xlu0 %2071, %v111
  %v2073 = vpop.permute.xlu0 %2072
  %2075 = vset.pattern.permute.xlu0 3
  %2076 = vperm.xlu0 %2075, %v112
  %v2077 = vpop.permute.xlu0 %2076
  %2079 = vset.pattern.permute.xlu0 3
  %2080 = vperm.xlu0 %2079, %v113
  %v2081 = vpop.permute.xlu0 %2080
  %v2083 = vmul.f32 %v1893, %v18
  %v2084 = vmul.f32 %v1897, %v19
  %v2085 = vmul.f32 %v1901, %v20
  %v2086 = vmul.f32 %v1905, %v21
  %v2087 = vmul.f32 %v1909, %v22
  %v2088 = vmul.f32 %v1913, %v23
  %v2089 = vmul.f32 %v1917, %v24
  %v2090 = vmul.f32 %v1921, %v25
  %v2091 = vmul.f32 %v1925, %v26
  %v2092 = vmul.f32 %v1929, %v27
  %v2093 = vmul.f32 %v1933, %v28
  %v2094 = vmul.f32 %v1937, %v29
  %v2095 = vmul.f32 %v1941, %v30
  %v2096 = vmul.f32 %v1945, %v31
  %v2097 = vmul.f32 %v1949, %v32
  %v2098 = vmul.f32 %v1953, %v33
  %v2099 = vmul.f32 %v1957, %v34
  %v2100 = vmul.f32 %v1961, %v35
  %v2101 = vmul.f32 %v1965, %v36
  %v2102 = vmul.f32 %v1969, %v37
  %v2103 = vmul.f32 %v1973, %v38
  %v2104 = vmul.f32 %v1977, %v39
  %v2105 = vmul.f32 %v1981, %v40
  %v2106 = vmul.f32 %v1985, %v41
  %v2107 = vmul.f32 %v1989, %v42
  %v2108 = vmul.f32 %v1993, %v43
  %v2109 = vmul.f32 %v1997, %v44
  %v2110 = vmul.f32 %v2001, %v45
  %v2111 = vmul.f32 %v2005, %v46
  %v2112 = vmul.f32 %v2009, %v47
  %v2113 = vmul.f32 %v2013, %v48
  %v2114 = vmul.f32 %v2017, %v49
  %v2115 = vmul.f32 %v2021, %v50
  %v2116 = vmul.f32 %v2025, %v51
  %v2117 = vmul.f32 %v2029, %v52
  %v2118 = vmul.f32 %v2033, %v53
  %v2119 = vmul.f32 %v2037, %v54
  %v2120 = vmul.f32 %v2041, %v55
  %v2121 = vmul.f32 %v2045, %v56
  %v2122 = vmul.f32 %v2049, %v57
  %v2123 = vmul.f32 %v2053, %v58
  %v2124 = vmul.f32 %v2057, %v59
  %v2125 = vmul.f32 %v2061, %v60
  %v2126 = vmul.f32 %v2065, %v61
  %v2127 = vmul.f32 %v2069, %v62
  %v2128 = vmul.f32 %v2073, %v63
  %v2129 = vmul.f32 %v2077, %v64
  %v2130 = vmul.f32 %v2081, %v65
  %v2131 = vsel %vm402, %v2083, 0.0
  %v2132 = vrot.slane %v2131, 4
  %v2133 = vadd.f32 %v2131, %v2132
  %v2134 = vrot.slane %v2133, 2
  %v2135 = vadd.f32 %v2133, %v2134
  %v2136 = vrot.slane %v2135, 1
  %v2137 = vadd.f32 %v2135, %v2136
  %v2138 = vsel %vm402, %v2084, 0.0
  %v2139 = vrot.slane %v2138, 4
  %v2140 = vadd.f32 %v2138, %v2139
  %v2141 = vrot.slane %v2140, 2
  %v2142 = vadd.f32 %v2140, %v2141
  %v2143 = vrot.slane %v2142, 1
  %v2144 = vadd.f32 %v2142, %v2143
  %v2145 = vsel %vm402, %v2085, 0.0
  %v2146 = vrot.slane %v2145, 4
  %v2147 = vadd.f32 %v2145, %v2146
  %v2148 = vrot.slane %v2147, 2
  %v2149 = vadd.f32 %v2147, %v2148
  %v2150 = vrot.slane %v2149, 1
  %v2151 = vadd.f32 %v2149, %v2150
  %v2152 = vsel %vm402, %v2086, 0.0
  %v2153 = vrot.slane %v2152, 4
  %v2154 = vadd.f32 %v2152, %v2153
  %v2155 = vrot.slane %v2154, 2
  %v2156 = vadd.f32 %v2154, %v2155
  %v2157 = vrot.slane %v2156, 1
  %v2158 = vadd.f32 %v2156, %v2157
  %v2159 = vsel %vm402, %v2087, 0.0
  %v2160 = vrot.slane %v2159, 4
  %v2161 = vadd.f32 %v2159, %v2160
  %v2162 = vrot.slane %v2161, 2
  %v2163 = vadd.f32 %v2161, %v2162
  %v2164 = vrot.slane %v2163, 1
  %v2165 = vadd.f32 %v2163, %v2164
  %v2166 = vsel %vm402, %v2088, 0.0
  %v2167 = vrot.slane %v2166, 4
  %v2168 = vadd.f32 %v2166, %v2167
  %v2169 = vrot.slane %v2168, 2
  %v2170 = vadd.f32 %v2168, %v2169
  %v2171 = vrot.slane %v2170, 1
  %v2172 = vadd.f32 %v2170, %v2171
  %v2173 = vsel %vm402, %v2089, 0.0
  %v2174 = vrot.slane %v2173, 4
  %v2175 = vadd.f32 %v2173, %v2174
  %v2176 = vrot.slane %v2175, 2
  %v2177 = vadd.f32 %v2175, %v2176
  %v2178 = vrot.slane %v2177, 1
  %v2179 = vadd.f32 %v2177, %v2178
  %v2180 = vsel %vm402, %v2090, 0.0
  %v2181 = vrot.slane %v2180, 4
  %v2182 = vadd.f32 %v2180, %v2181
  %v2183 = vrot.slane %v2182, 2
  %v2184 = vadd.f32 %v2182, %v2183
  %v2185 = vrot.slane %v2184, 1
  %v2186 = vadd.f32 %v2184, %v2185
  %v2187 = vsel %vm402, %v2091, 0.0
  %v2188 = vrot.slane %v2187, 4
  %v2189 = vadd.f32 %v2187, %v2188
  %v2190 = vrot.slane %v2189, 2
  %v2191 = vadd.f32 %v2189, %v2190
  %v2192 = vrot.slane %v2191, 1
  %v2193 = vadd.f32 %v2191, %v2192
  %v2194 = vsel %vm402, %v2092, 0.0
  %v2195 = vrot.slane %v2194, 4
  %v2196 = vadd.f32 %v2194, %v2195
  %v2197 = vrot.slane %v2196, 2
  %v2198 = vadd.f32 %v2196, %v2197
  %v2199 = vrot.slane %v2198, 1
  %v2200 = vadd.f32 %v2198, %v2199
  %v2201 = vsel %vm402, %v2093, 0.0
  %v2202 = vrot.slane %v2201, 4
  %v2203 = vadd.f32 %v2201, %v2202
  %v2204 = vrot.slane %v2203, 2
  %v2205 = vadd.f32 %v2203, %v2204
  %v2206 = vrot.slane %v2205, 1
  %v2207 = vadd.f32 %v2205, %v2206
  %v2208 = vsel %vm402, %v2094, 0.0
  %v2209 = vrot.slane %v2208, 4
  %v2210 = vadd.f32 %v2208, %v2209
  %v2211 = vrot.slane %v2210, 2
  %v2212 = vadd.f32 %v2210, %v2211
  %v2213 = vrot.slane %v2212, 1
  %v2214 = vadd.f32 %v2212, %v2213
  %v2215 = vsel %vm402, %v2095, 0.0
  %v2216 = vrot.slane %v2215, 4
  %v2217 = vadd.f32 %v2215, %v2216
  %v2218 = vrot.slane %v2217, 2
  %v2219 = vadd.f32 %v2217, %v2218
  %v2220 = vrot.slane %v2219, 1
  %v2221 = vadd.f32 %v2219, %v2220
  %v2222 = vsel %vm402, %v2096, 0.0
  %v2223 = vrot.slane %v2222, 4
  %v2224 = vadd.f32 %v2222, %v2223
  %v2225 = vrot.slane %v2224, 2
  %v2226 = vadd.f32 %v2224, %v2225
  %v2227 = vrot.slane %v2226, 1
  %v2228 = vadd.f32 %v2226, %v2227
  %v2229 = vsel %vm402, %v2097, 0.0
  %v2230 = vrot.slane %v2229, 4
  %v2231 = vadd.f32 %v2229, %v2230
  %v2232 = vrot.slane %v2231, 2
  %v2233 = vadd.f32 %v2231, %v2232
  %v2234 = vrot.slane %v2233, 1
  %v2235 = vadd.f32 %v2233, %v2234
  %v2236 = vsel %vm402, %v2098, 0.0
  %v2237 = vrot.slane %v2236, 4
  %v2238 = vadd.f32 %v2236, %v2237
  %v2239 = vrot.slane %v2238, 2
  %v2240 = vadd.f32 %v2238, %v2239
  %v2241 = vrot.slane %v2240, 1
  %v2242 = vadd.f32 %v2240, %v2241
  %v2243 = vsel %vm402, %v2099, 0.0
  %v2244 = vrot.slane %v2243, 4
  %v2245 = vadd.f32 %v2243, %v2244
  %v2246 = vrot.slane %v2245, 2
  %v2247 = vadd.f32 %v2245, %v2246
  %v2248 = vrot.slane %v2247, 1
  %v2249 = vadd.f32 %v2247, %v2248
  %v2250 = vsel %vm402, %v2100, 0.0
  %v2251 = vrot.slane %v2250, 4
  %v2252 = vadd.f32 %v2250, %v2251
  %v2253 = vrot.slane %v2252, 2
  %v2254 = vadd.f32 %v2252, %v2253
  %v2255 = vrot.slane %v2254, 1
  %v2256 = vadd.f32 %v2254, %v2255
  %v2257 = vsel %vm402, %v2101, 0.0
  %v2258 = vrot.slane %v2257, 4
  %v2259 = vadd.f32 %v2257, %v2258
  %v2260 = vrot.slane %v2259, 2
  %v2261 = vadd.f32 %v2259, %v2260
  %v2262 = vrot.slane %v2261, 1
  %v2263 = vadd.f32 %v2261, %v2262
  %v2264 = vsel %vm402, %v2102, 0.0
  %v2265 = vrot.slane %v2264, 4
  %v2266 = vadd.f32 %v2264, %v2265
  %v2267 = vrot.slane %v2266, 2
  %v2268 = vadd.f32 %v2266, %v2267
  %v2269 = vrot.slane %v2268, 1
  %v2270 = vadd.f32 %v2268, %v2269
  %v2271 = vsel %vm402, %v2103, 0.0
  %v2272 = vrot.slane %v2271, 4
  %v2273 = vadd.f32 %v2271, %v2272
  %v2274 = vrot.slane %v2273, 2
  %v2275 = vadd.f32 %v2273, %v2274
  %v2276 = vrot.slane %v2275, 1
  %v2277 = vadd.f32 %v2275, %v2276
  %v2278 = vsel %vm402, %v2104, 0.0
  %v2279 = vrot.slane %v2278, 4
  %v2280 = vadd.f32 %v2278, %v2279
  %v2281 = vrot.slane %v2280, 2
  %v2282 = vadd.f32 %v2280, %v2281
  %v2283 = vrot.slane %v2282, 1
  %v2284 = vadd.f32 %v2282, %v2283
  %v2285 = vsel %vm402, %v2105, 0.0
  %v2286 = vrot.slane %v2285, 4
  %v2287 = vadd.f32 %v2285, %v2286
  %v2288 = vrot.slane %v2287, 2
  %v2289 = vadd.f32 %v2287, %v2288
  %v2290 = vrot.slane %v2289, 1
  %v2291 = vadd.f32 %v2289, %v2290
  %v2292 = vsel %vm402, %v2106, 0.0
  %v2293 = vrot.slane %v2292, 4
  %v2294 = vadd.f32 %v2292, %v2293
  %v2295 = vrot.slane %v2294, 2
  %v2296 = vadd.f32 %v2294, %v2295
  %v2297 = vrot.slane %v2296, 1
  %v2298 = vadd.f32 %v2296, %v2297
  %v2299 = vsel %vm402, %v2107, 0.0
  %v2300 = vrot.slane %v2299, 4
  %v2301 = vadd.f32 %v2299, %v2300
  %v2302 = vrot.slane %v2301, 2
  %v2303 = vadd.f32 %v2301, %v2302
  %v2304 = vrot.slane %v2303, 1
  %v2305 = vadd.f32 %v2303, %v2304
  %v2306 = vsel %vm402, %v2108, 0.0
  %v2307 = vrot.slane %v2306, 4
  %v2308 = vadd.f32 %v2306, %v2307
  %v2309 = vrot.slane %v2308, 2
  %v2310 = vadd.f32 %v2308, %v2309
  %v2311 = vrot.slane %v2310, 1
  %v2312 = vadd.f32 %v2310, %v2311
  %v2313 = vsel %vm402, %v2109, 0.0
  %v2314 = vrot.slane %v2313, 4
  %v2315 = vadd.f32 %v2313, %v2314
  %v2316 = vrot.slane %v2315, 2
  %v2317 = vadd.f32 %v2315, %v2316
  %v2318 = vrot.slane %v2317, 1
  %v2319 = vadd.f32 %v2317, %v2318
  %v2320 = vsel %vm402, %v2110, 0.0
  %v2321 = vrot.slane %v2320, 4
  %v2322 = vadd.f32 %v2320, %v2321
  %v2323 = vrot.slane %v2322, 2
  %v2324 = vadd.f32 %v2322, %v2323
  %v2325 = vrot.slane %v2324, 1
  %v2326 = vadd.f32 %v2324, %v2325
  %v2327 = vsel %vm402, %v2111, 0.0
  %v2328 = vrot.slane %v2327, 4
  %v2329 = vadd.f32 %v2327, %v2328
  %v2330 = vrot.slane %v2329, 2
  %v2331 = vadd.f32 %v2329, %v2330
  %v2332 = vrot.slane %v2331, 1
  %v2333 = vadd.f32 %v2331, %v2332
  %v2334 = vsel %vm402, %v2112, 0.0
  %v2335 = vrot.slane %v2334, 4
  %v2336 = vadd.f32 %v2334, %v2335
  %v2337 = vrot.slane %v2336, 2
  %v2338 = vadd.f32 %v2336, %v2337
  %v2339 = vrot.slane %v2338, 1
  %v2340 = vadd.f32 %v2338, %v2339
  %v2341 = vsel %vm402, %v2113, 0.0
  %v2342 = vrot.slane %v2341, 4
  %v2343 = vadd.f32 %v2341, %v2342
  %v2344 = vrot.slane %v2343, 2
  %v2345 = vadd.f32 %v2343, %v2344
  %v2346 = vrot.slane %v2345, 1
  %v2347 = vadd.f32 %v2345, %v2346
  %v2348 = vsel %vm402, %v2114, 0.0
  %v2349 = vrot.slane %v2348, 4
  %v2350 = vadd.f32 %v2348, %v2349
  %v2351 = vrot.slane %v2350, 2
  %v2352 = vadd.f32 %v2350, %v2351
  %v2353 = vrot.slane %v2352, 1
  %v2354 = vadd.f32 %v2352, %v2353
  %v2355 = vsel %vm402, %v2115, 0.0
  %v2356 = vrot.slane %v2355, 4
  %v2357 = vadd.f32 %v2355, %v2356
  %v2358 = vrot.slane %v2357, 2
  %v2359 = vadd.f32 %v2357, %v2358
  %v2360 = vrot.slane %v2359, 1
  %v2361 = vadd.f32 %v2359, %v2360
  %v2362 = vsel %vm402, %v2116, 0.0
  %v2363 = vrot.slane %v2362, 4
  %v2364 = vadd.f32 %v2362, %v2363
  %v2365 = vrot.slane %v2364, 2
  %v2366 = vadd.f32 %v2364, %v2365
  %v2367 = vrot.slane %v2366, 1
  %v2368 = vadd.f32 %v2366, %v2367
  %v2369 = vsel %vm402, %v2117, 0.0
  %v2370 = vrot.slane %v2369, 4
  %v2371 = vadd.f32 %v2369, %v2370
  %v2372 = vrot.slane %v2371, 2
  %v2373 = vadd.f32 %v2371, %v2372
  %v2374 = vrot.slane %v2373, 1
  %v2375 = vadd.f32 %v2373, %v2374
  %v2376 = vsel %vm402, %v2118, 0.0
  %v2377 = vrot.slane %v2376, 4
  %v2378 = vadd.f32 %v2376, %v2377
  %v2379 = vrot.slane %v2378, 2
  %v2380 = vadd.f32 %v2378, %v2379
  %v2381 = vrot.slane %v2380, 1
  %v2382 = vadd.f32 %v2380, %v2381
  %v2383 = vsel %vm402, %v2119, 0.0
  %v2384 = vrot.slane %v2383, 4
  %v2385 = vadd.f32 %v2383, %v2384
  %v2386 = vrot.slane %v2385, 2
  %v2387 = vadd.f32 %v2385, %v2386
  %v2388 = vrot.slane %v2387, 1
  %v2389 = vadd.f32 %v2387, %v2388
  %v2390 = vsel %vm402, %v2120, 0.0
  %v2391 = vrot.slane %v2390, 4
  %v2392 = vadd.f32 %v2390, %v2391
  %v2393 = vrot.slane %v2392, 2
  %v2394 = vadd.f32 %v2392, %v2393
  %v2395 = vrot.slane %v2394, 1
  %v2396 = vadd.f32 %v2394, %v2395
  %v2397 = vsel %vm402, %v2121, 0.0
  %v2398 = vrot.slane %v2397, 4
  %v2399 = vadd.f32 %v2397, %v2398
  %v2400 = vrot.slane %v2399, 2
  %v2401 = vadd.f32 %v2399, %v2400
  %v2402 = vrot.slane %v2401, 1
  %v2403 = vadd.f32 %v2401, %v2402
  %v2404 = vsel %vm402, %v2122, 0.0
  %v2405 = vrot.slane %v2404, 4
  %v2406 = vadd.f32 %v2404, %v2405
  %v2407 = vrot.slane %v2406, 2
  %v2408 = vadd.f32 %v2406, %v2407
  %v2409 = vrot.slane %v2408, 1
  %v2410 = vadd.f32 %v2408, %v2409
  %v2411 = vsel %vm402, %v2123, 0.0
  %v2412 = vrot.slane %v2411, 4
  %v2413 = vadd.f32 %v2411, %v2412
  %v2414 = vrot.slane %v2413, 2
  %v2415 = vadd.f32 %v2413, %v2414
  %v2416 = vrot.slane %v2415, 1
  %v2417 = vadd.f32 %v2415, %v2416
  %v2418 = vsel %vm402, %v2124, 0.0
  %v2419 = vrot.slane %v2418, 4
  %v2420 = vadd.f32 %v2418, %v2419
  %v2421 = vrot.slane %v2420, 2
  %v2422 = vadd.f32 %v2420, %v2421
  %v2423 = vrot.slane %v2422, 1
  %v2424 = vadd.f32 %v2422, %v2423
  %v2425 = vsel %vm402, %v2125, 0.0
  %v2426 = vrot.slane %v2425, 4
  %v2427 = vadd.f32 %v2425, %v2426
  %v2428 = vrot.slane %v2427, 2
  %v2429 = vadd.f32 %v2427, %v2428
  %v2430 = vrot.slane %v2429, 1
  %v2431 = vadd.f32 %v2429, %v2430
  %v2432 = vsel %vm402, %v2126, 0.0
  %v2433 = vrot.slane %v2432, 4
  %v2434 = vadd.f32 %v2432, %v2433
  %v2435 = vrot.slane %v2434, 2
  %v2436 = vadd.f32 %v2434, %v2435
  %v2437 = vrot.slane %v2436, 1
  %v2438 = vadd.f32 %v2436, %v2437
  %v2439 = vsel %vm402, %v2127, 0.0
  %v2440 = vrot.slane %v2439, 4
  %v2441 = vadd.f32 %v2439, %v2440
  %v2442 = vrot.slane %v2441, 2
  %v2443 = vadd.f32 %v2441, %v2442
  %v2444 = vrot.slane %v2443, 1
  %v2445 = vadd.f32 %v2443, %v2444
  %v2446 = vsel %vm402, %v2128, 0.0
  %v2447 = vrot.slane %v2446, 4
  %v2448 = vadd.f32 %v2446, %v2447
  %v2449 = vrot.slane %v2448, 2
  %v2450 = vadd.f32 %v2448, %v2449
  %v2451 = vrot.slane %v2450, 1
  %v2452 = vadd.f32 %v2450, %v2451
  %v2453 = vsel %vm402, %v2129, 0.0
  %v2454 = vrot.slane %v2453, 4
  %v2455 = vadd.f32 %v2453, %v2454
  %v2456 = vrot.slane %v2455, 2
  %v2457 = vadd.f32 %v2455, %v2456
  %v2458 = vrot.slane %v2457, 1
  %v2459 = vadd.f32 %v2457, %v2458
  %v2460 = vsel %vm402, %v2130, 0.0
  %v2461 = vrot.slane %v2460, 4
  %v2462 = vadd.f32 %v2460, %v2461
  %v2463 = vrot.slane %v2462, 2
  %v2464 = vadd.f32 %v2462, %v2463
  %v2465 = vrot.slane %v2464, 1
  %v2466 = vadd.f32 %v2464, %v2465
  %2467 = vset.pattern.permute.xlu0 4
  %2468 = vperm.xlu0 %2467, %v66
  %v2469 = vpop.permute.xlu0 %2468
  %2471 = vset.pattern.permute.xlu0 4
  %2472 = vperm.xlu0 %2471, %v67
  %v2473 = vpop.permute.xlu0 %2472
  %2475 = vset.pattern.permute.xlu0 4
  %2476 = vperm.xlu0 %2475, %v68
  %v2477 = vpop.permute.xlu0 %2476
  %2479 = vset.pattern.permute.xlu0 4
  %2480 = vperm.xlu0 %2479, %v69
  %v2481 = vpop.permute.xlu0 %2480
  %2483 = vset.pattern.permute.xlu0 4
  %2484 = vperm.xlu0 %2483, %v70
  %v2485 = vpop.permute.xlu0 %2484
  %2487 = vset.pattern.permute.xlu0 4
  %2488 = vperm.xlu0 %2487, %v71
  %v2489 = vpop.permute.xlu0 %2488
  %2491 = vset.pattern.permute.xlu0 4
  %2492 = vperm.xlu0 %2491, %v72
  %v2493 = vpop.permute.xlu0 %2492
  %2495 = vset.pattern.permute.xlu0 4
  %2496 = vperm.xlu0 %2495, %v73
  %v2497 = vpop.permute.xlu0 %2496
  %2499 = vset.pattern.permute.xlu0 4
  %2500 = vperm.xlu0 %2499, %v74
  %v2501 = vpop.permute.xlu0 %2500
  %2503 = vset.pattern.permute.xlu0 4
  %2504 = vperm.xlu0 %2503, %v75
  %v2505 = vpop.permute.xlu0 %2504
  %2507 = vset.pattern.permute.xlu0 4
  %2508 = vperm.xlu0 %2507, %v76
  %v2509 = vpop.permute.xlu0 %2508
  %2511 = vset.pattern.permute.xlu0 4
  %2512 = vperm.xlu0 %2511, %v77
  %v2513 = vpop.permute.xlu0 %2512
  %2515 = vset.pattern.permute.xlu0 4
  %2516 = vperm.xlu0 %2515, %v78
  %v2517 = vpop.permute.xlu0 %2516
  %2519 = vset.pattern.permute.xlu0 4
  %2520 = vperm.xlu0 %2519, %v79
  %v2521 = vpop.permute.xlu0 %2520
  %2523 = vset.pattern.permute.xlu0 4
  %2524 = vperm.xlu0 %2523, %v80
  %v2525 = vpop.permute.xlu0 %2524
  %2527 = vset.pattern.permute.xlu0 4
  %2528 = vperm.xlu0 %2527, %v81
  %v2529 = vpop.permute.xlu0 %2528
  %2531 = vset.pattern.permute.xlu0 4
  %2532 = vperm.xlu0 %2531, %v82
  %v2533 = vpop.permute.xlu0 %2532
  %2535 = vset.pattern.permute.xlu0 4
  %2536 = vperm.xlu0 %2535, %v83
  %v2537 = vpop.permute.xlu0 %2536
  %2539 = vset.pattern.permute.xlu0 4
  %2540 = vperm.xlu0 %2539, %v84
  %v2541 = vpop.permute.xlu0 %2540
  %2543 = vset.pattern.permute.xlu0 4
  %2544 = vperm.xlu0 %2543, %v85
  %v2545 = vpop.permute.xlu0 %2544
  %2547 = vset.pattern.permute.xlu0 4
  %2548 = vperm.xlu0 %2547, %v86
  %v2549 = vpop.permute.xlu0 %2548
  %2551 = vset.pattern.permute.xlu0 4
  %2552 = vperm.xlu0 %2551, %v87
  %v2553 = vpop.permute.xlu0 %2552
  %2555 = vset.pattern.permute.xlu0 4
  %2556 = vperm.xlu0 %2555, %v88
  %v2557 = vpop.permute.xlu0 %2556
  %2559 = vset.pattern.permute.xlu0 4
  %2560 = vperm.xlu0 %2559, %v89
  %v2561 = vpop.permute.xlu0 %2560
  %2563 = vset.pattern.permute.xlu0 4
  %2564 = vperm.xlu0 %2563, %v90
  %v2565 = vpop.permute.xlu0 %2564
  %2567 = vset.pattern.permute.xlu0 4
  %2568 = vperm.xlu0 %2567, %v91
  %v2569 = vpop.permute.xlu0 %2568
  %2571 = vset.pattern.permute.xlu0 4
  %2572 = vperm.xlu0 %2571, %v92
  %v2573 = vpop.permute.xlu0 %2572
  %2575 = vset.pattern.permute.xlu0 4
  %2576 = vperm.xlu0 %2575, %v93
  %v2577 = vpop.permute.xlu0 %2576
  %2579 = vset.pattern.permute.xlu0 4
  %2580 = vperm.xlu0 %2579, %v94
  %v2581 = vpop.permute.xlu0 %2580
  %2583 = vset.pattern.permute.xlu0 4
  %2584 = vperm.xlu0 %2583, %v95
  %v2585 = vpop.permute.xlu0 %2584
  %2587 = vset.pattern.permute.xlu0 4
  %2588 = vperm.xlu0 %2587, %v96
  %v2589 = vpop.permute.xlu0 %2588
  %2591 = vset.pattern.permute.xlu0 4
  %2592 = vperm.xlu0 %2591, %v97
  %v2593 = vpop.permute.xlu0 %2592
  %2595 = vset.pattern.permute.xlu0 4
  %2596 = vperm.xlu0 %2595, %v98
  %v2597 = vpop.permute.xlu0 %2596
  %2599 = vset.pattern.permute.xlu0 4
  %2600 = vperm.xlu0 %2599, %v99
  %v2601 = vpop.permute.xlu0 %2600
  %2603 = vset.pattern.permute.xlu0 4
  %2604 = vperm.xlu0 %2603, %v100
  %v2605 = vpop.permute.xlu0 %2604
  %2607 = vset.pattern.permute.xlu0 4
  %2608 = vperm.xlu0 %2607, %v101
  %v2609 = vpop.permute.xlu0 %2608
  %2611 = vset.pattern.permute.xlu0 4
  %2612 = vperm.xlu0 %2611, %v102
  %v2613 = vpop.permute.xlu0 %2612
  %2615 = vset.pattern.permute.xlu0 4
  %2616 = vperm.xlu0 %2615, %v103
  %v2617 = vpop.permute.xlu0 %2616
  %2619 = vset.pattern.permute.xlu0 4
  %2620 = vperm.xlu0 %2619, %v104
  %v2621 = vpop.permute.xlu0 %2620
  %2623 = vset.pattern.permute.xlu0 4
  %2624 = vperm.xlu0 %2623, %v105
  %v2625 = vpop.permute.xlu0 %2624
  %2627 = vset.pattern.permute.xlu0 4
  %2628 = vperm.xlu0 %2627, %v106
  %v2629 = vpop.permute.xlu0 %2628
  %2631 = vset.pattern.permute.xlu0 4
  %2632 = vperm.xlu0 %2631, %v107
  %v2633 = vpop.permute.xlu0 %2632
  %2635 = vset.pattern.permute.xlu0 4
  %2636 = vperm.xlu0 %2635, %v108
  %v2637 = vpop.permute.xlu0 %2636
  %2639 = vset.pattern.permute.xlu0 4
  %2640 = vperm.xlu0 %2639, %v109
  %v2641 = vpop.permute.xlu0 %2640
  %2643 = vset.pattern.permute.xlu0 4
  %2644 = vperm.xlu0 %2643, %v110
  %v2645 = vpop.permute.xlu0 %2644
  %2647 = vset.pattern.permute.xlu0 4
  %2648 = vperm.xlu0 %2647, %v111
  %v2649 = vpop.permute.xlu0 %2648
  %2651 = vset.pattern.permute.xlu0 4
  %2652 = vperm.xlu0 %2651, %v112
  %v2653 = vpop.permute.xlu0 %2652
  %2655 = vset.pattern.permute.xlu0 4
  %2656 = vperm.xlu0 %2655, %v113
  %v2657 = vpop.permute.xlu0 %2656
  %v2659 = vmul.f32 %v2469, %v18
  %v2660 = vmul.f32 %v2473, %v19
  %v2661 = vmul.f32 %v2477, %v20
  %v2662 = vmul.f32 %v2481, %v21
  %v2663 = vmul.f32 %v2485, %v22
  %v2664 = vmul.f32 %v2489, %v23
  %v2665 = vmul.f32 %v2493, %v24
  %v2666 = vmul.f32 %v2497, %v25
  %v2667 = vmul.f32 %v2501, %v26
  %v2668 = vmul.f32 %v2505, %v27
  %v2669 = vmul.f32 %v2509, %v28
  %v2670 = vmul.f32 %v2513, %v29
  %v2671 = vmul.f32 %v2517, %v30
  %v2672 = vmul.f32 %v2521, %v31
  %v2673 = vmul.f32 %v2525, %v32
  %v2674 = vmul.f32 %v2529, %v33
  %v2675 = vmul.f32 %v2533, %v34
  %v2676 = vmul.f32 %v2537, %v35
  %v2677 = vmul.f32 %v2541, %v36
  %v2678 = vmul.f32 %v2545, %v37
  %v2679 = vmul.f32 %v2549, %v38
  %v2680 = vmul.f32 %v2553, %v39
  %v2681 = vmul.f32 %v2557, %v40
  %v2682 = vmul.f32 %v2561, %v41
  %v2683 = vmul.f32 %v2565, %v42
  %v2684 = vmul.f32 %v2569, %v43
  %v2685 = vmul.f32 %v2573, %v44
  %v2686 = vmul.f32 %v2577, %v45
  %v2687 = vmul.f32 %v2581, %v46
  %v2688 = vmul.f32 %v2585, %v47
  %v2689 = vmul.f32 %v2589, %v48
  %v2690 = vmul.f32 %v2593, %v49
  %v2691 = vmul.f32 %v2597, %v50
  %v2692 = vmul.f32 %v2601, %v51
  %v2693 = vmul.f32 %v2605, %v52
  %v2694 = vmul.f32 %v2609, %v53
  %v2695 = vmul.f32 %v2613, %v54
  %v2696 = vmul.f32 %v2617, %v55
  %v2697 = vmul.f32 %v2621, %v56
  %v2698 = vmul.f32 %v2625, %v57
  %v2699 = vmul.f32 %v2629, %v58
  %v2700 = vmul.f32 %v2633, %v59
  %v2701 = vmul.f32 %v2637, %v60
  %v2702 = vmul.f32 %v2641, %v61
  %v2703 = vmul.f32 %v2645, %v62
  %v2704 = vmul.f32 %v2649, %v63
  %v2705 = vmul.f32 %v2653, %v64
  %v2706 = vmul.f32 %v2657, %v65
  %v2707 = vsel %vm402, %v2659, 0.0
  %v2708 = vrot.slane %v2707, 4
  %v2709 = vadd.f32 %v2707, %v2708
  %v2710 = vrot.slane %v2709, 2
  %v2711 = vadd.f32 %v2709, %v2710
  %v2712 = vrot.slane %v2711, 1
  %v2713 = vadd.f32 %v2711, %v2712
  %v2714 = vsel %vm402, %v2660, 0.0
  %v2715 = vrot.slane %v2714, 4
  %v2716 = vadd.f32 %v2714, %v2715
  %v2717 = vrot.slane %v2716, 2
  %v2718 = vadd.f32 %v2716, %v2717
  %v2719 = vrot.slane %v2718, 1
  %v2720 = vadd.f32 %v2718, %v2719
  %v2721 = vsel %vm402, %v2661, 0.0
  %v2722 = vrot.slane %v2721, 4
  %v2723 = vadd.f32 %v2721, %v2722
  %v2724 = vrot.slane %v2723, 2
  %v2725 = vadd.f32 %v2723, %v2724
  %v2726 = vrot.slane %v2725, 1
  %v2727 = vadd.f32 %v2725, %v2726
  %v2728 = vsel %vm402, %v2662, 0.0
  %v2729 = vrot.slane %v2728, 4
  %v2730 = vadd.f32 %v2728, %v2729
  %v2731 = vrot.slane %v2730, 2
  %v2732 = vadd.f32 %v2730, %v2731
  %v2733 = vrot.slane %v2732, 1
  %v2734 = vadd.f32 %v2732, %v2733
  %v2735 = vsel %vm402, %v2663, 0.0
  %v2736 = vrot.slane %v2735, 4
  %v2737 = vadd.f32 %v2735, %v2736
  %v2738 = vrot.slane %v2737, 2
  %v2739 = vadd.f32 %v2737, %v2738
  %v2740 = vrot.slane %v2739, 1
  %v2741 = vadd.f32 %v2739, %v2740
  %v2742 = vsel %vm402, %v2664, 0.0
  %v2743 = vrot.slane %v2742, 4
  %v2744 = vadd.f32 %v2742, %v2743
  %v2745 = vrot.slane %v2744, 2
  %v2746 = vadd.f32 %v2744, %v2745
  %v2747 = vrot.slane %v2746, 1
  %v2748 = vadd.f32 %v2746, %v2747
  %v2749 = vsel %vm402, %v2665, 0.0
  %v2750 = vrot.slane %v2749, 4
  %v2751 = vadd.f32 %v2749, %v2750
  %v2752 = vrot.slane %v2751, 2
  %v2753 = vadd.f32 %v2751, %v2752
  %v2754 = vrot.slane %v2753, 1
  %v2755 = vadd.f32 %v2753, %v2754
  %v2756 = vsel %vm402, %v2666, 0.0
  %v2757 = vrot.slane %v2756, 4
  %v2758 = vadd.f32 %v2756, %v2757
  %v2759 = vrot.slane %v2758, 2
  %v2760 = vadd.f32 %v2758, %v2759
  %v2761 = vrot.slane %v2760, 1
  %v2762 = vadd.f32 %v2760, %v2761
  %v2763 = vsel %vm402, %v2667, 0.0
  %v2764 = vrot.slane %v2763, 4
  %v2765 = vadd.f32 %v2763, %v2764
  %v2766 = vrot.slane %v2765, 2
  %v2767 = vadd.f32 %v2765, %v2766
  %v2768 = vrot.slane %v2767, 1
  %v2769 = vadd.f32 %v2767, %v2768
  %v2770 = vsel %vm402, %v2668, 0.0
  %v2771 = vrot.slane %v2770, 4
  %v2772 = vadd.f32 %v2770, %v2771
  %v2773 = vrot.slane %v2772, 2
  %v2774 = vadd.f32 %v2772, %v2773
  %v2775 = vrot.slane %v2774, 1
  %v2776 = vadd.f32 %v2774, %v2775
  %v2777 = vsel %vm402, %v2669, 0.0
  %v2778 = vrot.slane %v2777, 4
  %v2779 = vadd.f32 %v2777, %v2778
  %v2780 = vrot.slane %v2779, 2
  %v2781 = vadd.f32 %v2779, %v2780
  %v2782 = vrot.slane %v2781, 1
  %v2783 = vadd.f32 %v2781, %v2782
  %v2784 = vsel %vm402, %v2670, 0.0
  %v2785 = vrot.slane %v2784, 4
  %v2786 = vadd.f32 %v2784, %v2785
  %v2787 = vrot.slane %v2786, 2
  %v2788 = vadd.f32 %v2786, %v2787
  %v2789 = vrot.slane %v2788, 1
  %v2790 = vadd.f32 %v2788, %v2789
  %v2791 = vsel %vm402, %v2671, 0.0
  %v2792 = vrot.slane %v2791, 4
  %v2793 = vadd.f32 %v2791, %v2792
  %v2794 = vrot.slane %v2793, 2
  %v2795 = vadd.f32 %v2793, %v2794
  %v2796 = vrot.slane %v2795, 1
  %v2797 = vadd.f32 %v2795, %v2796
  %v2798 = vsel %vm402, %v2672, 0.0
  %v2799 = vrot.slane %v2798, 4
  %v2800 = vadd.f32 %v2798, %v2799
  %v2801 = vrot.slane %v2800, 2
  %v2802 = vadd.f32 %v2800, %v2801
  %v2803 = vrot.slane %v2802, 1
  %v2804 = vadd.f32 %v2802, %v2803
  %v2805 = vsel %vm402, %v2673, 0.0
  %v2806 = vrot.slane %v2805, 4
  %v2807 = vadd.f32 %v2805, %v2806
  %v2808 = vrot.slane %v2807, 2
  %v2809 = vadd.f32 %v2807, %v2808
  %v2810 = vrot.slane %v2809, 1
  %v2811 = vadd.f32 %v2809, %v2810
  %v2812 = vsel %vm402, %v2674, 0.0
  %v2813 = vrot.slane %v2812, 4
  %v2814 = vadd.f32 %v2812, %v2813
  %v2815 = vrot.slane %v2814, 2
  %v2816 = vadd.f32 %v2814, %v2815
  %v2817 = vrot.slane %v2816, 1
  %v2818 = vadd.f32 %v2816, %v2817
  %v2819 = vsel %vm402, %v2675, 0.0
  %v2820 = vrot.slane %v2819, 4
  %v2821 = vadd.f32 %v2819, %v2820
  %v2822 = vrot.slane %v2821, 2
  %v2823 = vadd.f32 %v2821, %v2822
  %v2824 = vrot.slane %v2823, 1
  %v2825 = vadd.f32 %v2823, %v2824
  %v2826 = vsel %vm402, %v2676, 0.0
  %v2827 = vrot.slane %v2826, 4
  %v2828 = vadd.f32 %v2826, %v2827
  %v2829 = vrot.slane %v2828, 2
  %v2830 = vadd.f32 %v2828, %v2829
  %v2831 = vrot.slane %v2830, 1
  %v2832 = vadd.f32 %v2830, %v2831
  %v2833 = vsel %vm402, %v2677, 0.0
  %v2834 = vrot.slane %v2833, 4
  %v2835 = vadd.f32 %v2833, %v2834
  %v2836 = vrot.slane %v2835, 2
  %v2837 = vadd.f32 %v2835, %v2836
  %v2838 = vrot.slane %v2837, 1
  %v2839 = vadd.f32 %v2837, %v2838
  %v2840 = vsel %vm402, %v2678, 0.0
  %v2841 = vrot.slane %v2840, 4
  %v2842 = vadd.f32 %v2840, %v2841
  %v2843 = vrot.slane %v2842, 2
  %v2844 = vadd.f32 %v2842, %v2843
  %v2845 = vrot.slane %v2844, 1
  %v2846 = vadd.f32 %v2844, %v2845
  %v2847 = vsel %vm402, %v2679, 0.0
  %v2848 = vrot.slane %v2847, 4
  %v2849 = vadd.f32 %v2847, %v2848
  %v2850 = vrot.slane %v2849, 2
  %v2851 = vadd.f32 %v2849, %v2850
  %v2852 = vrot.slane %v2851, 1
  %v2853 = vadd.f32 %v2851, %v2852
  %v2854 = vsel %vm402, %v2680, 0.0
  %v2855 = vrot.slane %v2854, 4
  %v2856 = vadd.f32 %v2854, %v2855
  %v2857 = vrot.slane %v2856, 2
  %v2858 = vadd.f32 %v2856, %v2857
  %v2859 = vrot.slane %v2858, 1
  %v2860 = vadd.f32 %v2858, %v2859
  %v2861 = vsel %vm402, %v2681, 0.0
  %v2862 = vrot.slane %v2861, 4
  %v2863 = vadd.f32 %v2861, %v2862
  %v2864 = vrot.slane %v2863, 2
  %v2865 = vadd.f32 %v2863, %v2864
  %v2866 = vrot.slane %v2865, 1
  %v2867 = vadd.f32 %v2865, %v2866
  %v2868 = vsel %vm402, %v2682, 0.0
  %v2869 = vrot.slane %v2868, 4
  %v2870 = vadd.f32 %v2868, %v2869
  %v2871 = vrot.slane %v2870, 2
  %v2872 = vadd.f32 %v2870, %v2871
  %v2873 = vrot.slane %v2872, 1
  %v2874 = vadd.f32 %v2872, %v2873
  %v2875 = vsel %vm402, %v2683, 0.0
  %v2876 = vrot.slane %v2875, 4
  %v2877 = vadd.f32 %v2875, %v2876
  %v2878 = vrot.slane %v2877, 2
  %v2879 = vadd.f32 %v2877, %v2878
  %v2880 = vrot.slane %v2879, 1
  %v2881 = vadd.f32 %v2879, %v2880
  %v2882 = vsel %vm402, %v2684, 0.0
  %v2883 = vrot.slane %v2882, 4
  %v2884 = vadd.f32 %v2882, %v2883
  %v2885 = vrot.slane %v2884, 2
  %v2886 = vadd.f32 %v2884, %v2885
  %v2887 = vrot.slane %v2886, 1
  %v2888 = vadd.f32 %v2886, %v2887
  %v2889 = vsel %vm402, %v2685, 0.0
  %v2890 = vrot.slane %v2889, 4
  %v2891 = vadd.f32 %v2889, %v2890
  %v2892 = vrot.slane %v2891, 2
  %v2893 = vadd.f32 %v2891, %v2892
  %v2894 = vrot.slane %v2893, 1
  %v2895 = vadd.f32 %v2893, %v2894
  %v2896 = vsel %vm402, %v2686, 0.0
  %v2897 = vrot.slane %v2896, 4
  %v2898 = vadd.f32 %v2896, %v2897
  %v2899 = vrot.slane %v2898, 2
  %v2900 = vadd.f32 %v2898, %v2899
  %v2901 = vrot.slane %v2900, 1
  %v2902 = vadd.f32 %v2900, %v2901
  %v2903 = vsel %vm402, %v2687, 0.0
  %v2904 = vrot.slane %v2903, 4
  %v2905 = vadd.f32 %v2903, %v2904
  %v2906 = vrot.slane %v2905, 2
  %v2907 = vadd.f32 %v2905, %v2906
  %v2908 = vrot.slane %v2907, 1
  %v2909 = vadd.f32 %v2907, %v2908
  %v2910 = vsel %vm402, %v2688, 0.0
  %v2911 = vrot.slane %v2910, 4
  %v2912 = vadd.f32 %v2910, %v2911
  %v2913 = vrot.slane %v2912, 2
  %v2914 = vadd.f32 %v2912, %v2913
  %v2915 = vrot.slane %v2914, 1
  %v2916 = vadd.f32 %v2914, %v2915
  %v2917 = vsel %vm402, %v2689, 0.0
  %v2918 = vrot.slane %v2917, 4
  %v2919 = vadd.f32 %v2917, %v2918
  %v2920 = vrot.slane %v2919, 2
  %v2921 = vadd.f32 %v2919, %v2920
  %v2922 = vrot.slane %v2921, 1
  %v2923 = vadd.f32 %v2921, %v2922
  %v2924 = vsel %vm402, %v2690, 0.0
  %v2925 = vrot.slane %v2924, 4
  %v2926 = vadd.f32 %v2924, %v2925
  %v2927 = vrot.slane %v2926, 2
  %v2928 = vadd.f32 %v2926, %v2927
  %v2929 = vrot.slane %v2928, 1
  %v2930 = vadd.f32 %v2928, %v2929
  %v2931 = vsel %vm402, %v2691, 0.0
  %v2932 = vrot.slane %v2931, 4
  %v2933 = vadd.f32 %v2931, %v2932
  %v2934 = vrot.slane %v2933, 2
  %v2935 = vadd.f32 %v2933, %v2934
  %v2936 = vrot.slane %v2935, 1
  %v2937 = vadd.f32 %v2935, %v2936
  %v2938 = vsel %vm402, %v2692, 0.0
  %v2939 = vrot.slane %v2938, 4
  %v2940 = vadd.f32 %v2938, %v2939
  %v2941 = vrot.slane %v2940, 2
  %v2942 = vadd.f32 %v2940, %v2941
  %v2943 = vrot.slane %v2942, 1
  %v2944 = vadd.f32 %v2942, %v2943
  %v2945 = vsel %vm402, %v2693, 0.0
  %v2946 = vrot.slane %v2945, 4
  %v2947 = vadd.f32 %v2945, %v2946
  %v2948 = vrot.slane %v2947, 2
  %v2949 = vadd.f32 %v2947, %v2948
  %v2950 = vrot.slane %v2949, 1
  %v2951 = vadd.f32 %v2949, %v2950
  %v2952 = vsel %vm402, %v2694, 0.0
  %v2953 = vrot.slane %v2952, 4
  %v2954 = vadd.f32 %v2952, %v2953
  %v2955 = vrot.slane %v2954, 2
  %v2956 = vadd.f32 %v2954, %v2955
  %v2957 = vrot.slane %v2956, 1
  %v2958 = vadd.f32 %v2956, %v2957
  %v2959 = vsel %vm402, %v2695, 0.0
  %v2960 = vrot.slane %v2959, 4
  %v2961 = vadd.f32 %v2959, %v2960
  %v2962 = vrot.slane %v2961, 2
  %v2963 = vadd.f32 %v2961, %v2962
  %v2964 = vrot.slane %v2963, 1
  %v2965 = vadd.f32 %v2963, %v2964
  %v2966 = vsel %vm402, %v2696, 0.0
  %v2967 = vrot.slane %v2966, 4
  %v2968 = vadd.f32 %v2966, %v2967
  %v2969 = vrot.slane %v2968, 2
  %v2970 = vadd.f32 %v2968, %v2969
  %v2971 = vrot.slane %v2970, 1
  %v2972 = vadd.f32 %v2970, %v2971
  %v2973 = vsel %vm402, %v2697, 0.0
  %v2974 = vrot.slane %v2973, 4
  %v2975 = vadd.f32 %v2973, %v2974
  %v2976 = vrot.slane %v2975, 2
  %v2977 = vadd.f32 %v2975, %v2976
  %v2978 = vrot.slane %v2977, 1
  %v2979 = vadd.f32 %v2977, %v2978
  %v2980 = vsel %vm402, %v2698, 0.0
  %v2981 = vrot.slane %v2980, 4
  %v2982 = vadd.f32 %v2980, %v2981
  %v2983 = vrot.slane %v2982, 2
  %v2984 = vadd.f32 %v2982, %v2983
  %v2985 = vrot.slane %v2984, 1
  %v2986 = vadd.f32 %v2984, %v2985
  %v2987 = vsel %vm402, %v2699, 0.0
  %v2988 = vrot.slane %v2987, 4
  %v2989 = vadd.f32 %v2987, %v2988
  %v2990 = vrot.slane %v2989, 2
  %v2991 = vadd.f32 %v2989, %v2990
  %v2992 = vrot.slane %v2991, 1
  %v2993 = vadd.f32 %v2991, %v2992
  %v2994 = vsel %vm402, %v2700, 0.0
  %v2995 = vrot.slane %v2994, 4
  %v2996 = vadd.f32 %v2994, %v2995
  %v2997 = vrot.slane %v2996, 2
  %v2998 = vadd.f32 %v2996, %v2997
  %v2999 = vrot.slane %v2998, 1
  %v3000 = vadd.f32 %v2998, %v2999
  %v3001 = vsel %vm402, %v2701, 0.0
  %v3002 = vrot.slane %v3001, 4
  %v3003 = vadd.f32 %v3001, %v3002
  %v3004 = vrot.slane %v3003, 2
  %v3005 = vadd.f32 %v3003, %v3004
  %v3006 = vrot.slane %v3005, 1
  %v3007 = vadd.f32 %v3005, %v3006
  %v3008 = vsel %vm402, %v2702, 0.0
  %v3009 = vrot.slane %v3008, 4
  %v3010 = vadd.f32 %v3008, %v3009
  %v3011 = vrot.slane %v3010, 2
  %v3012 = vadd.f32 %v3010, %v3011
  %v3013 = vrot.slane %v3012, 1
  %v3014 = vadd.f32 %v3012, %v3013
  %v3015 = vsel %vm402, %v2703, 0.0
  %v3016 = vrot.slane %v3015, 4
  %v3017 = vadd.f32 %v3015, %v3016
  %v3018 = vrot.slane %v3017, 2
  %v3019 = vadd.f32 %v3017, %v3018
  %v3020 = vrot.slane %v3019, 1
  %v3021 = vadd.f32 %v3019, %v3020
  %v3022 = vsel %vm402, %v2704, 0.0
  %v3023 = vrot.slane %v3022, 4
  %v3024 = vadd.f32 %v3022, %v3023
  %v3025 = vrot.slane %v3024, 2
  %v3026 = vadd.f32 %v3024, %v3025
  %v3027 = vrot.slane %v3026, 1
  %v3028 = vadd.f32 %v3026, %v3027
  %v3029 = vsel %vm402, %v2705, 0.0
  %v3030 = vrot.slane %v3029, 4
  %v3031 = vadd.f32 %v3029, %v3030
  %v3032 = vrot.slane %v3031, 2
  %v3033 = vadd.f32 %v3031, %v3032
  %v3034 = vrot.slane %v3033, 1
  %v3035 = vadd.f32 %v3033, %v3034
  %v3036 = vsel %vm402, %v2706, 0.0
  %v3037 = vrot.slane %v3036, 4
  %v3038 = vadd.f32 %v3036, %v3037
  %v3039 = vrot.slane %v3038, 2
  %v3040 = vadd.f32 %v3038, %v3039
  %v3041 = vrot.slane %v3040, 1
  %v3042 = vadd.f32 %v3040, %v3041
  %3043 = vset.pattern.permute.xlu0 5
  %3044 = vperm.xlu0 %3043, %v66
  %v3045 = vpop.permute.xlu0 %3044
  %3047 = vset.pattern.permute.xlu0 5
  %3048 = vperm.xlu0 %3047, %v67
  %v3049 = vpop.permute.xlu0 %3048
  %3051 = vset.pattern.permute.xlu0 5
  %3052 = vperm.xlu0 %3051, %v68
  %v3053 = vpop.permute.xlu0 %3052
  %3055 = vset.pattern.permute.xlu0 5
  %3056 = vperm.xlu0 %3055, %v69
  %v3057 = vpop.permute.xlu0 %3056
  %3059 = vset.pattern.permute.xlu0 5
  %3060 = vperm.xlu0 %3059, %v70
  %v3061 = vpop.permute.xlu0 %3060
  %3063 = vset.pattern.permute.xlu0 5
  %3064 = vperm.xlu0 %3063, %v71
  %v3065 = vpop.permute.xlu0 %3064
  %3067 = vset.pattern.permute.xlu0 5
  %3068 = vperm.xlu0 %3067, %v72
  %v3069 = vpop.permute.xlu0 %3068
  %3071 = vset.pattern.permute.xlu0 5
  %3072 = vperm.xlu0 %3071, %v73
  %v3073 = vpop.permute.xlu0 %3072
  %3075 = vset.pattern.permute.xlu0 5
  %3076 = vperm.xlu0 %3075, %v74
  %v3077 = vpop.permute.xlu0 %3076
  %3079 = vset.pattern.permute.xlu0 5
  %3080 = vperm.xlu0 %3079, %v75
  %v3081 = vpop.permute.xlu0 %3080
  %3083 = vset.pattern.permute.xlu0 5
  %3084 = vperm.xlu0 %3083, %v76
  %v3085 = vpop.permute.xlu0 %3084
  %3087 = vset.pattern.permute.xlu0 5
  %3088 = vperm.xlu0 %3087, %v77
  %v3089 = vpop.permute.xlu0 %3088
  %3091 = vset.pattern.permute.xlu0 5
  %3092 = vperm.xlu0 %3091, %v78
  %v3093 = vpop.permute.xlu0 %3092
  %3095 = vset.pattern.permute.xlu0 5
  %3096 = vperm.xlu0 %3095, %v79
  %v3097 = vpop.permute.xlu0 %3096
  %3099 = vset.pattern.permute.xlu0 5
  %3100 = vperm.xlu0 %3099, %v80
  %v3101 = vpop.permute.xlu0 %3100
  %3103 = vset.pattern.permute.xlu0 5
  %3104 = vperm.xlu0 %3103, %v81
  %v3105 = vpop.permute.xlu0 %3104
  %3107 = vset.pattern.permute.xlu0 5
  %3108 = vperm.xlu0 %3107, %v82
  %v3109 = vpop.permute.xlu0 %3108
  %3111 = vset.pattern.permute.xlu0 5
  %3112 = vperm.xlu0 %3111, %v83
  %v3113 = vpop.permute.xlu0 %3112
  %3115 = vset.pattern.permute.xlu0 5
  %3116 = vperm.xlu0 %3115, %v84
  %v3117 = vpop.permute.xlu0 %3116
  %3119 = vset.pattern.permute.xlu0 5
  %3120 = vperm.xlu0 %3119, %v85
  %v3121 = vpop.permute.xlu0 %3120
  %3123 = vset.pattern.permute.xlu0 5
  %3124 = vperm.xlu0 %3123, %v86
  %v3125 = vpop.permute.xlu0 %3124
  %3127 = vset.pattern.permute.xlu0 5
  %3128 = vperm.xlu0 %3127, %v87
  %v3129 = vpop.permute.xlu0 %3128
  %3131 = vset.pattern.permute.xlu0 5
  %3132 = vperm.xlu0 %3131, %v88
  %v3133 = vpop.permute.xlu0 %3132
  %3135 = vset.pattern.permute.xlu0 5
  %3136 = vperm.xlu0 %3135, %v89
  %v3137 = vpop.permute.xlu0 %3136
  %3139 = vset.pattern.permute.xlu0 5
  %3140 = vperm.xlu0 %3139, %v90
  %v3141 = vpop.permute.xlu0 %3140
  %3143 = vset.pattern.permute.xlu0 5
  %3144 = vperm.xlu0 %3143, %v91
  %v3145 = vpop.permute.xlu0 %3144
  %3147 = vset.pattern.permute.xlu0 5
  %3148 = vperm.xlu0 %3147, %v92
  %v3149 = vpop.permute.xlu0 %3148
  %3151 = vset.pattern.permute.xlu0 5
  %3152 = vperm.xlu0 %3151, %v93
  %v3153 = vpop.permute.xlu0 %3152
  %3155 = vset.pattern.permute.xlu0 5
  %3156 = vperm.xlu0 %3155, %v94
  %v3157 = vpop.permute.xlu0 %3156
  %3159 = vset.pattern.permute.xlu0 5
  %3160 = vperm.xlu0 %3159, %v95
  %v3161 = vpop.permute.xlu0 %3160
  %3163 = vset.pattern.permute.xlu0 5
  %3164 = vperm.xlu0 %3163, %v96
  %v3165 = vpop.permute.xlu0 %3164
  %3167 = vset.pattern.permute.xlu0 5
  %3168 = vperm.xlu0 %3167, %v97
  %v3169 = vpop.permute.xlu0 %3168
  %3171 = vset.pattern.permute.xlu0 5
  %3172 = vperm.xlu0 %3171, %v98
  %v3173 = vpop.permute.xlu0 %3172
  %3175 = vset.pattern.permute.xlu0 5
  %3176 = vperm.xlu0 %3175, %v99
  %v3177 = vpop.permute.xlu0 %3176
  %3179 = vset.pattern.permute.xlu0 5
  %3180 = vperm.xlu0 %3179, %v100
  %v3181 = vpop.permute.xlu0 %3180
  %3183 = vset.pattern.permute.xlu0 5
  %3184 = vperm.xlu0 %3183, %v101
  %v3185 = vpop.permute.xlu0 %3184
  %3187 = vset.pattern.permute.xlu0 5
  %3188 = vperm.xlu0 %3187, %v102
  %v3189 = vpop.permute.xlu0 %3188
  %3191 = vset.pattern.permute.xlu0 5
  %3192 = vperm.xlu0 %3191, %v103
  %v3193 = vpop.permute.xlu0 %3192
  %3195 = vset.pattern.permute.xlu0 5
  %3196 = vperm.xlu0 %3195, %v104
  %v3197 = vpop.permute.xlu0 %3196
  %3199 = vset.pattern.permute.xlu0 5
  %3200 = vperm.xlu0 %3199, %v105
  %v3201 = vpop.permute.xlu0 %3200
  %3203 = vset.pattern.permute.xlu0 5
  %3204 = vperm.xlu0 %3203, %v106
  %v3205 = vpop.permute.xlu0 %3204
  %3207 = vset.pattern.permute.xlu0 5
  %3208 = vperm.xlu0 %3207, %v107
  %v3209 = vpop.permute.xlu0 %3208
  %3211 = vset.pattern.permute.xlu0 5
  %3212 = vperm.xlu0 %3211, %v108
  %v3213 = vpop.permute.xlu0 %3212
  %3215 = vset.pattern.permute.xlu0 5
  %3216 = vperm.xlu0 %3215, %v109
  %v3217 = vpop.permute.xlu0 %3216
  %3219 = vset.pattern.permute.xlu0 5
  %3220 = vperm.xlu0 %3219, %v110
  %v3221 = vpop.permute.xlu0 %3220
  %3223 = vset.pattern.permute.xlu0 5
  %3224 = vperm.xlu0 %3223, %v111
  %v3225 = vpop.permute.xlu0 %3224
  %3227 = vset.pattern.permute.xlu0 5
  %3228 = vperm.xlu0 %3227, %v112
  %v3229 = vpop.permute.xlu0 %3228
  %3231 = vset.pattern.permute.xlu0 5
  %3232 = vperm.xlu0 %3231, %v113
  %v3233 = vpop.permute.xlu0 %3232
  %v3235 = vmul.f32 %v3045, %v18
  %v3236 = vmul.f32 %v3049, %v19
  %v3237 = vmul.f32 %v3053, %v20
  %v3238 = vmul.f32 %v3057, %v21
  %v3239 = vmul.f32 %v3061, %v22
  %v3240 = vmul.f32 %v3065, %v23
  %v3241 = vmul.f32 %v3069, %v24
  %v3242 = vmul.f32 %v3073, %v25
  %v3243 = vmul.f32 %v3077, %v26
  %v3244 = vmul.f32 %v3081, %v27
  %v3245 = vmul.f32 %v3085, %v28
  %v3246 = vmul.f32 %v3089, %v29
  %v3247 = vmul.f32 %v3093, %v30
  %v3248 = vmul.f32 %v3097, %v31
  %v3249 = vmul.f32 %v3101, %v32
  %v3250 = vmul.f32 %v3105, %v33
  %v3251 = vmul.f32 %v3109, %v34
  %v3252 = vmul.f32 %v3113, %v35
  %v3253 = vmul.f32 %v3117, %v36
  %v3254 = vmul.f32 %v3121, %v37
  %v3255 = vmul.f32 %v3125, %v38
  %v3256 = vmul.f32 %v3129, %v39
  %v3257 = vmul.f32 %v3133, %v40
  %v3258 = vmul.f32 %v3137, %v41
  %v3259 = vmul.f32 %v3141, %v42
  %v3260 = vmul.f32 %v3145, %v43
  %v3261 = vmul.f32 %v3149, %v44
  %v3262 = vmul.f32 %v3153, %v45
  %v3263 = vmul.f32 %v3157, %v46
  %v3264 = vmul.f32 %v3161, %v47
  %v3265 = vmul.f32 %v3165, %v48
  %v3266 = vmul.f32 %v3169, %v49
  %v3267 = vmul.f32 %v3173, %v50
  %v3268 = vmul.f32 %v3177, %v51
  %v3269 = vmul.f32 %v3181, %v52
  %v3270 = vmul.f32 %v3185, %v53
  %v3271 = vmul.f32 %v3189, %v54
  %v3272 = vmul.f32 %v3193, %v55
  %v3273 = vmul.f32 %v3197, %v56
  %v3274 = vmul.f32 %v3201, %v57
  %v3275 = vmul.f32 %v3205, %v58
  %v3276 = vmul.f32 %v3209, %v59
  %v3277 = vmul.f32 %v3213, %v60
  %v3278 = vmul.f32 %v3217, %v61
  %v3279 = vmul.f32 %v3221, %v62
  %v3280 = vmul.f32 %v3225, %v63
  %v3281 = vmul.f32 %v3229, %v64
  %v3282 = vmul.f32 %v3233, %v65
  %v3283 = vsel %vm402, %v3235, 0.0
  %v3284 = vrot.slane %v3283, 4
  %v3285 = vadd.f32 %v3283, %v3284
  %v3286 = vrot.slane %v3285, 2
  %v3287 = vadd.f32 %v3285, %v3286
  %v3288 = vrot.slane %v3287, 1
  %v3289 = vadd.f32 %v3287, %v3288
  %v3290 = vsel %vm402, %v3236, 0.0
  %v3291 = vrot.slane %v3290, 4
  %v3292 = vadd.f32 %v3290, %v3291
  %v3293 = vrot.slane %v3292, 2
  %v3294 = vadd.f32 %v3292, %v3293
  %v3295 = vrot.slane %v3294, 1
  %v3296 = vadd.f32 %v3294, %v3295
  %v3297 = vsel %vm402, %v3237, 0.0
  %v3298 = vrot.slane %v3297, 4
  %v3299 = vadd.f32 %v3297, %v3298
  %v3300 = vrot.slane %v3299, 2
  %v3301 = vadd.f32 %v3299, %v3300
  %v3302 = vrot.slane %v3301, 1
  %v3303 = vadd.f32 %v3301, %v3302
  %v3304 = vsel %vm402, %v3238, 0.0
  %v3305 = vrot.slane %v3304, 4
  %v3306 = vadd.f32 %v3304, %v3305
  %v3307 = vrot.slane %v3306, 2
  %v3308 = vadd.f32 %v3306, %v3307
  %v3309 = vrot.slane %v3308, 1
  %v3310 = vadd.f32 %v3308, %v3309
  %v3311 = vsel %vm402, %v3239, 0.0
  %v3312 = vrot.slane %v3311, 4
  %v3313 = vadd.f32 %v3311, %v3312
  %v3314 = vrot.slane %v3313, 2
  %v3315 = vadd.f32 %v3313, %v3314
  %v3316 = vrot.slane %v3315, 1
  %v3317 = vadd.f32 %v3315, %v3316
  %v3318 = vsel %vm402, %v3240, 0.0
  %v3319 = vrot.slane %v3318, 4
  %v3320 = vadd.f32 %v3318, %v3319
  %v3321 = vrot.slane %v3320, 2
  %v3322 = vadd.f32 %v3320, %v3321
  %v3323 = vrot.slane %v3322, 1
  %v3324 = vadd.f32 %v3322, %v3323
  %v3325 = vsel %vm402, %v3241, 0.0
  %v3326 = vrot.slane %v3325, 4
  %v3327 = vadd.f32 %v3325, %v3326
  %v3328 = vrot.slane %v3327, 2
  %v3329 = vadd.f32 %v3327, %v3328
  %v3330 = vrot.slane %v3329, 1
  %v3331 = vadd.f32 %v3329, %v3330
  %v3332 = vsel %vm402, %v3242, 0.0
  %v3333 = vrot.slane %v3332, 4
  %v3334 = vadd.f32 %v3332, %v3333
  %v3335 = vrot.slane %v3334, 2
  %v3336 = vadd.f32 %v3334, %v3335
  %v3337 = vrot.slane %v3336, 1
  %v3338 = vadd.f32 %v3336, %v3337
  %v3339 = vsel %vm402, %v3243, 0.0
  %v3340 = vrot.slane %v3339, 4
  %v3341 = vadd.f32 %v3339, %v3340
  %v3342 = vrot.slane %v3341, 2
  %v3343 = vadd.f32 %v3341, %v3342
  %v3344 = vrot.slane %v3343, 1
  %v3345 = vadd.f32 %v3343, %v3344
  %v3346 = vsel %vm402, %v3244, 0.0
  %v3347 = vrot.slane %v3346, 4
  %v3348 = vadd.f32 %v3346, %v3347
  %v3349 = vrot.slane %v3348, 2
  %v3350 = vadd.f32 %v3348, %v3349
  %v3351 = vrot.slane %v3350, 1
  %v3352 = vadd.f32 %v3350, %v3351
  %v3353 = vsel %vm402, %v3245, 0.0
  %v3354 = vrot.slane %v3353, 4
  %v3355 = vadd.f32 %v3353, %v3354
  %v3356 = vrot.slane %v3355, 2
  %v3357 = vadd.f32 %v3355, %v3356
  %v3358 = vrot.slane %v3357, 1
  %v3359 = vadd.f32 %v3357, %v3358
  %v3360 = vsel %vm402, %v3246, 0.0
  %v3361 = vrot.slane %v3360, 4
  %v3362 = vadd.f32 %v3360, %v3361
  %v3363 = vrot.slane %v3362, 2
  %v3364 = vadd.f32 %v3362, %v3363
  %v3365 = vrot.slane %v3364, 1
  %v3366 = vadd.f32 %v3364, %v3365
  %v3367 = vsel %vm402, %v3247, 0.0
  %v3368 = vrot.slane %v3367, 4
  %v3369 = vadd.f32 %v3367, %v3368
  %v3370 = vrot.slane %v3369, 2
  %v3371 = vadd.f32 %v3369, %v3370
  %v3372 = vrot.slane %v3371, 1
  %v3373 = vadd.f32 %v3371, %v3372
  %v3374 = vsel %vm402, %v3248, 0.0
  %v3375 = vrot.slane %v3374, 4
  %v3376 = vadd.f32 %v3374, %v3375
  %v3377 = vrot.slane %v3376, 2
  %v3378 = vadd.f32 %v3376, %v3377
  %v3379 = vrot.slane %v3378, 1
  %v3380 = vadd.f32 %v3378, %v3379
  %v3381 = vsel %vm402, %v3249, 0.0
  %v3382 = vrot.slane %v3381, 4
  %v3383 = vadd.f32 %v3381, %v3382
  %v3384 = vrot.slane %v3383, 2
  %v3385 = vadd.f32 %v3383, %v3384
  %v3386 = vrot.slane %v3385, 1
  %v3387 = vadd.f32 %v3385, %v3386
  %v3388 = vsel %vm402, %v3250, 0.0
  %v3389 = vrot.slane %v3388, 4
  %v3390 = vadd.f32 %v3388, %v3389
  %v3391 = vrot.slane %v3390, 2
  %v3392 = vadd.f32 %v3390, %v3391
  %v3393 = vrot.slane %v3392, 1
  %v3394 = vadd.f32 %v3392, %v3393
  %v3395 = vsel %vm402, %v3251, 0.0
  %v3396 = vrot.slane %v3395, 4
  %v3397 = vadd.f32 %v3395, %v3396
  %v3398 = vrot.slane %v3397, 2
  %v3399 = vadd.f32 %v3397, %v3398
  %v3400 = vrot.slane %v3399, 1
  %v3401 = vadd.f32 %v3399, %v3400
  %v3402 = vsel %vm402, %v3252, 0.0
  %v3403 = vrot.slane %v3402, 4
  %v3404 = vadd.f32 %v3402, %v3403
  %v3405 = vrot.slane %v3404, 2
  %v3406 = vadd.f32 %v3404, %v3405
  %v3407 = vrot.slane %v3406, 1
  %v3408 = vadd.f32 %v3406, %v3407
  %v3409 = vsel %vm402, %v3253, 0.0
  %v3410 = vrot.slane %v3409, 4
  %v3411 = vadd.f32 %v3409, %v3410
  %v3412 = vrot.slane %v3411, 2
  %v3413 = vadd.f32 %v3411, %v3412
  %v3414 = vrot.slane %v3413, 1
  %v3415 = vadd.f32 %v3413, %v3414
  %v3416 = vsel %vm402, %v3254, 0.0
  %v3417 = vrot.slane %v3416, 4
  %v3418 = vadd.f32 %v3416, %v3417
  %v3419 = vrot.slane %v3418, 2
  %v3420 = vadd.f32 %v3418, %v3419
  %v3421 = vrot.slane %v3420, 1
  %v3422 = vadd.f32 %v3420, %v3421
  %v3423 = vsel %vm402, %v3255, 0.0
  %v3424 = vrot.slane %v3423, 4
  %v3425 = vadd.f32 %v3423, %v3424
  %v3426 = vrot.slane %v3425, 2
  %v3427 = vadd.f32 %v3425, %v3426
  %v3428 = vrot.slane %v3427, 1
  %v3429 = vadd.f32 %v3427, %v3428
  %v3430 = vsel %vm402, %v3256, 0.0
  %v3431 = vrot.slane %v3430, 4
  %v3432 = vadd.f32 %v3430, %v3431
  %v3433 = vrot.slane %v3432, 2
  %v3434 = vadd.f32 %v3432, %v3433
  %v3435 = vrot.slane %v3434, 1
  %v3436 = vadd.f32 %v3434, %v3435
  %v3437 = vsel %vm402, %v3257, 0.0
  %v3438 = vrot.slane %v3437, 4
  %v3439 = vadd.f32 %v3437, %v3438
  %v3440 = vrot.slane %v3439, 2
  %v3441 = vadd.f32 %v3439, %v3440
  %v3442 = vrot.slane %v3441, 1
  %v3443 = vadd.f32 %v3441, %v3442
  %v3444 = vsel %vm402, %v3258, 0.0
  %v3445 = vrot.slane %v3444, 4
  %v3446 = vadd.f32 %v3444, %v3445
  %v3447 = vrot.slane %v3446, 2
  %v3448 = vadd.f32 %v3446, %v3447
  %v3449 = vrot.slane %v3448, 1
  %v3450 = vadd.f32 %v3448, %v3449
  %v3451 = vsel %vm402, %v3259, 0.0
  %v3452 = vrot.slane %v3451, 4
  %v3453 = vadd.f32 %v3451, %v3452
  %v3454 = vrot.slane %v3453, 2
  %v3455 = vadd.f32 %v3453, %v3454
  %v3456 = vrot.slane %v3455, 1
  %v3457 = vadd.f32 %v3455, %v3456
  %v3458 = vsel %vm402, %v3260, 0.0
  %v3459 = vrot.slane %v3458, 4
  %v3460 = vadd.f32 %v3458, %v3459
  %v3461 = vrot.slane %v3460, 2
  %v3462 = vadd.f32 %v3460, %v3461
  %v3463 = vrot.slane %v3462, 1
  %v3464 = vadd.f32 %v3462, %v3463
  %v3465 = vsel %vm402, %v3261, 0.0
  %v3466 = vrot.slane %v3465, 4
  %v3467 = vadd.f32 %v3465, %v3466
  %v3468 = vrot.slane %v3467, 2
  %v3469 = vadd.f32 %v3467, %v3468
  %v3470 = vrot.slane %v3469, 1
  %v3471 = vadd.f32 %v3469, %v3470
  %v3472 = vsel %vm402, %v3262, 0.0
  %v3473 = vrot.slane %v3472, 4
  %v3474 = vadd.f32 %v3472, %v3473
  %v3475 = vrot.slane %v3474, 2
  %v3476 = vadd.f32 %v3474, %v3475
  %v3477 = vrot.slane %v3476, 1
  %v3478 = vadd.f32 %v3476, %v3477
  %v3479 = vsel %vm402, %v3263, 0.0
  %v3480 = vrot.slane %v3479, 4
  %v3481 = vadd.f32 %v3479, %v3480
  %v3482 = vrot.slane %v3481, 2
  %v3483 = vadd.f32 %v3481, %v3482
  %v3484 = vrot.slane %v3483, 1
  %v3485 = vadd.f32 %v3483, %v3484
  %v3486 = vsel %vm402, %v3264, 0.0
  %v3487 = vrot.slane %v3486, 4
  %v3488 = vadd.f32 %v3486, %v3487
  %v3489 = vrot.slane %v3488, 2
  %v3490 = vadd.f32 %v3488, %v3489
  %v3491 = vrot.slane %v3490, 1
  %v3492 = vadd.f32 %v3490, %v3491
  %v3493 = vsel %vm402, %v3265, 0.0
  %v3494 = vrot.slane %v3493, 4
  %v3495 = vadd.f32 %v3493, %v3494
  %v3496 = vrot.slane %v3495, 2
  %v3497 = vadd.f32 %v3495, %v3496
  %v3498 = vrot.slane %v3497, 1
  %v3499 = vadd.f32 %v3497, %v3498
  %v3500 = vsel %vm402, %v3266, 0.0
  %v3501 = vrot.slane %v3500, 4
  %v3502 = vadd.f32 %v3500, %v3501
  %v3503 = vrot.slane %v3502, 2
  %v3504 = vadd.f32 %v3502, %v3503
  %v3505 = vrot.slane %v3504, 1
  %v3506 = vadd.f32 %v3504, %v3505
  %v3507 = vsel %vm402, %v3267, 0.0
  %v3508 = vrot.slane %v3507, 4
  %v3509 = vadd.f32 %v3507, %v3508
  %v3510 = vrot.slane %v3509, 2
  %v3511 = vadd.f32 %v3509, %v3510
  %v3512 = vrot.slane %v3511, 1
  %v3513 = vadd.f32 %v3511, %v3512
  %v3514 = vsel %vm402, %v3268, 0.0
  %v3515 = vrot.slane %v3514, 4
  %v3516 = vadd.f32 %v3514, %v3515
  %v3517 = vrot.slane %v3516, 2
  %v3518 = vadd.f32 %v3516, %v3517
  %v3519 = vrot.slane %v3518, 1
  %v3520 = vadd.f32 %v3518, %v3519
  %v3521 = vsel %vm402, %v3269, 0.0
  %v3522 = vrot.slane %v3521, 4
  %v3523 = vadd.f32 %v3521, %v3522
  %v3524 = vrot.slane %v3523, 2
  %v3525 = vadd.f32 %v3523, %v3524
  %v3526 = vrot.slane %v3525, 1
  %v3527 = vadd.f32 %v3525, %v3526
  %v3528 = vsel %vm402, %v3270, 0.0
  %v3529 = vrot.slane %v3528, 4
  %v3530 = vadd.f32 %v3528, %v3529
  %v3531 = vrot.slane %v3530, 2
  %v3532 = vadd.f32 %v3530, %v3531
  %v3533 = vrot.slane %v3532, 1
  %v3534 = vadd.f32 %v3532, %v3533
  %v3535 = vsel %vm402, %v3271, 0.0
  %v3536 = vrot.slane %v3535, 4
  %v3537 = vadd.f32 %v3535, %v3536
  %v3538 = vrot.slane %v3537, 2
  %v3539 = vadd.f32 %v3537, %v3538
  %v3540 = vrot.slane %v3539, 1
  %v3541 = vadd.f32 %v3539, %v3540
  %v3542 = vsel %vm402, %v3272, 0.0
  %v3543 = vrot.slane %v3542, 4
  %v3544 = vadd.f32 %v3542, %v3543
  %v3545 = vrot.slane %v3544, 2
  %v3546 = vadd.f32 %v3544, %v3545
  %v3547 = vrot.slane %v3546, 1
  %v3548 = vadd.f32 %v3546, %v3547
  %v3549 = vsel %vm402, %v3273, 0.0
  %v3550 = vrot.slane %v3549, 4
  %v3551 = vadd.f32 %v3549, %v3550
  %v3552 = vrot.slane %v3551, 2
  %v3553 = vadd.f32 %v3551, %v3552
  %v3554 = vrot.slane %v3553, 1
  %v3555 = vadd.f32 %v3553, %v3554
  %v3556 = vsel %vm402, %v3274, 0.0
  %v3557 = vrot.slane %v3556, 4
  %v3558 = vadd.f32 %v3556, %v3557
  %v3559 = vrot.slane %v3558, 2
  %v3560 = vadd.f32 %v3558, %v3559
  %v3561 = vrot.slane %v3560, 1
  %v3562 = vadd.f32 %v3560, %v3561
  %v3563 = vsel %vm402, %v3275, 0.0
  %v3564 = vrot.slane %v3563, 4
  %v3565 = vadd.f32 %v3563, %v3564
  %v3566 = vrot.slane %v3565, 2
  %v3567 = vadd.f32 %v3565, %v3566
  %v3568 = vrot.slane %v3567, 1
  %v3569 = vadd.f32 %v3567, %v3568
  %v3570 = vsel %vm402, %v3276, 0.0
  %v3571 = vrot.slane %v3570, 4
  %v3572 = vadd.f32 %v3570, %v3571
  %v3573 = vrot.slane %v3572, 2
  %v3574 = vadd.f32 %v3572, %v3573
  %v3575 = vrot.slane %v3574, 1
  %v3576 = vadd.f32 %v3574, %v3575
  %v3577 = vsel %vm402, %v3277, 0.0
  %v3578 = vrot.slane %v3577, 4
  %v3579 = vadd.f32 %v3577, %v3578
  %v3580 = vrot.slane %v3579, 2
  %v3581 = vadd.f32 %v3579, %v3580
  %v3582 = vrot.slane %v3581, 1
  %v3583 = vadd.f32 %v3581, %v3582
  %v3584 = vsel %vm402, %v3278, 0.0
  %v3585 = vrot.slane %v3584, 4
  %v3586 = vadd.f32 %v3584, %v3585
  %v3587 = vrot.slane %v3586, 2
  %v3588 = vadd.f32 %v3586, %v3587
  %v3589 = vrot.slane %v3588, 1
  %v3590 = vadd.f32 %v3588, %v3589
  %v3591 = vsel %vm402, %v3279, 0.0
  %v3592 = vrot.slane %v3591, 4
  %v3593 = vadd.f32 %v3591, %v3592
  %v3594 = vrot.slane %v3593, 2
  %v3595 = vadd.f32 %v3593, %v3594
  %v3596 = vrot.slane %v3595, 1
  %v3597 = vadd.f32 %v3595, %v3596
  %v3598 = vsel %vm402, %v3280, 0.0
  %v3599 = vrot.slane %v3598, 4
  %v3600 = vadd.f32 %v3598, %v3599
  %v3601 = vrot.slane %v3600, 2
  %v3602 = vadd.f32 %v3600, %v3601
  %v3603 = vrot.slane %v3602, 1
  %v3604 = vadd.f32 %v3602, %v3603
  %v3605 = vsel %vm402, %v3281, 0.0
  %v3606 = vrot.slane %v3605, 4
  %v3607 = vadd.f32 %v3605, %v3606
  %v3608 = vrot.slane %v3607, 2
  %v3609 = vadd.f32 %v3607, %v3608
  %v3610 = vrot.slane %v3609, 1
  %v3611 = vadd.f32 %v3609, %v3610
  %v3612 = vsel %vm402, %v3282, 0.0
  %v3613 = vrot.slane %v3612, 4
  %v3614 = vadd.f32 %v3612, %v3613
  %v3615 = vrot.slane %v3614, 2
  %v3616 = vadd.f32 %v3614, %v3615
  %v3617 = vrot.slane %v3616, 1
  %v3618 = vadd.f32 %v3616, %v3617
  %3619 = vset.pattern.permute.xlu0 6
  %3620 = vperm.xlu0 %3619, %v66
  %v3621 = vpop.permute.xlu0 %3620
  %3623 = vset.pattern.permute.xlu0 6
  %3624 = vperm.xlu0 %3623, %v67
  %v3625 = vpop.permute.xlu0 %3624
  %3627 = vset.pattern.permute.xlu0 6
  %3628 = vperm.xlu0 %3627, %v68
  %v3629 = vpop.permute.xlu0 %3628
  %3631 = vset.pattern.permute.xlu0 6
  %3632 = vperm.xlu0 %3631, %v69
  %v3633 = vpop.permute.xlu0 %3632
  %3635 = vset.pattern.permute.xlu0 6
  %3636 = vperm.xlu0 %3635, %v70
  %v3637 = vpop.permute.xlu0 %3636
  %3639 = vset.pattern.permute.xlu0 6
  %3640 = vperm.xlu0 %3639, %v71
  %v3641 = vpop.permute.xlu0 %3640
  %3643 = vset.pattern.permute.xlu0 6
  %3644 = vperm.xlu0 %3643, %v72
  %v3645 = vpop.permute.xlu0 %3644
  %3647 = vset.pattern.permute.xlu0 6
  %3648 = vperm.xlu0 %3647, %v73
  %v3649 = vpop.permute.xlu0 %3648
  %3651 = vset.pattern.permute.xlu0 6
  %3652 = vperm.xlu0 %3651, %v74
  %v3653 = vpop.permute.xlu0 %3652
  %3655 = vset.pattern.permute.xlu0 6
  %3656 = vperm.xlu0 %3655, %v75
  %v3657 = vpop.permute.xlu0 %3656
  %3659 = vset.pattern.permute.xlu0 6
  %3660 = vperm.xlu0 %3659, %v76
  %v3661 = vpop.permute.xlu0 %3660
  %3663 = vset.pattern.permute.xlu0 6
  %3664 = vperm.xlu0 %3663, %v77
  %v3665 = vpop.permute.xlu0 %3664
  %3667 = vset.pattern.permute.xlu0 6
  %3668 = vperm.xlu0 %3667, %v78
  %v3669 = vpop.permute.xlu0 %3668
  %3671 = vset.pattern.permute.xlu0 6
  %3672 = vperm.xlu0 %3671, %v79
  %v3673 = vpop.permute.xlu0 %3672
  %3675 = vset.pattern.permute.xlu0 6
  %3676 = vperm.xlu0 %3675, %v80
  %v3677 = vpop.permute.xlu0 %3676
  %3679 = vset.pattern.permute.xlu0 6
  %3680 = vperm.xlu0 %3679, %v81
  %v3681 = vpop.permute.xlu0 %3680
  %3683 = vset.pattern.permute.xlu0 6
  %3684 = vperm.xlu0 %3683, %v82
  %v3685 = vpop.permute.xlu0 %3684
  %3687 = vset.pattern.permute.xlu0 6
  %3688 = vperm.xlu0 %3687, %v83
  %v3689 = vpop.permute.xlu0 %3688
  %3691 = vset.pattern.permute.xlu0 6
  %3692 = vperm.xlu0 %3691, %v84
  %v3693 = vpop.permute.xlu0 %3692
  %3695 = vset.pattern.permute.xlu0 6
  %3696 = vperm.xlu0 %3695, %v85
  %v3697 = vpop.permute.xlu0 %3696
  %3699 = vset.pattern.permute.xlu0 6
  %3700 = vperm.xlu0 %3699, %v86
  %v3701 = vpop.permute.xlu0 %3700
  %3703 = vset.pattern.permute.xlu0 6
  %3704 = vperm.xlu0 %3703, %v87
  %v3705 = vpop.permute.xlu0 %3704
  %3707 = vset.pattern.permute.xlu0 6
  %3708 = vperm.xlu0 %3707, %v88
  %v3709 = vpop.permute.xlu0 %3708
  %3711 = vset.pattern.permute.xlu0 6
  %3712 = vperm.xlu0 %3711, %v89
  %v3713 = vpop.permute.xlu0 %3712
  %3715 = vset.pattern.permute.xlu0 6
  %3716 = vperm.xlu0 %3715, %v90
  %v3717 = vpop.permute.xlu0 %3716
  %3719 = vset.pattern.permute.xlu0 6
  %3720 = vperm.xlu0 %3719, %v91
  %v3721 = vpop.permute.xlu0 %3720
  %3723 = vset.pattern.permute.xlu0 6
  %3724 = vperm.xlu0 %3723, %v92
  %v3725 = vpop.permute.xlu0 %3724
  %3727 = vset.pattern.permute.xlu0 6
  %3728 = vperm.xlu0 %3727, %v93
  %v3729 = vpop.permute.xlu0 %3728
  %3731 = vset.pattern.permute.xlu0 6
  %3732 = vperm.xlu0 %3731, %v94
  %v3733 = vpop.permute.xlu0 %3732
  %3735 = vset.pattern.permute.xlu0 6
  %3736 = vperm.xlu0 %3735, %v95
  %v3737 = vpop.permute.xlu0 %3736
  %3739 = vset.pattern.permute.xlu0 6
  %3740 = vperm.xlu0 %3739, %v96
  %v3741 = vpop.permute.xlu0 %3740
  %3743 = vset.pattern.permute.xlu0 6
  %3744 = vperm.xlu0 %3743, %v97
  %v3745 = vpop.permute.xlu0 %3744
  %3747 = vset.pattern.permute.xlu0 6
  %3748 = vperm.xlu0 %3747, %v98
  %v3749 = vpop.permute.xlu0 %3748
  %3751 = vset.pattern.permute.xlu0 6
  %3752 = vperm.xlu0 %3751, %v99
  %v3753 = vpop.permute.xlu0 %3752
  %3755 = vset.pattern.permute.xlu0 6
  %3756 = vperm.xlu0 %3755, %v100
  %v3757 = vpop.permute.xlu0 %3756
  %3759 = vset.pattern.permute.xlu0 6
  %3760 = vperm.xlu0 %3759, %v101
  %v3761 = vpop.permute.xlu0 %3760
  %3763 = vset.pattern.permute.xlu0 6
  %3764 = vperm.xlu0 %3763, %v102
  %v3765 = vpop.permute.xlu0 %3764
  %3767 = vset.pattern.permute.xlu0 6
  %3768 = vperm.xlu0 %3767, %v103
  %v3769 = vpop.permute.xlu0 %3768
  %3771 = vset.pattern.permute.xlu0 6
  %3772 = vperm.xlu0 %3771, %v104
  %v3773 = vpop.permute.xlu0 %3772
  %3775 = vset.pattern.permute.xlu0 6
  %3776 = vperm.xlu0 %3775, %v105
  %v3777 = vpop.permute.xlu0 %3776
  %3779 = vset.pattern.permute.xlu0 6
  %3780 = vperm.xlu0 %3779, %v106
  %v3781 = vpop.permute.xlu0 %3780
  %3783 = vset.pattern.permute.xlu0 6
  %3784 = vperm.xlu0 %3783, %v107
  %v3785 = vpop.permute.xlu0 %3784
  %3787 = vset.pattern.permute.xlu0 6
  %3788 = vperm.xlu0 %3787, %v108
  %v3789 = vpop.permute.xlu0 %3788
  %3791 = vset.pattern.permute.xlu0 6
  %3792 = vperm.xlu0 %3791, %v109
  %v3793 = vpop.permute.xlu0 %3792
  %3795 = vset.pattern.permute.xlu0 6
  %3796 = vperm.xlu0 %3795, %v110
  %v3797 = vpop.permute.xlu0 %3796
  %3799 = vset.pattern.permute.xlu0 6
  %3800 = vperm.xlu0 %3799, %v111
  %v3801 = vpop.permute.xlu0 %3800
  %3803 = vset.pattern.permute.xlu0 6
  %3804 = vperm.xlu0 %3803, %v112
  %v3805 = vpop.permute.xlu0 %3804
  %3807 = vset.pattern.permute.xlu0 6
  %3808 = vperm.xlu0 %3807, %v113
  %v3809 = vpop.permute.xlu0 %3808
  %v3811 = vmul.f32 %v3621, %v18
  %v3812 = vmul.f32 %v3625, %v19
  %v3813 = vmul.f32 %v3629, %v20
  %v3814 = vmul.f32 %v3633, %v21
  %v3815 = vmul.f32 %v3637, %v22
  %v3816 = vmul.f32 %v3641, %v23
  %v3817 = vmul.f32 %v3645, %v24
  %v3818 = vmul.f32 %v3649, %v25
  %v3819 = vmul.f32 %v3653, %v26
  %v3820 = vmul.f32 %v3657, %v27
  %v3821 = vmul.f32 %v3661, %v28
  %v3822 = vmul.f32 %v3665, %v29
  %v3823 = vmul.f32 %v3669, %v30
  %v3824 = vmul.f32 %v3673, %v31
  %v3825 = vmul.f32 %v3677, %v32
  %v3826 = vmul.f32 %v3681, %v33
  %v3827 = vmul.f32 %v3685, %v34
  %v3828 = vmul.f32 %v3689, %v35
  %v3829 = vmul.f32 %v3693, %v36
  %v3830 = vmul.f32 %v3697, %v37
  %v3831 = vmul.f32 %v3701, %v38
  %v3832 = vmul.f32 %v3705, %v39
  %v3833 = vmul.f32 %v3709, %v40
  %v3834 = vmul.f32 %v3713, %v41
  %v3835 = vmul.f32 %v3717, %v42
  %v3836 = vmul.f32 %v3721, %v43
  %v3837 = vmul.f32 %v3725, %v44
  %v3838 = vmul.f32 %v3729, %v45
  %v3839 = vmul.f32 %v3733, %v46
  %v3840 = vmul.f32 %v3737, %v47
  %v3841 = vmul.f32 %v3741, %v48
  %v3842 = vmul.f32 %v3745, %v49
  %v3843 = vmul.f32 %v3749, %v50
  %v3844 = vmul.f32 %v3753, %v51
  %v3845 = vmul.f32 %v3757, %v52
  %v3846 = vmul.f32 %v3761, %v53
  %v3847 = vmul.f32 %v3765, %v54
  %v3848 = vmul.f32 %v3769, %v55
  %v3849 = vmul.f32 %v3773, %v56
  %v3850 = vmul.f32 %v3777, %v57
  %v3851 = vmul.f32 %v3781, %v58
  %v3852 = vmul.f32 %v3785, %v59
  %v3853 = vmul.f32 %v3789, %v60
  %v3854 = vmul.f32 %v3793, %v61
  %v3855 = vmul.f32 %v3797, %v62
  %v3856 = vmul.f32 %v3801, %v63
  %v3857 = vmul.f32 %v3805, %v64
  %v3858 = vmul.f32 %v3809, %v65
  %v3859 = vsel %vm402, %v3811, 0.0
  %v3860 = vrot.slane %v3859, 4
  %v3861 = vadd.f32 %v3859, %v3860
  %v3862 = vrot.slane %v3861, 2
  %v3863 = vadd.f32 %v3861, %v3862
  %v3864 = vrot.slane %v3863, 1
  %v3865 = vadd.f32 %v3863, %v3864
  %v3866 = vsel %vm402, %v3812, 0.0
  %v3867 = vrot.slane %v3866, 4
  %v3868 = vadd.f32 %v3866, %v3867
  %v3869 = vrot.slane %v3868, 2
  %v3870 = vadd.f32 %v3868, %v3869
  %v3871 = vrot.slane %v3870, 1
  %v3872 = vadd.f32 %v3870, %v3871
  %v3873 = vsel %vm402, %v3813, 0.0
  %v3874 = vrot.slane %v3873, 4
  %v3875 = vadd.f32 %v3873, %v3874
  %v3876 = vrot.slane %v3875, 2
  %v3877 = vadd.f32 %v3875, %v3876
  %v3878 = vrot.slane %v3877, 1
  %v3879 = vadd.f32 %v3877, %v3878
  %v3880 = vsel %vm402, %v3814, 0.0
  %v3881 = vrot.slane %v3880, 4
  %v3882 = vadd.f32 %v3880, %v3881
  %v3883 = vrot.slane %v3882, 2
  %v3884 = vadd.f32 %v3882, %v3883
  %v3885 = vrot.slane %v3884, 1
  %v3886 = vadd.f32 %v3884, %v3885
  %v3887 = vsel %vm402, %v3815, 0.0
  %v3888 = vrot.slane %v3887, 4
  %v3889 = vadd.f32 %v3887, %v3888
  %v3890 = vrot.slane %v3889, 2
  %v3891 = vadd.f32 %v3889, %v3890
  %v3892 = vrot.slane %v3891, 1
  %v3893 = vadd.f32 %v3891, %v3892
  %v3894 = vsel %vm402, %v3816, 0.0
  %v3895 = vrot.slane %v3894, 4
  %v3896 = vadd.f32 %v3894, %v3895
  %v3897 = vrot.slane %v3896, 2
  %v3898 = vadd.f32 %v3896, %v3897
  %v3899 = vrot.slane %v3898, 1
  %v3900 = vadd.f32 %v3898, %v3899
  %v3901 = vsel %vm402, %v3817, 0.0
  %v3902 = vrot.slane %v3901, 4
  %v3903 = vadd.f32 %v3901, %v3902
  %v3904 = vrot.slane %v3903, 2
  %v3905 = vadd.f32 %v3903, %v3904
  %v3906 = vrot.slane %v3905, 1
  %v3907 = vadd.f32 %v3905, %v3906
  %v3908 = vsel %vm402, %v3818, 0.0
  %v3909 = vrot.slane %v3908, 4
  %v3910 = vadd.f32 %v3908, %v3909
  %v3911 = vrot.slane %v3910, 2
  %v3912 = vadd.f32 %v3910, %v3911
  %v3913 = vrot.slane %v3912, 1
  %v3914 = vadd.f32 %v3912, %v3913
  %v3915 = vsel %vm402, %v3819, 0.0
  %v3916 = vrot.slane %v3915, 4
  %v3917 = vadd.f32 %v3915, %v3916
  %v3918 = vrot.slane %v3917, 2
  %v3919 = vadd.f32 %v3917, %v3918
  %v3920 = vrot.slane %v3919, 1
  %v3921 = vadd.f32 %v3919, %v3920
  %v3922 = vsel %vm402, %v3820, 0.0
  %v3923 = vrot.slane %v3922, 4
  %v3924 = vadd.f32 %v3922, %v3923
  %v3925 = vrot.slane %v3924, 2
  %v3926 = vadd.f32 %v3924, %v3925
  %v3927 = vrot.slane %v3926, 1
  %v3928 = vadd.f32 %v3926, %v3927
  %v3929 = vsel %vm402, %v3821, 0.0
  %v3930 = vrot.slane %v3929, 4
  %v3931 = vadd.f32 %v3929, %v3930
  %v3932 = vrot.slane %v3931, 2
  %v3933 = vadd.f32 %v3931, %v3932
  %v3934 = vrot.slane %v3933, 1
  %v3935 = vadd.f32 %v3933, %v3934
  %v3936 = vsel %vm402, %v3822, 0.0
  %v3937 = vrot.slane %v3936, 4
  %v3938 = vadd.f32 %v3936, %v3937
  %v3939 = vrot.slane %v3938, 2
  %v3940 = vadd.f32 %v3938, %v3939
  %v3941 = vrot.slane %v3940, 1
  %v3942 = vadd.f32 %v3940, %v3941
  %v3943 = vsel %vm402, %v3823, 0.0
  %v3944 = vrot.slane %v3943, 4
  %v3945 = vadd.f32 %v3943, %v3944
  %v3946 = vrot.slane %v3945, 2
  %v3947 = vadd.f32 %v3945, %v3946
  %v3948 = vrot.slane %v3947, 1
  %v3949 = vadd.f32 %v3947, %v3948
  %v3950 = vsel %vm402, %v3824, 0.0
  %v3951 = vrot.slane %v3950, 4
  %v3952 = vadd.f32 %v3950, %v3951
  %v3953 = vrot.slane %v3952, 2
  %v3954 = vadd.f32 %v3952, %v3953
  %v3955 = vrot.slane %v3954, 1
  %v3956 = vadd.f32 %v3954, %v3955
  %v3957 = vsel %vm402, %v3825, 0.0
  %v3958 = vrot.slane %v3957, 4
  %v3959 = vadd.f32 %v3957, %v3958
  %v3960 = vrot.slane %v3959, 2
  %v3961 = vadd.f32 %v3959, %v3960
  %v3962 = vrot.slane %v3961, 1
  %v3963 = vadd.f32 %v3961, %v3962
  %v3964 = vsel %vm402, %v3826, 0.0
  %v3965 = vrot.slane %v3964, 4
  %v3966 = vadd.f32 %v3964, %v3965
  %v3967 = vrot.slane %v3966, 2
  %v3968 = vadd.f32 %v3966, %v3967
  %v3969 = vrot.slane %v3968, 1
  %v3970 = vadd.f32 %v3968, %v3969
  %v3971 = vsel %vm402, %v3827, 0.0
  %v3972 = vrot.slane %v3971, 4
  %v3973 = vadd.f32 %v3971, %v3972
  %v3974 = vrot.slane %v3973, 2
  %v3975 = vadd.f32 %v3973, %v3974
  %v3976 = vrot.slane %v3975, 1
  %v3977 = vadd.f32 %v3975, %v3976
  %v3978 = vsel %vm402, %v3828, 0.0
  %v3979 = vrot.slane %v3978, 4
  %v3980 = vadd.f32 %v3978, %v3979
  %v3981 = vrot.slane %v3980, 2
  %v3982 = vadd.f32 %v3980, %v3981
  %v3983 = vrot.slane %v3982, 1
  %v3984 = vadd.f32 %v3982, %v3983
  %v3985 = vsel %vm402, %v3829, 0.0
  %v3986 = vrot.slane %v3985, 4
  %v3987 = vadd.f32 %v3985, %v3986
  %v3988 = vrot.slane %v3987, 2
  %v3989 = vadd.f32 %v3987, %v3988
  %v3990 = vrot.slane %v3989, 1
  %v3991 = vadd.f32 %v3989, %v3990
  %v3992 = vsel %vm402, %v3830, 0.0
  %v3993 = vrot.slane %v3992, 4
  %v3994 = vadd.f32 %v3992, %v3993
  %v3995 = vrot.slane %v3994, 2
  %v3996 = vadd.f32 %v3994, %v3995
  %v3997 = vrot.slane %v3996, 1
  %v3998 = vadd.f32 %v3996, %v3997
  %v3999 = vsel %vm402, %v3831, 0.0
  %v4000 = vrot.slane %v3999, 4
  %v4001 = vadd.f32 %v3999, %v4000
  %v4002 = vrot.slane %v4001, 2
  %v4003 = vadd.f32 %v4001, %v4002
  %v4004 = vrot.slane %v4003, 1
  %v4005 = vadd.f32 %v4003, %v4004
  %v4006 = vsel %vm402, %v3832, 0.0
  %v4007 = vrot.slane %v4006, 4
  %v4008 = vadd.f32 %v4006, %v4007
  %v4009 = vrot.slane %v4008, 2
  %v4010 = vadd.f32 %v4008, %v4009
  %v4011 = vrot.slane %v4010, 1
  %v4012 = vadd.f32 %v4010, %v4011
  %v4013 = vsel %vm402, %v3833, 0.0
  %v4014 = vrot.slane %v4013, 4
  %v4015 = vadd.f32 %v4013, %v4014
  %v4016 = vrot.slane %v4015, 2
  %v4017 = vadd.f32 %v4015, %v4016
  %v4018 = vrot.slane %v4017, 1
  %v4019 = vadd.f32 %v4017, %v4018
  %v4020 = vsel %vm402, %v3834, 0.0
  %v4021 = vrot.slane %v4020, 4
  %v4022 = vadd.f32 %v4020, %v4021
  %v4023 = vrot.slane %v4022, 2
  %v4024 = vadd.f32 %v4022, %v4023
  %v4025 = vrot.slane %v4024, 1
  %v4026 = vadd.f32 %v4024, %v4025
  %v4027 = vsel %vm402, %v3835, 0.0
  %v4028 = vrot.slane %v4027, 4
  %v4029 = vadd.f32 %v4027, %v4028
  %v4030 = vrot.slane %v4029, 2
  %v4031 = vadd.f32 %v4029, %v4030
  %v4032 = vrot.slane %v4031, 1
  %v4033 = vadd.f32 %v4031, %v4032
  %v4034 = vsel %vm402, %v3836, 0.0
  %v4035 = vrot.slane %v4034, 4
  %v4036 = vadd.f32 %v4034, %v4035
  %v4037 = vrot.slane %v4036, 2
  %v4038 = vadd.f32 %v4036, %v4037
  %v4039 = vrot.slane %v4038, 1
  %v4040 = vadd.f32 %v4038, %v4039
  %v4041 = vsel %vm402, %v3837, 0.0
  %v4042 = vrot.slane %v4041, 4
  %v4043 = vadd.f32 %v4041, %v4042
  %v4044 = vrot.slane %v4043, 2
  %v4045 = vadd.f32 %v4043, %v4044
  %v4046 = vrot.slane %v4045, 1
  %v4047 = vadd.f32 %v4045, %v4046
  %v4048 = vsel %vm402, %v3838, 0.0
  %v4049 = vrot.slane %v4048, 4
  %v4050 = vadd.f32 %v4048, %v4049
  %v4051 = vrot.slane %v4050, 2
  %v4052 = vadd.f32 %v4050, %v4051
  %v4053 = vrot.slane %v4052, 1
  %v4054 = vadd.f32 %v4052, %v4053
  %v4055 = vsel %vm402, %v3839, 0.0
  %v4056 = vrot.slane %v4055, 4
  %v4057 = vadd.f32 %v4055, %v4056
  %v4058 = vrot.slane %v4057, 2
  %v4059 = vadd.f32 %v4057, %v4058
  %v4060 = vrot.slane %v4059, 1
  %v4061 = vadd.f32 %v4059, %v4060
  %v4062 = vsel %vm402, %v3840, 0.0
  %v4063 = vrot.slane %v4062, 4
  %v4064 = vadd.f32 %v4062, %v4063
  %v4065 = vrot.slane %v4064, 2
  %v4066 = vadd.f32 %v4064, %v4065
  %v4067 = vrot.slane %v4066, 1
  %v4068 = vadd.f32 %v4066, %v4067
  %v4069 = vsel %vm402, %v3841, 0.0
  %v4070 = vrot.slane %v4069, 4
  %v4071 = vadd.f32 %v4069, %v4070
  %v4072 = vrot.slane %v4071, 2
  %v4073 = vadd.f32 %v4071, %v4072
  %v4074 = vrot.slane %v4073, 1
  %v4075 = vadd.f32 %v4073, %v4074
  %v4076 = vsel %vm402, %v3842, 0.0
  %v4077 = vrot.slane %v4076, 4
  %v4078 = vadd.f32 %v4076, %v4077
  %v4079 = vrot.slane %v4078, 2
  %v4080 = vadd.f32 %v4078, %v4079
  %v4081 = vrot.slane %v4080, 1
  %v4082 = vadd.f32 %v4080, %v4081
  %v4083 = vsel %vm402, %v3843, 0.0
  %v4084 = vrot.slane %v4083, 4
  %v4085 = vadd.f32 %v4083, %v4084
  %v4086 = vrot.slane %v4085, 2
  %v4087 = vadd.f32 %v4085, %v4086
  %v4088 = vrot.slane %v4087, 1
  %v4089 = vadd.f32 %v4087, %v4088
  %v4090 = vsel %vm402, %v3844, 0.0
  %v4091 = vrot.slane %v4090, 4
  %v4092 = vadd.f32 %v4090, %v4091
  %v4093 = vrot.slane %v4092, 2
  %v4094 = vadd.f32 %v4092, %v4093
  %v4095 = vrot.slane %v4094, 1
  %v4096 = vadd.f32 %v4094, %v4095
  %v4097 = vsel %vm402, %v3845, 0.0
  %v4098 = vrot.slane %v4097, 4
  %v4099 = vadd.f32 %v4097, %v4098
  %v4100 = vrot.slane %v4099, 2
  %v4101 = vadd.f32 %v4099, %v4100
  %v4102 = vrot.slane %v4101, 1
  %v4103 = vadd.f32 %v4101, %v4102
  %v4104 = vsel %vm402, %v3846, 0.0
  %v4105 = vrot.slane %v4104, 4
  %v4106 = vadd.f32 %v4104, %v4105
  %v4107 = vrot.slane %v4106, 2
  %v4108 = vadd.f32 %v4106, %v4107
  %v4109 = vrot.slane %v4108, 1
  %v4110 = vadd.f32 %v4108, %v4109
  %v4111 = vsel %vm402, %v3847, 0.0
  %v4112 = vrot.slane %v4111, 4
  %v4113 = vadd.f32 %v4111, %v4112
  %v4114 = vrot.slane %v4113, 2
  %v4115 = vadd.f32 %v4113, %v4114
  %v4116 = vrot.slane %v4115, 1
  %v4117 = vadd.f32 %v4115, %v4116
  %v4118 = vsel %vm402, %v3848, 0.0
  %v4119 = vrot.slane %v4118, 4
  %v4120 = vadd.f32 %v4118, %v4119
  %v4121 = vrot.slane %v4120, 2
  %v4122 = vadd.f32 %v4120, %v4121
  %v4123 = vrot.slane %v4122, 1
  %v4124 = vadd.f32 %v4122, %v4123
  %v4125 = vsel %vm402, %v3849, 0.0
  %v4126 = vrot.slane %v4125, 4
  %v4127 = vadd.f32 %v4125, %v4126
  %v4128 = vrot.slane %v4127, 2
  %v4129 = vadd.f32 %v4127, %v4128
  %v4130 = vrot.slane %v4129, 1
  %v4131 = vadd.f32 %v4129, %v4130
  %v4132 = vsel %vm402, %v3850, 0.0
  %v4133 = vrot.slane %v4132, 4
  %v4134 = vadd.f32 %v4132, %v4133
  %v4135 = vrot.slane %v4134, 2
  %v4136 = vadd.f32 %v4134, %v4135
  %v4137 = vrot.slane %v4136, 1
  %v4138 = vadd.f32 %v4136, %v4137
  %v4139 = vsel %vm402, %v3851, 0.0
  %v4140 = vrot.slane %v4139, 4
  %v4141 = vadd.f32 %v4139, %v4140
  %v4142 = vrot.slane %v4141, 2
  %v4143 = vadd.f32 %v4141, %v4142
  %v4144 = vrot.slane %v4143, 1
  %v4145 = vadd.f32 %v4143, %v4144
  %v4146 = vsel %vm402, %v3852, 0.0
  %v4147 = vrot.slane %v4146, 4
  %v4148 = vadd.f32 %v4146, %v4147
  %v4149 = vrot.slane %v4148, 2
  %v4150 = vadd.f32 %v4148, %v4149
  %v4151 = vrot.slane %v4150, 1
  %v4152 = vadd.f32 %v4150, %v4151
  %v4153 = vsel %vm402, %v3853, 0.0
  %v4154 = vrot.slane %v4153, 4
  %v4155 = vadd.f32 %v4153, %v4154
  %v4156 = vrot.slane %v4155, 2
  %v4157 = vadd.f32 %v4155, %v4156
  %v4158 = vrot.slane %v4157, 1
  %v4159 = vadd.f32 %v4157, %v4158
  %v4160 = vsel %vm402, %v3854, 0.0
  %v4161 = vrot.slane %v4160, 4
  %v4162 = vadd.f32 %v4160, %v4161
  %v4163 = vrot.slane %v4162, 2
  %v4164 = vadd.f32 %v4162, %v4163
  %v4165 = vrot.slane %v4164, 1
  %v4166 = vadd.f32 %v4164, %v4165
  %v4167 = vsel %vm402, %v3855, 0.0
  %v4168 = vrot.slane %v4167, 4
  %v4169 = vadd.f32 %v4167, %v4168
  %v4170 = vrot.slane %v4169, 2
  %v4171 = vadd.f32 %v4169, %v4170
  %v4172 = vrot.slane %v4171, 1
  %v4173 = vadd.f32 %v4171, %v4172
  %v4174 = vsel %vm402, %v3856, 0.0
  %v4175 = vrot.slane %v4174, 4
  %v4176 = vadd.f32 %v4174, %v4175
  %v4177 = vrot.slane %v4176, 2
  %v4178 = vadd.f32 %v4176, %v4177
  %v4179 = vrot.slane %v4178, 1
  %v4180 = vadd.f32 %v4178, %v4179
  %v4181 = vsel %vm402, %v3857, 0.0
  %v4182 = vrot.slane %v4181, 4
  %v4183 = vadd.f32 %v4181, %v4182
  %v4184 = vrot.slane %v4183, 2
  %v4185 = vadd.f32 %v4183, %v4184
  %v4186 = vrot.slane %v4185, 1
  %v4187 = vadd.f32 %v4185, %v4186
  %v4188 = vsel %vm402, %v3858, 0.0
  %v4189 = vrot.slane %v4188, 4
  %v4190 = vadd.f32 %v4188, %v4189
  %v4191 = vrot.slane %v4190, 2
  %v4192 = vadd.f32 %v4190, %v4191
  %v4193 = vrot.slane %v4192, 1
  %v4194 = vadd.f32 %v4192, %v4193
  %4195 = vset.pattern.permute.xlu0 7
  %4196 = vperm.xlu0 %4195, %v66
  %v4197 = vpop.permute.xlu0 %4196
  %4199 = vset.pattern.permute.xlu0 7
  %4200 = vperm.xlu0 %4199, %v67
  %v4201 = vpop.permute.xlu0 %4200
  %4203 = vset.pattern.permute.xlu0 7
  %4204 = vperm.xlu0 %4203, %v68
  %v4205 = vpop.permute.xlu0 %4204
  %4207 = vset.pattern.permute.xlu0 7
  %4208 = vperm.xlu0 %4207, %v69
  %v4209 = vpop.permute.xlu0 %4208
  %4211 = vset.pattern.permute.xlu0 7
  %4212 = vperm.xlu0 %4211, %v70
  %v4213 = vpop.permute.xlu0 %4212
  %4215 = vset.pattern.permute.xlu0 7
  %4216 = vperm.xlu0 %4215, %v71
  %v4217 = vpop.permute.xlu0 %4216
  %4219 = vset.pattern.permute.xlu0 7
  %4220 = vperm.xlu0 %4219, %v72
  %v4221 = vpop.permute.xlu0 %4220
  %4223 = vset.pattern.permute.xlu0 7
  %4224 = vperm.xlu0 %4223, %v73
  %v4225 = vpop.permute.xlu0 %4224
  %4227 = vset.pattern.permute.xlu0 7
  %4228 = vperm.xlu0 %4227, %v74
  %v4229 = vpop.permute.xlu0 %4228
  %4231 = vset.pattern.permute.xlu0 7
  %4232 = vperm.xlu0 %4231, %v75
  %v4233 = vpop.permute.xlu0 %4232
  %4235 = vset.pattern.permute.xlu0 7
  %4236 = vperm.xlu0 %4235, %v76
  %v4237 = vpop.permute.xlu0 %4236
  %4239 = vset.pattern.permute.xlu0 7
  %4240 = vperm.xlu0 %4239, %v77
  %v4241 = vpop.permute.xlu0 %4240
  %4243 = vset.pattern.permute.xlu0 7
  %4244 = vperm.xlu0 %4243, %v78
  %v4245 = vpop.permute.xlu0 %4244
  %4247 = vset.pattern.permute.xlu0 7
  %4248 = vperm.xlu0 %4247, %v79
  %v4249 = vpop.permute.xlu0 %4248
  %4251 = vset.pattern.permute.xlu0 7
  %4252 = vperm.xlu0 %4251, %v80
  %v4253 = vpop.permute.xlu0 %4252
  %4255 = vset.pattern.permute.xlu0 7
  %4256 = vperm.xlu0 %4255, %v81
  %v4257 = vpop.permute.xlu0 %4256
  %4259 = vset.pattern.permute.xlu0 7
  %4260 = vperm.xlu0 %4259, %v82
  %v4261 = vpop.permute.xlu0 %4260
  %4263 = vset.pattern.permute.xlu0 7
  %4264 = vperm.xlu0 %4263, %v83
  %v4265 = vpop.permute.xlu0 %4264
  %4267 = vset.pattern.permute.xlu0 7
  %4268 = vperm.xlu0 %4267, %v84
  %v4269 = vpop.permute.xlu0 %4268
  %4271 = vset.pattern.permute.xlu0 7
  %4272 = vperm.xlu0 %4271, %v85
  %v4273 = vpop.permute.xlu0 %4272
  %4275 = vset.pattern.permute.xlu0 7
  %4276 = vperm.xlu0 %4275, %v86
  %v4277 = vpop.permute.xlu0 %4276
  %4279 = vset.pattern.permute.xlu0 7
  %4280 = vperm.xlu0 %4279, %v87
  %v4281 = vpop.permute.xlu0 %4280
  %4283 = vset.pattern.permute.xlu0 7
  %4284 = vperm.xlu0 %4283, %v88
  %v4285 = vpop.permute.xlu0 %4284
  %4287 = vset.pattern.permute.xlu0 7
  %4288 = vperm.xlu0 %4287, %v89
  %v4289 = vpop.permute.xlu0 %4288
  %4291 = vset.pattern.permute.xlu0 7
  %4292 = vperm.xlu0 %4291, %v90
  %v4293 = vpop.permute.xlu0 %4292
  %4295 = vset.pattern.permute.xlu0 7
  %4296 = vperm.xlu0 %4295, %v91
  %v4297 = vpop.permute.xlu0 %4296
  %4299 = vset.pattern.permute.xlu0 7
  %4300 = vperm.xlu0 %4299, %v92
  %v4301 = vpop.permute.xlu0 %4300
  %4303 = vset.pattern.permute.xlu0 7
  %4304 = vperm.xlu0 %4303, %v93
  %v4305 = vpop.permute.xlu0 %4304
  %4307 = vset.pattern.permute.xlu0 7
  %4308 = vperm.xlu0 %4307, %v94
  %v4309 = vpop.permute.xlu0 %4308
  %4311 = vset.pattern.permute.xlu0 7
  %4312 = vperm.xlu0 %4311, %v95
  %v4313 = vpop.permute.xlu0 %4312
  %4315 = vset.pattern.permute.xlu0 7
  %4316 = vperm.xlu0 %4315, %v96
  %v4317 = vpop.permute.xlu0 %4316
  %4319 = vset.pattern.permute.xlu0 7
  %4320 = vperm.xlu0 %4319, %v97
  %v4321 = vpop.permute.xlu0 %4320
  %4323 = vset.pattern.permute.xlu0 7
  %4324 = vperm.xlu0 %4323, %v98
  %v4325 = vpop.permute.xlu0 %4324
  %4327 = vset.pattern.permute.xlu0 7
  %4328 = vperm.xlu0 %4327, %v99
  %v4329 = vpop.permute.xlu0 %4328
  %4331 = vset.pattern.permute.xlu0 7
  %4332 = vperm.xlu0 %4331, %v100
  %v4333 = vpop.permute.xlu0 %4332
  %4335 = vset.pattern.permute.xlu0 7
  %4336 = vperm.xlu0 %4335, %v101
  %v4337 = vpop.permute.xlu0 %4336
  %4339 = vset.pattern.permute.xlu0 7
  %4340 = vperm.xlu0 %4339, %v102
  %v4341 = vpop.permute.xlu0 %4340
  %4343 = vset.pattern.permute.xlu0 7
  %4344 = vperm.xlu0 %4343, %v103
  %v4345 = vpop.permute.xlu0 %4344
  %4347 = vset.pattern.permute.xlu0 7
  %4348 = vperm.xlu0 %4347, %v104
  %v4349 = vpop.permute.xlu0 %4348
  %4351 = vset.pattern.permute.xlu0 7
  %4352 = vperm.xlu0 %4351, %v105
  %v4353 = vpop.permute.xlu0 %4352
  %4355 = vset.pattern.permute.xlu0 7
  %4356 = vperm.xlu0 %4355, %v106
  %v4357 = vpop.permute.xlu0 %4356
  %4359 = vset.pattern.permute.xlu0 7
  %4360 = vperm.xlu0 %4359, %v107
  %v4361 = vpop.permute.xlu0 %4360
  %4363 = vset.pattern.permute.xlu0 7
  %4364 = vperm.xlu0 %4363, %v108
  %v4365 = vpop.permute.xlu0 %4364
  %4367 = vset.pattern.permute.xlu0 7
  %4368 = vperm.xlu0 %4367, %v109
  %v4369 = vpop.permute.xlu0 %4368
  %4371 = vset.pattern.permute.xlu0 7
  %4372 = vperm.xlu0 %4371, %v110
  %v4373 = vpop.permute.xlu0 %4372
  %4375 = vset.pattern.permute.xlu0 7
  %4376 = vperm.xlu0 %4375, %v111
  %v4377 = vpop.permute.xlu0 %4376
  %4379 = vset.pattern.permute.xlu0 7
  %4380 = vperm.xlu0 %4379, %v112
  %v4381 = vpop.permute.xlu0 %4380
  %4383 = vset.pattern.permute.xlu0 7
  %4384 = vperm.xlu0 %4383, %v113
  %v4385 = vpop.permute.xlu0 %4384
  %v4387 = vmul.f32 %v4197, %v18
  %v4388 = vmul.f32 %v4201, %v19
  %v4389 = vmul.f32 %v4205, %v20
  %v4390 = vmul.f32 %v4209, %v21
  %v4391 = vmul.f32 %v4213, %v22
  %v4392 = vmul.f32 %v4217, %v23
  %v4393 = vmul.f32 %v4221, %v24
  %v4394 = vmul.f32 %v4225, %v25
  %v4395 = vmul.f32 %v4229, %v26
  %v4396 = vmul.f32 %v4233, %v27
  %v4397 = vmul.f32 %v4237, %v28
  %v4398 = vmul.f32 %v4241, %v29
  %v4399 = vmul.f32 %v4245, %v30
  %v4400 = vmul.f32 %v4249, %v31
  %v4401 = vmul.f32 %v4253, %v32
  %v4402 = vmul.f32 %v4257, %v33
  %v4403 = vmul.f32 %v4261, %v34
  %v4404 = vmul.f32 %v4265, %v35
  %v4405 = vmul.f32 %v4269, %v36
  %v4406 = vmul.f32 %v4273, %v37
  %v4407 = vmul.f32 %v4277, %v38
  %v4408 = vmul.f32 %v4281, %v39
  %v4409 = vmul.f32 %v4285, %v40
  %v4410 = vmul.f32 %v4289, %v41
  %v4411 = vmul.f32 %v4293, %v42
  %v4412 = vmul.f32 %v4297, %v43
  %v4413 = vmul.f32 %v4301, %v44
  %v4414 = vmul.f32 %v4305, %v45
  %v4415 = vmul.f32 %v4309, %v46
  %v4416 = vmul.f32 %v4313, %v47
  %v4417 = vmul.f32 %v4317, %v48
  %v4418 = vmul.f32 %v4321, %v49
  %v4419 = vmul.f32 %v4325, %v50
  %v4420 = vmul.f32 %v4329, %v51
  %v4421 = vmul.f32 %v4333, %v52
  %v4422 = vmul.f32 %v4337, %v53
  %v4423 = vmul.f32 %v4341, %v54
  %v4424 = vmul.f32 %v4345, %v55
  %v4425 = vmul.f32 %v4349, %v56
  %v4426 = vmul.f32 %v4353, %v57
  %v4427 = vmul.f32 %v4357, %v58
  %v4428 = vmul.f32 %v4361, %v59
  %v4429 = vmul.f32 %v4365, %v60
  %v4430 = vmul.f32 %v4369, %v61
  %v4431 = vmul.f32 %v4373, %v62
  %v4432 = vmul.f32 %v4377, %v63
  %v4433 = vmul.f32 %v4381, %v64
  %v4434 = vmul.f32 %v4385, %v65
  %v4435 = vsel %vm402, %v4387, 0.0
  %v4436 = vrot.slane %v4435, 4
  %v4437 = vadd.f32 %v4435, %v4436
  %v4438 = vrot.slane %v4437, 2
  %v4439 = vadd.f32 %v4437, %v4438
  %v4440 = vrot.slane %v4439, 1
  %v4441 = vadd.f32 %v4439, %v4440
  %v4442 = vsel %vm402, %v4388, 0.0
  %v4443 = vrot.slane %v4442, 4
  %v4444 = vadd.f32 %v4442, %v4443
  %v4445 = vrot.slane %v4444, 2
  %v4446 = vadd.f32 %v4444, %v4445
  %v4447 = vrot.slane %v4446, 1
  %v4448 = vadd.f32 %v4446, %v4447
  %v4449 = vsel %vm402, %v4389, 0.0
  %v4450 = vrot.slane %v4449, 4
  %v4451 = vadd.f32 %v4449, %v4450
  %v4452 = vrot.slane %v4451, 2
  %v4453 = vadd.f32 %v4451, %v4452
  %v4454 = vrot.slane %v4453, 1
  %v4455 = vadd.f32 %v4453, %v4454
  %v4456 = vsel %vm402, %v4390, 0.0
  %v4457 = vrot.slane %v4456, 4
  %v4458 = vadd.f32 %v4456, %v4457
  %v4459 = vrot.slane %v4458, 2
  %v4460 = vadd.f32 %v4458, %v4459
  %v4461 = vrot.slane %v4460, 1
  %v4462 = vadd.f32 %v4460, %v4461
  %v4463 = vsel %vm402, %v4391, 0.0
  %v4464 = vrot.slane %v4463, 4
  %v4465 = vadd.f32 %v4463, %v4464
  %v4466 = vrot.slane %v4465, 2
  %v4467 = vadd.f32 %v4465, %v4466
  %v4468 = vrot.slane %v4467, 1
  %v4469 = vadd.f32 %v4467, %v4468
  %v4470 = vsel %vm402, %v4392, 0.0
  %v4471 = vrot.slane %v4470, 4
  %v4472 = vadd.f32 %v4470, %v4471
  %v4473 = vrot.slane %v4472, 2
  %v4474 = vadd.f32 %v4472, %v4473
  %v4475 = vrot.slane %v4474, 1
  %v4476 = vadd.f32 %v4474, %v4475
  %v4477 = vsel %vm402, %v4393, 0.0
  %v4478 = vrot.slane %v4477, 4
  %v4479 = vadd.f32 %v4477, %v4478
  %v4480 = vrot.slane %v4479, 2
  %v4481 = vadd.f32 %v4479, %v4480
  %v4482 = vrot.slane %v4481, 1
  %v4483 = vadd.f32 %v4481, %v4482
  %v4484 = vsel %vm402, %v4394, 0.0
  %v4485 = vrot.slane %v4484, 4
  %v4486 = vadd.f32 %v4484, %v4485
  %v4487 = vrot.slane %v4486, 2
  %v4488 = vadd.f32 %v4486, %v4487
  %v4489 = vrot.slane %v4488, 1
  %v4490 = vadd.f32 %v4488, %v4489
  %v4491 = vsel %vm402, %v4395, 0.0
  %v4492 = vrot.slane %v4491, 4
  %v4493 = vadd.f32 %v4491, %v4492
  %v4494 = vrot.slane %v4493, 2
  %v4495 = vadd.f32 %v4493, %v4494
  %v4496 = vrot.slane %v4495, 1
  %v4497 = vadd.f32 %v4495, %v4496
  %v4498 = vsel %vm402, %v4396, 0.0
  %v4499 = vrot.slane %v4498, 4
  %v4500 = vadd.f32 %v4498, %v4499
  %v4501 = vrot.slane %v4500, 2
  %v4502 = vadd.f32 %v4500, %v4501
  %v4503 = vrot.slane %v4502, 1
  %v4504 = vadd.f32 %v4502, %v4503
  %v4505 = vsel %vm402, %v4397, 0.0
  %v4506 = vrot.slane %v4505, 4
  %v4507 = vadd.f32 %v4505, %v4506
  %v4508 = vrot.slane %v4507, 2
  %v4509 = vadd.f32 %v4507, %v4508
  %v4510 = vrot.slane %v4509, 1
  %v4511 = vadd.f32 %v4509, %v4510
  %v4512 = vsel %vm402, %v4398, 0.0
  %v4513 = vrot.slane %v4512, 4
  %v4514 = vadd.f32 %v4512, %v4513
  %v4515 = vrot.slane %v4514, 2
  %v4516 = vadd.f32 %v4514, %v4515
  %v4517 = vrot.slane %v4516, 1
  %v4518 = vadd.f32 %v4516, %v4517
  %v4519 = vsel %vm402, %v4399, 0.0
  %v4520 = vrot.slane %v4519, 4
  %v4521 = vadd.f32 %v4519, %v4520
  %v4522 = vrot.slane %v4521, 2
  %v4523 = vadd.f32 %v4521, %v4522
  %v4524 = vrot.slane %v4523, 1
  %v4525 = vadd.f32 %v4523, %v4524
  %v4526 = vsel %vm402, %v4400, 0.0
  %v4527 = vrot.slane %v4526, 4
  %v4528 = vadd.f32 %v4526, %v4527
  %v4529 = vrot.slane %v4528, 2
  %v4530 = vadd.f32 %v4528, %v4529
  %v4531 = vrot.slane %v4530, 1
  %v4532 = vadd.f32 %v4530, %v4531
  %v4533 = vsel %vm402, %v4401, 0.0
  %v4534 = vrot.slane %v4533, 4
  %v4535 = vadd.f32 %v4533, %v4534
  %v4536 = vrot.slane %v4535, 2
  %v4537 = vadd.f32 %v4535, %v4536
  %v4538 = vrot.slane %v4537, 1
  %v4539 = vadd.f32 %v4537, %v4538
  %v4540 = vsel %vm402, %v4402, 0.0
  %v4541 = vrot.slane %v4540, 4
  %v4542 = vadd.f32 %v4540, %v4541
  %v4543 = vrot.slane %v4542, 2
  %v4544 = vadd.f32 %v4542, %v4543
  %v4545 = vrot.slane %v4544, 1
  %v4546 = vadd.f32 %v4544, %v4545
  %v4547 = vsel %vm402, %v4403, 0.0
  %v4548 = vrot.slane %v4547, 4
  %v4549 = vadd.f32 %v4547, %v4548
  %v4550 = vrot.slane %v4549, 2
  %v4551 = vadd.f32 %v4549, %v4550
  %v4552 = vrot.slane %v4551, 1
  %v4553 = vadd.f32 %v4551, %v4552
  %v4554 = vsel %vm402, %v4404, 0.0
  %v4555 = vrot.slane %v4554, 4
  %v4556 = vadd.f32 %v4554, %v4555
  %v4557 = vrot.slane %v4556, 2
  %v4558 = vadd.f32 %v4556, %v4557
  %v4559 = vrot.slane %v4558, 1
  %v4560 = vadd.f32 %v4558, %v4559
  %v4561 = vsel %vm402, %v4405, 0.0
  %v4562 = vrot.slane %v4561, 4
  %v4563 = vadd.f32 %v4561, %v4562
  %v4564 = vrot.slane %v4563, 2
  %v4565 = vadd.f32 %v4563, %v4564
  %v4566 = vrot.slane %v4565, 1
  %v4567 = vadd.f32 %v4565, %v4566
  %v4568 = vsel %vm402, %v4406, 0.0
  %v4569 = vrot.slane %v4568, 4
  %v4570 = vadd.f32 %v4568, %v4569
  %v4571 = vrot.slane %v4570, 2
  %v4572 = vadd.f32 %v4570, %v4571
  %v4573 = vrot.slane %v4572, 1
  %v4574 = vadd.f32 %v4572, %v4573
  %v4575 = vsel %vm402, %v4407, 0.0
  %v4576 = vrot.slane %v4575, 4
  %v4577 = vadd.f32 %v4575, %v4576
  %v4578 = vrot.slane %v4577, 2
  %v4579 = vadd.f32 %v4577, %v4578
  %v4580 = vrot.slane %v4579, 1
  %v4581 = vadd.f32 %v4579, %v4580
  %v4582 = vsel %vm402, %v4408, 0.0
  %v4583 = vrot.slane %v4582, 4
  %v4584 = vadd.f32 %v4582, %v4583
  %v4585 = vrot.slane %v4584, 2
  %v4586 = vadd.f32 %v4584, %v4585
  %v4587 = vrot.slane %v4586, 1
  %v4588 = vadd.f32 %v4586, %v4587
  %v4589 = vsel %vm402, %v4409, 0.0
  %v4590 = vrot.slane %v4589, 4
  %v4591 = vadd.f32 %v4589, %v4590
  %v4592 = vrot.slane %v4591, 2
  %v4593 = vadd.f32 %v4591, %v4592
  %v4594 = vrot.slane %v4593, 1
  %v4595 = vadd.f32 %v4593, %v4594
  %v4596 = vsel %vm402, %v4410, 0.0
  %v4597 = vrot.slane %v4596, 4
  %v4598 = vadd.f32 %v4596, %v4597
  %v4599 = vrot.slane %v4598, 2
  %v4600 = vadd.f32 %v4598, %v4599
  %v4601 = vrot.slane %v4600, 1
  %v4602 = vadd.f32 %v4600, %v4601
  %v4603 = vsel %vm402, %v4411, 0.0
  %v4604 = vrot.slane %v4603, 4
  %v4605 = vadd.f32 %v4603, %v4604
  %v4606 = vrot.slane %v4605, 2
  %v4607 = vadd.f32 %v4605, %v4606
  %v4608 = vrot.slane %v4607, 1
  %v4609 = vadd.f32 %v4607, %v4608
  %v4610 = vsel %vm402, %v4412, 0.0
  %v4611 = vrot.slane %v4610, 4
  %v4612 = vadd.f32 %v4610, %v4611
  %v4613 = vrot.slane %v4612, 2
  %v4614 = vadd.f32 %v4612, %v4613
  %v4615 = vrot.slane %v4614, 1
  %v4616 = vadd.f32 %v4614, %v4615
  %v4617 = vsel %vm402, %v4413, 0.0
  %v4618 = vrot.slane %v4617, 4
  %v4619 = vadd.f32 %v4617, %v4618
  %v4620 = vrot.slane %v4619, 2
  %v4621 = vadd.f32 %v4619, %v4620
  %v4622 = vrot.slane %v4621, 1
  %v4623 = vadd.f32 %v4621, %v4622
  %v4624 = vsel %vm402, %v4414, 0.0
  %v4625 = vrot.slane %v4624, 4
  %v4626 = vadd.f32 %v4624, %v4625
  %v4627 = vrot.slane %v4626, 2
  %v4628 = vadd.f32 %v4626, %v4627
  %v4629 = vrot.slane %v4628, 1
  %v4630 = vadd.f32 %v4628, %v4629
  %v4631 = vsel %vm402, %v4415, 0.0
  %v4632 = vrot.slane %v4631, 4
  %v4633 = vadd.f32 %v4631, %v4632
  %v4634 = vrot.slane %v4633, 2
  %v4635 = vadd.f32 %v4633, %v4634
  %v4636 = vrot.slane %v4635, 1
  %v4637 = vadd.f32 %v4635, %v4636
  %v4638 = vsel %vm402, %v4416, 0.0
  %v4639 = vrot.slane %v4638, 4
  %v4640 = vadd.f32 %v4638, %v4639
  %v4641 = vrot.slane %v4640, 2
  %v4642 = vadd.f32 %v4640, %v4641
  %v4643 = vrot.slane %v4642, 1
  %v4644 = vadd.f32 %v4642, %v4643
  %v4645 = vsel %vm402, %v4417, 0.0
  %v4646 = vrot.slane %v4645, 4
  %v4647 = vadd.f32 %v4645, %v4646
  %v4648 = vrot.slane %v4647, 2
  %v4649 = vadd.f32 %v4647, %v4648
  %v4650 = vrot.slane %v4649, 1
  %v4651 = vadd.f32 %v4649, %v4650
  %v4652 = vsel %vm402, %v4418, 0.0
  %v4653 = vrot.slane %v4652, 4
  %v4654 = vadd.f32 %v4652, %v4653
  %v4655 = vrot.slane %v4654, 2
  %v4656 = vadd.f32 %v4654, %v4655
  %v4657 = vrot.slane %v4656, 1
  %v4658 = vadd.f32 %v4656, %v4657
  %v4659 = vsel %vm402, %v4419, 0.0
  %v4660 = vrot.slane %v4659, 4
  %v4661 = vadd.f32 %v4659, %v4660
  %v4662 = vrot.slane %v4661, 2
  %v4663 = vadd.f32 %v4661, %v4662
  %v4664 = vrot.slane %v4663, 1
  %v4665 = vadd.f32 %v4663, %v4664
  %v4666 = vsel %vm402, %v4420, 0.0
  %v4667 = vrot.slane %v4666, 4
  %v4668 = vadd.f32 %v4666, %v4667
  %v4669 = vrot.slane %v4668, 2
  %v4670 = vadd.f32 %v4668, %v4669
  %v4671 = vrot.slane %v4670, 1
  %v4672 = vadd.f32 %v4670, %v4671
  %v4673 = vsel %vm402, %v4421, 0.0
  %v4674 = vrot.slane %v4673, 4
  %v4675 = vadd.f32 %v4673, %v4674
  %v4676 = vrot.slane %v4675, 2
  %v4677 = vadd.f32 %v4675, %v4676
  %v4678 = vrot.slane %v4677, 1
  %v4679 = vadd.f32 %v4677, %v4678
  %v4680 = vsel %vm402, %v4422, 0.0
  %v4681 = vrot.slane %v4680, 4
  %v4682 = vadd.f32 %v4680, %v4681
  %v4683 = vrot.slane %v4682, 2
  %v4684 = vadd.f32 %v4682, %v4683
  %v4685 = vrot.slane %v4684, 1
  %v4686 = vadd.f32 %v4684, %v4685
  %v4687 = vsel %vm402, %v4423, 0.0
  %v4688 = vrot.slane %v4687, 4
  %v4689 = vadd.f32 %v4687, %v4688
  %v4690 = vrot.slane %v4689, 2
  %v4691 = vadd.f32 %v4689, %v4690
  %v4692 = vrot.slane %v4691, 1
  %v4693 = vadd.f32 %v4691, %v4692
  %v4694 = vsel %vm402, %v4424, 0.0
  %v4695 = vrot.slane %v4694, 4
  %v4696 = vadd.f32 %v4694, %v4695
  %v4697 = vrot.slane %v4696, 2
  %v4698 = vadd.f32 %v4696, %v4697
  %v4699 = vrot.slane %v4698, 1
  %v4700 = vadd.f32 %v4698, %v4699
  %v4701 = vsel %vm402, %v4425, 0.0
  %v4702 = vrot.slane %v4701, 4
  %v4703 = vadd.f32 %v4701, %v4702
  %v4704 = vrot.slane %v4703, 2
  %v4705 = vadd.f32 %v4703, %v4704
  %v4706 = vrot.slane %v4705, 1
  %v4707 = vadd.f32 %v4705, %v4706
  %v4708 = vsel %vm402, %v4426, 0.0
  %v4709 = vrot.slane %v4708, 4
  %v4710 = vadd.f32 %v4708, %v4709
  %v4711 = vrot.slane %v4710, 2
  %v4712 = vadd.f32 %v4710, %v4711
  %v4713 = vrot.slane %v4712, 1
  %v4714 = vadd.f32 %v4712, %v4713
  %v4715 = vsel %vm402, %v4427, 0.0
  %v4716 = vrot.slane %v4715, 4
  %v4717 = vadd.f32 %v4715, %v4716
  %v4718 = vrot.slane %v4717, 2
  %v4719 = vadd.f32 %v4717, %v4718
  %v4720 = vrot.slane %v4719, 1
  %v4721 = vadd.f32 %v4719, %v4720
  %v4722 = vsel %vm402, %v4428, 0.0
  %v4723 = vrot.slane %v4722, 4
  %v4724 = vadd.f32 %v4722, %v4723
  %v4725 = vrot.slane %v4724, 2
  %v4726 = vadd.f32 %v4724, %v4725
  %v4727 = vrot.slane %v4726, 1
  %v4728 = vadd.f32 %v4726, %v4727
  %v4729 = vsel %vm402, %v4429, 0.0
  %v4730 = vrot.slane %v4729, 4
  %v4731 = vadd.f32 %v4729, %v4730
  %v4732 = vrot.slane %v4731, 2
  %v4733 = vadd.f32 %v4731, %v4732
  %v4734 = vrot.slane %v4733, 1
  %v4735 = vadd.f32 %v4733, %v4734
  %v4736 = vsel %vm402, %v4430, 0.0
  %v4737 = vrot.slane %v4736, 4
  %v4738 = vadd.f32 %v4736, %v4737
  %v4739 = vrot.slane %v4738, 2
  %v4740 = vadd.f32 %v4738, %v4739
  %v4741 = vrot.slane %v4740, 1
  %v4742 = vadd.f32 %v4740, %v4741
  %v4743 = vsel %vm402, %v4431, 0.0
  %v4744 = vrot.slane %v4743, 4
  %v4745 = vadd.f32 %v4743, %v4744
  %v4746 = vrot.slane %v4745, 2
  %v4747 = vadd.f32 %v4745, %v4746
  %v4748 = vrot.slane %v4747, 1
  %v4749 = vadd.f32 %v4747, %v4748
  %v4750 = vsel %vm402, %v4432, 0.0
  %v4751 = vrot.slane %v4750, 4
  %v4752 = vadd.f32 %v4750, %v4751
  %v4753 = vrot.slane %v4752, 2
  %v4754 = vadd.f32 %v4752, %v4753
  %v4755 = vrot.slane %v4754, 1
  %v4756 = vadd.f32 %v4754, %v4755
  %v4757 = vsel %vm402, %v4433, 0.0
  %v4758 = vrot.slane %v4757, 4
  %v4759 = vadd.f32 %v4757, %v4758
  %v4760 = vrot.slane %v4759, 2
  %v4761 = vadd.f32 %v4759, %v4760
  %v4762 = vrot.slane %v4761, 1
  %v4763 = vadd.f32 %v4761, %v4762
  %v4764 = vsel %vm402, %v4434, 0.0
  %v4765 = vrot.slane %v4764, 4
  %v4766 = vadd.f32 %v4764, %v4765
  %v4767 = vrot.slane %v4766, 2
  %v4768 = vadd.f32 %v4766, %v4767
  %v4769 = vrot.slane %v4768, 1
  %v4770 = vadd.f32 %v4768, %v4769
  %vm4819 = vcmask 1041409
  %v4820 = vsel %vm4819, %v416, %v409
  %vm4821 = vcmask 1042434
  %v4822 = vsel %vm4821, %v423, %v4820
  %vm4823 = vcmask 1043459
  %v4824 = vsel %vm4823, %v430, %v4822
  %vm4825 = vcmask 1044484
  %v4826 = vsel %vm4825, %v437, %v4824
  %vm4827 = vcmask 1045509
  %v4828 = vsel %vm4827, %v444, %v4826
  %vm4829 = vcmask 1046534
  %v4830 = vsel %vm4829, %v451, %v4828
  %vm4831 = vcmask 1047559
  %v4832 = vsel %vm4831, %v458, %v4830
  %v4833 = vsel %vm4819, %v472, %v465
  %v4834 = vsel %vm4821, %v479, %v4833
  %v4835 = vsel %vm4823, %v486, %v4834
  %v4836 = vsel %vm4825, %v493, %v4835
  %v4837 = vsel %vm4827, %v500, %v4836
  %v4838 = vsel %vm4829, %v507, %v4837
  %v4839 = vsel %vm4831, %v514, %v4838
  %v4840 = vsel %vm4819, %v528, %v521
  %v4841 = vsel %vm4821, %v535, %v4840
  %v4842 = vsel %vm4823, %v542, %v4841
  %v4843 = vsel %vm4825, %v549, %v4842
  %v4844 = vsel %vm4827, %v556, %v4843
  %v4845 = vsel %vm4829, %v563, %v4844
  %v4846 = vsel %vm4831, %v570, %v4845
  %v4847 = vsel %vm4819, %v584, %v577
  %v4848 = vsel %vm4821, %v591, %v4847
  %v4849 = vsel %vm4823, %v598, %v4848
  %v4850 = vsel %vm4825, %v605, %v4849
  %v4851 = vsel %vm4827, %v612, %v4850
  %v4852 = vsel %vm4829, %v619, %v4851
  %v4853 = vsel %vm4831, %v626, %v4852
  %v4854 = vsel %vm4819, %v640, %v633
  %v4855 = vsel %vm4821, %v647, %v4854
  %v4856 = vsel %vm4823, %v654, %v4855
  %v4857 = vsel %vm4825, %v661, %v4856
  %v4858 = vsel %vm4827, %v668, %v4857
  %v4859 = vsel %vm4829, %v675, %v4858
  %v4860 = vsel %vm4831, %v682, %v4859
  %v4861 = vsel %vm4819, %v696, %v689
  %v4862 = vsel %vm4821, %v703, %v4861
  %v4863 = vsel %vm4823, %v710, %v4862
  %v4864 = vsel %vm4825, %v717, %v4863
  %v4865 = vsel %vm4827, %v724, %v4864
  %v4866 = vsel %vm4829, %v731, %v4865
  %v4867 = vsel %vm4831, %v738, %v4866
  %v4922 = vsel %vm4819, %v992, %v985
  %v4923 = vsel %vm4821, %v999, %v4922
  %v4924 = vsel %vm4823, %v1006, %v4923
  %v4925 = vsel %vm4825, %v1013, %v4924
  %v4926 = vsel %vm4827, %v1020, %v4925
  %v4927 = vsel %vm4829, %v1027, %v4926
  %v4928 = vsel %vm4831, %v1034, %v4927
  %v4929 = vsel %vm4819, %v1048, %v1041
  %v4930 = vsel %vm4821, %v1055, %v4929
  %v4931 = vsel %vm4823, %v1062, %v4930
  %v4932 = vsel %vm4825, %v1069, %v4931
  %v4933 = vsel %vm4827, %v1076, %v4932
  %v4934 = vsel %vm4829, %v1083, %v4933
  %v4935 = vsel %vm4831, %v1090, %v4934
  %v4936 = vsel %vm4819, %v1104, %v1097
  %v4937 = vsel %vm4821, %v1111, %v4936
  %v4938 = vsel %vm4823, %v1118, %v4937
  %v4939 = vsel %vm4825, %v1125, %v4938
  %v4940 = vsel %vm4827, %v1132, %v4939
  %v4941 = vsel %vm4829, %v1139, %v4940
  %v4942 = vsel %vm4831, %v1146, %v4941
  %v4943 = vsel %vm4819, %v1160, %v1153
  %v4944 = vsel %vm4821, %v1167, %v4943
  %v4945 = vsel %vm4823, %v1174, %v4944
  %v4946 = vsel %vm4825, %v1181, %v4945
  %v4947 = vsel %vm4827, %v1188, %v4946
  %v4948 = vsel %vm4829, %v1195, %v4947
  %v4949 = vsel %vm4831, %v1202, %v4948
  %v4950 = vsel %vm4819, %v1216, %v1209
  %v4951 = vsel %vm4821, %v1223, %v4950
  %v4952 = vsel %vm4823, %v1230, %v4951
  %v4953 = vsel %vm4825, %v1237, %v4952
  %v4954 = vsel %vm4827, %v1244, %v4953
  %v4955 = vsel %vm4829, %v1251, %v4954
  %v4956 = vsel %vm4831, %v1258, %v4955
  %v4957 = vsel %vm4819, %v1272, %v1265
  %v4958 = vsel %vm4821, %v1279, %v4957
  %v4959 = vsel %vm4823, %v1286, %v4958
  %v4960 = vsel %vm4825, %v1293, %v4959
  %v4961 = vsel %vm4827, %v1300, %v4960
  %v4962 = vsel %vm4829, %v1307, %v4961
  %v4963 = vsel %vm4831, %v1314, %v4962
  %4964 = vrot.lane.b32.xlu0 %v4928, 4
  %v4965 = vpop.permute.xlu0 %4964
  %4966 = vrot.lane.b32.xlu0 %v4935, 4
  %v4967 = vpop.permute.xlu0 %4966
  %4968 = vrot.lane.b32.xlu0 %v4942, 4
  %v4969 = vpop.permute.xlu0 %4968
  %4970 = vrot.lane.b32.xlu0 %v4949, 4
  %v4971 = vpop.permute.xlu0 %4970
  %4972 = vrot.lane.b32.xlu0 %v4956, 4
  %v4973 = vpop.permute.xlu0 %4972
  %4974 = vrot.lane.b32.xlu0 %v4963, 4
  %v4975 = vpop.permute.xlu0 %4974
  %v5030 = vsel %vm4819, %v1568, %v1561
  %v5031 = vsel %vm4821, %v1575, %v5030
  %v5032 = vsel %vm4823, %v1582, %v5031
  %v5033 = vsel %vm4825, %v1589, %v5032
  %v5034 = vsel %vm4827, %v1596, %v5033
  %v5035 = vsel %vm4829, %v1603, %v5034
  %v5036 = vsel %vm4831, %v1610, %v5035
  %v5037 = vsel %vm4819, %v1624, %v1617
  %v5038 = vsel %vm4821, %v1631, %v5037
  %v5039 = vsel %vm4823, %v1638, %v5038
  %v5040 = vsel %vm4825, %v1645, %v5039
  %v5041 = vsel %vm4827, %v1652, %v5040
  %v5042 = vsel %vm4829, %v1659, %v5041
  %v5043 = vsel %vm4831, %v1666, %v5042
  %v5044 = vsel %vm4819, %v1680, %v1673
  %v5045 = vsel %vm4821, %v1687, %v5044
  %v5046 = vsel %vm4823, %v1694, %v5045
  %v5047 = vsel %vm4825, %v1701, %v5046
  %v5048 = vsel %vm4827, %v1708, %v5047
  %v5049 = vsel %vm4829, %v1715, %v5048
  %v5050 = vsel %vm4831, %v1722, %v5049
  %v5051 = vsel %vm4819, %v1736, %v1729
  %v5052 = vsel %vm4821, %v1743, %v5051
  %v5053 = vsel %vm4823, %v1750, %v5052
  %v5054 = vsel %vm4825, %v1757, %v5053
  %v5055 = vsel %vm4827, %v1764, %v5054
  %v5056 = vsel %vm4829, %v1771, %v5055
  %v5057 = vsel %vm4831, %v1778, %v5056
  %v5058 = vsel %vm4819, %v1792, %v1785
  %v5059 = vsel %vm4821, %v1799, %v5058
  %v5060 = vsel %vm4823, %v1806, %v5059
  %v5061 = vsel %vm4825, %v1813, %v5060
  %v5062 = vsel %vm4827, %v1820, %v5061
  %v5063 = vsel %vm4829, %v1827, %v5062
  %v5064 = vsel %vm4831, %v1834, %v5063
  %v5065 = vsel %vm4819, %v1848, %v1841
  %v5066 = vsel %vm4821, %v1855, %v5065
  %v5067 = vsel %vm4823, %v1862, %v5066
  %v5068 = vsel %vm4825, %v1869, %v5067
  %v5069 = vsel %vm4827, %v1876, %v5068
  %v5070 = vsel %vm4829, %v1883, %v5069
  %v5071 = vsel %vm4831, %v1890, %v5070
  %5072 = vrot.lane.b32.xlu0 %v5036, 8
  %v5073 = vpop.permute.xlu0 %5072
  %5074 = vrot.lane.b32.xlu0 %v5043, 8
  %v5075 = vpop.permute.xlu0 %5074
  %5076 = vrot.lane.b32.xlu0 %v5050, 8
  %v5077 = vpop.permute.xlu0 %5076
  %5078 = vrot.lane.b32.xlu0 %v5057, 8
  %v5079 = vpop.permute.xlu0 %5078
  %5080 = vrot.lane.b32.xlu0 %v5064, 8
  %v5081 = vpop.permute.xlu0 %5080
  %5082 = vrot.lane.b32.xlu0 %v5071, 8
  %v5083 = vpop.permute.xlu0 %5082
  %v5138 = vsel %vm4819, %v2144, %v2137
  %v5139 = vsel %vm4821, %v2151, %v5138
  %v5140 = vsel %vm4823, %v2158, %v5139
  %v5141 = vsel %vm4825, %v2165, %v5140
  %v5142 = vsel %vm4827, %v2172, %v5141
  %v5143 = vsel %vm4829, %v2179, %v5142
  %v5144 = vsel %vm4831, %v2186, %v5143
  %v5145 = vsel %vm4819, %v2200, %v2193
  %v5146 = vsel %vm4821, %v2207, %v5145
  %v5147 = vsel %vm4823, %v2214, %v5146
  %v5148 = vsel %vm4825, %v2221, %v5147
  %v5149 = vsel %vm4827, %v2228, %v5148
  %v5150 = vsel %vm4829, %v2235, %v5149
  %v5151 = vsel %vm4831, %v2242, %v5150
  %v5152 = vsel %vm4819, %v2256, %v2249
  %v5153 = vsel %vm4821, %v2263, %v5152
  %v5154 = vsel %vm4823, %v2270, %v5153
  %v5155 = vsel %vm4825, %v2277, %v5154
  %v5156 = vsel %vm4827, %v2284, %v5155
  %v5157 = vsel %vm4829, %v2291, %v5156
  %v5158 = vsel %vm4831, %v2298, %v5157
  %v5159 = vsel %vm4819, %v2312, %v2305
  %v5160 = vsel %vm4821, %v2319, %v5159
  %v5161 = vsel %vm4823, %v2326, %v5160
  %v5162 = vsel %vm4825, %v2333, %v5161
  %v5163 = vsel %vm4827, %v2340, %v5162
  %v5164 = vsel %vm4829, %v2347, %v5163
  %v5165 = vsel %vm4831, %v2354, %v5164
  %v5166 = vsel %vm4819, %v2368, %v2361
  %v5167 = vsel %vm4821, %v2375, %v5166
  %v5168 = vsel %vm4823, %v2382, %v5167
  %v5169 = vsel %vm4825, %v2389, %v5168
  %v5170 = vsel %vm4827, %v2396, %v5169
  %v5171 = vsel %vm4829, %v2403, %v5170
  %v5172 = vsel %vm4831, %v2410, %v5171
  %v5173 = vsel %vm4819, %v2424, %v2417
  %v5174 = vsel %vm4821, %v2431, %v5173
  %v5175 = vsel %vm4823, %v2438, %v5174
  %v5176 = vsel %vm4825, %v2445, %v5175
  %v5177 = vsel %vm4827, %v2452, %v5176
  %v5178 = vsel %vm4829, %v2459, %v5177
  %v5179 = vsel %vm4831, %v2466, %v5178
  %5180 = vrot.lane.b32.xlu0 %v5144, 12
  %v5181 = vpop.permute.xlu0 %5180
  %5182 = vrot.lane.b32.xlu0 %v5151, 12
  %v5183 = vpop.permute.xlu0 %5182
  %5184 = vrot.lane.b32.xlu0 %v5158, 12
  %v5185 = vpop.permute.xlu0 %5184
  %5186 = vrot.lane.b32.xlu0 %v5165, 12
  %v5187 = vpop.permute.xlu0 %5186
  %5188 = vrot.lane.b32.xlu0 %v5172, 12
  %v5189 = vpop.permute.xlu0 %5188
  %5190 = vrot.lane.b32.xlu0 %v5179, 12
  %v5191 = vpop.permute.xlu0 %5190
  %v5246 = vsel %vm4819, %v2720, %v2713
  %v5247 = vsel %vm4821, %v2727, %v5246
  %v5248 = vsel %vm4823, %v2734, %v5247
  %v5249 = vsel %vm4825, %v2741, %v5248
  %v5250 = vsel %vm4827, %v2748, %v5249
  %v5251 = vsel %vm4829, %v2755, %v5250
  %v5252 = vsel %vm4831, %v2762, %v5251
  %v5253 = vsel %vm4819, %v2776, %v2769
  %v5254 = vsel %vm4821, %v2783, %v5253
  %v5255 = vsel %vm4823, %v2790, %v5254
  %v5256 = vsel %vm4825, %v2797, %v5255
  %v5257 = vsel %vm4827, %v2804, %v5256
  %v5258 = vsel %vm4829, %v2811, %v5257
  %v5259 = vsel %vm4831, %v2818, %v5258
  %v5260 = vsel %vm4819, %v2832, %v2825
  %v5261 = vsel %vm4821, %v2839, %v5260
  %v5262 = vsel %vm4823, %v2846, %v5261
  %v5263 = vsel %vm4825, %v2853, %v5262
  %v5264 = vsel %vm4827, %v2860, %v5263
  %v5265 = vsel %vm4829, %v2867, %v5264
  %v5266 = vsel %vm4831, %v2874, %v5265
  %v5267 = vsel %vm4819, %v2888, %v2881
  %v5268 = vsel %vm4821, %v2895, %v5267
  %v5269 = vsel %vm4823, %v2902, %v5268
  %v5270 = vsel %vm4825, %v2909, %v5269
  %v5271 = vsel %vm4827, %v2916, %v5270
  %v5272 = vsel %vm4829, %v2923, %v5271
  %v5273 = vsel %vm4831, %v2930, %v5272
  %v5274 = vsel %vm4819, %v2944, %v2937
  %v5275 = vsel %vm4821, %v2951, %v5274
  %v5276 = vsel %vm4823, %v2958, %v5275
  %v5277 = vsel %vm4825, %v2965, %v5276
  %v5278 = vsel %vm4827, %v2972, %v5277
  %v5279 = vsel %vm4829, %v2979, %v5278
  %v5280 = vsel %vm4831, %v2986, %v5279
  %v5281 = vsel %vm4819, %v3000, %v2993
  %v5282 = vsel %vm4821, %v3007, %v5281
  %v5283 = vsel %vm4823, %v3014, %v5282
  %v5284 = vsel %vm4825, %v3021, %v5283
  %v5285 = vsel %vm4827, %v3028, %v5284
  %v5286 = vsel %vm4829, %v3035, %v5285
  %v5287 = vsel %vm4831, %v3042, %v5286
  %5288 = vrot.lane.b32.xlu0 %v5252, 16
  %v5289 = vpop.permute.xlu0 %5288
  %5290 = vrot.lane.b32.xlu0 %v5259, 16
  %v5291 = vpop.permute.xlu0 %5290
  %5292 = vrot.lane.b32.xlu0 %v5266, 16
  %v5293 = vpop.permute.xlu0 %5292
  %5294 = vrot.lane.b32.xlu0 %v5273, 16
  %v5295 = vpop.permute.xlu0 %5294
  %5296 = vrot.lane.b32.xlu0 %v5280, 16
  %v5297 = vpop.permute.xlu0 %5296
  %5298 = vrot.lane.b32.xlu0 %v5287, 16
  %v5299 = vpop.permute.xlu0 %5298
  %v5354 = vsel %vm4819, %v3296, %v3289
  %v5355 = vsel %vm4821, %v3303, %v5354
  %v5356 = vsel %vm4823, %v3310, %v5355
  %v5357 = vsel %vm4825, %v3317, %v5356
  %v5358 = vsel %vm4827, %v3324, %v5357
  %v5359 = vsel %vm4829, %v3331, %v5358
  %v5360 = vsel %vm4831, %v3338, %v5359
  %v5361 = vsel %vm4819, %v3352, %v3345
  %v5362 = vsel %vm4821, %v3359, %v5361
  %v5363 = vsel %vm4823, %v3366, %v5362
  %v5364 = vsel %vm4825, %v3373, %v5363
  %v5365 = vsel %vm4827, %v3380, %v5364
  %v5366 = vsel %vm4829, %v3387, %v5365
  %v5367 = vsel %vm4831, %v3394, %v5366
  %v5368 = vsel %vm4819, %v3408, %v3401
  %v5369 = vsel %vm4821, %v3415, %v5368
  %v5370 = vsel %vm4823, %v3422, %v5369
  %v5371 = vsel %vm4825, %v3429, %v5370
  %v5372 = vsel %vm4827, %v3436, %v5371
  %v5373 = vsel %vm4829, %v3443, %v5372
  %v5374 = vsel %vm4831, %v3450, %v5373
  %v5375 = vsel %vm4819, %v3464, %v3457
  %v5376 = vsel %vm4821, %v3471, %v5375
  %v5377 = vsel %vm4823, %v3478, %v5376
  %v5378 = vsel %vm4825, %v3485, %v5377
  %v5379 = vsel %vm4827, %v3492, %v5378
  %v5380 = vsel %vm4829, %v3499, %v5379
  %v5381 = vsel %vm4831, %v3506, %v5380
  %v5382 = vsel %vm4819, %v3520, %v3513
  %v5383 = vsel %vm4821, %v3527, %v5382
  %v5384 = vsel %vm4823, %v3534, %v5383
  %v5385 = vsel %vm4825, %v3541, %v5384
  %v5386 = vsel %vm4827, %v3548, %v5385
  %v5387 = vsel %vm4829, %v3555, %v5386
  %v5388 = vsel %vm4831, %v3562, %v5387
  %v5389 = vsel %vm4819, %v3576, %v3569
  %v5390 = vsel %vm4821, %v3583, %v5389
  %v5391 = vsel %vm4823, %v3590, %v5390
  %v5392 = vsel %vm4825, %v3597, %v5391
  %v5393 = vsel %vm4827, %v3604, %v5392
  %v5394 = vsel %vm4829, %v3611, %v5393
  %v5395 = vsel %vm4831, %v3618, %v5394
  %5396 = vrot.lane.b32.xlu0 %v5360, 20
  %v5397 = vpop.permute.xlu0 %5396
  %5398 = vrot.lane.b32.xlu0 %v5367, 20
  %v5399 = vpop.permute.xlu0 %5398
  %5400 = vrot.lane.b32.xlu0 %v5374, 20
  %v5401 = vpop.permute.xlu0 %5400
  %5402 = vrot.lane.b32.xlu0 %v5381, 20
  %v5403 = vpop.permute.xlu0 %5402
  %5404 = vrot.lane.b32.xlu0 %v5388, 20
  %v5405 = vpop.permute.xlu0 %5404
  %5406 = vrot.lane.b32.xlu0 %v5395, 20
  %v5407 = vpop.permute.xlu0 %5406
  %v5462 = vsel %vm4819, %v3872, %v3865
  %v5463 = vsel %vm4821, %v3879, %v5462
  %v5464 = vsel %vm4823, %v3886, %v5463
  %v5465 = vsel %vm4825, %v3893, %v5464
  %v5466 = vsel %vm4827, %v3900, %v5465
  %v5467 = vsel %vm4829, %v3907, %v5466
  %v5468 = vsel %vm4831, %v3914, %v5467
  %v5469 = vsel %vm4819, %v3928, %v3921
  %v5470 = vsel %vm4821, %v3935, %v5469
  %v5471 = vsel %vm4823, %v3942, %v5470
  %v5472 = vsel %vm4825, %v3949, %v5471
  %v5473 = vsel %vm4827, %v3956, %v5472
  %v5474 = vsel %vm4829, %v3963, %v5473
  %v5475 = vsel %vm4831, %v3970, %v5474
  %v5476 = vsel %vm4819, %v3984, %v3977
  %v5477 = vsel %vm4821, %v3991, %v5476
  %v5478 = vsel %vm4823, %v3998, %v5477
  %v5479 = vsel %vm4825, %v4005, %v5478
  %v5480 = vsel %vm4827, %v4012, %v5479
  %v5481 = vsel %vm4829, %v4019, %v5480
  %v5482 = vsel %vm4831, %v4026, %v5481
  %v5483 = vsel %vm4819, %v4040, %v4033
  %v5484 = vsel %vm4821, %v4047, %v5483
  %v5485 = vsel %vm4823, %v4054, %v5484
  %v5486 = vsel %vm4825, %v4061, %v5485
  %v5487 = vsel %vm4827, %v4068, %v5486
  %v5488 = vsel %vm4829, %v4075, %v5487
  %v5489 = vsel %vm4831, %v4082, %v5488
  %v5490 = vsel %vm4819, %v4096, %v4089
  %v5491 = vsel %vm4821, %v4103, %v5490
  %v5492 = vsel %vm4823, %v4110, %v5491
  %v5493 = vsel %vm4825, %v4117, %v5492
  %v5494 = vsel %vm4827, %v4124, %v5493
  %v5495 = vsel %vm4829, %v4131, %v5494
  %v5496 = vsel %vm4831, %v4138, %v5495
  %v5497 = vsel %vm4819, %v4152, %v4145
  %v5498 = vsel %vm4821, %v4159, %v5497
  %v5499 = vsel %vm4823, %v4166, %v5498
  %v5500 = vsel %vm4825, %v4173, %v5499
  %v5501 = vsel %vm4827, %v4180, %v5500
  %v5502 = vsel %vm4829, %v4187, %v5501
  %v5503 = vsel %vm4831, %v4194, %v5502
  %5504 = vrot.lane.b32.xlu0 %v5468, 24
  %v5505 = vpop.permute.xlu0 %5504
  %5506 = vrot.lane.b32.xlu0 %v5475, 24
  %v5507 = vpop.permute.xlu0 %5506
  %5508 = vrot.lane.b32.xlu0 %v5482, 24
  %v5509 = vpop.permute.xlu0 %5508
  %5510 = vrot.lane.b32.xlu0 %v5489, 24
  %v5511 = vpop.permute.xlu0 %5510
  %5512 = vrot.lane.b32.xlu0 %v5496, 24
  %v5513 = vpop.permute.xlu0 %5512
  %5514 = vrot.lane.b32.xlu0 %v5503, 24
  %v5515 = vpop.permute.xlu0 %5514
  %v5570 = vsel %vm4819, %v4448, %v4441
  %v5571 = vsel %vm4821, %v4455, %v5570
  %v5572 = vsel %vm4823, %v4462, %v5571
  %v5573 = vsel %vm4825, %v4469, %v5572
  %v5574 = vsel %vm4827, %v4476, %v5573
  %v5575 = vsel %vm4829, %v4483, %v5574
  %v5576 = vsel %vm4831, %v4490, %v5575
  %v5577 = vsel %vm4819, %v4504, %v4497
  %v5578 = vsel %vm4821, %v4511, %v5577
  %v5579 = vsel %vm4823, %v4518, %v5578
  %v5580 = vsel %vm4825, %v4525, %v5579
  %v5581 = vsel %vm4827, %v4532, %v5580
  %v5582 = vsel %vm4829, %v4539, %v5581
  %v5583 = vsel %vm4831, %v4546, %v5582
  %v5584 = vsel %vm4819, %v4560, %v4553
  %v5585 = vsel %vm4821, %v4567, %v5584
  %v5586 = vsel %vm4823, %v4574, %v5585
  %v5587 = vsel %vm4825, %v4581, %v5586
  %v5588 = vsel %vm4827, %v4588, %v5587
  %v5589 = vsel %vm4829, %v4595, %v5588
  %v5590 = vsel %vm4831, %v4602, %v5589
  %v5591 = vsel %vm4819, %v4616, %v4609
  %v5592 = vsel %vm4821, %v4623, %v5591
  %v5593 = vsel %vm4823, %v4630, %v5592
  %v5594 = vsel %vm4825, %v4637, %v5593
  %v5595 = vsel %vm4827, %v4644, %v5594
  %v5596 = vsel %vm4829, %v4651, %v5595
  %v5597 = vsel %vm4831, %v4658, %v5596
  %v5598 = vsel %vm4819, %v4672, %v4665
  %v5599 = vsel %vm4821, %v4679, %v5598
  %v5600 = vsel %vm4823, %v4686, %v5599
  %v5601 = vsel %vm4825, %v4693, %v5600
  %v5602 = vsel %vm4827, %v4700, %v5601
  %v5603 = vsel %vm4829, %v4707, %v5602
  %v5604 = vsel %vm4831, %v4714, %v5603
  %v5605 = vsel %vm4819, %v4728, %v4721
  %v5606 = vsel %vm4821, %v4735, %v5605
  %v5607 = vsel %vm4823, %v4742, %v5606
  %v5608 = vsel %vm4825, %v4749, %v5607
  %v5609 = vsel %vm4827, %v4756, %v5608
  %v5610 = vsel %vm4829, %v4763, %v5609
  %v5611 = vsel %vm4831, %v4770, %v5610
  %5612 = vrot.lane.b32.xlu0 %v5576, 28
  %v5613 = vpop.permute.xlu0 %5612
  %5614 = vrot.lane.b32.xlu0 %v5583, 28
  %v5615 = vpop.permute.xlu0 %5614
  %5616 = vrot.lane.b32.xlu0 %v5590, 28
  %v5617 = vpop.permute.xlu0 %5616
  %5618 = vrot.lane.b32.xlu0 %v5597, 28
  %v5619 = vpop.permute.xlu0 %5618
  %5620 = vrot.lane.b32.xlu0 %v5604, 28
  %v5621 = vpop.permute.xlu0 %5620
  %5622 = vrot.lane.b32.xlu0 %v5611, 28
  %v5623 = vpop.permute.xlu0 %5622
  %v5630 = vsel %vm402, %v4832, %v4965
  %v5631 = vsel %vm402, %v4839, %v4967
  %v5632 = vsel %vm402, %v4846, %v4969
  %v5633 = vsel %vm402, %v4853, %v4971
  %v5634 = vsel %vm402, %v4860, %v4973
  %v5635 = vsel %vm402, %v4867, %v4975
  %vm5636 = vcmask 64512
  %v5637 = vsel %vm5636, %v5630, %v5073
  %v5638 = vsel %vm5636, %v5631, %v5075
  %v5639 = vsel %vm5636, %v5632, %v5077
  %v5640 = vsel %vm5636, %v5633, %v5079
  %v5641 = vsel %vm5636, %v5634, %v5081
  %v5642 = vsel %vm5636, %v5635, %v5083
  %vm5643 = vcmask 97280
  %v5644 = vsel %vm5643, %v5637, %v5181
  %v5645 = vsel %vm5643, %v5638, %v5183
  %v5646 = vsel %vm5643, %v5639, %v5185
  %v5647 = vsel %vm5643, %v5640, %v5187
  %v5648 = vsel %vm5643, %v5641, %v5189
  %v5649 = vsel %vm5643, %v5642, %v5191
  %vm5650 = vcmask 130048
  %v5651 = vsel %vm5650, %v5644, %v5289
  %v5652 = vsel %vm5650, %v5645, %v5291
  %v5653 = vsel %vm5650, %v5646, %v5293
  %v5654 = vsel %vm5650, %v5647, %v5295
  %v5655 = vsel %vm5650, %v5648, %v5297
  %v5656 = vsel %vm5650, %v5649, %v5299
  %vm5657 = vcmask 162816
  %v5658 = vsel %vm5657, %v5651, %v5397
  %v5659 = vsel %vm5657, %v5652, %v5399
  %v5660 = vsel %vm5657, %v5653, %v5401
  %v5661 = vsel %vm5657, %v5654, %v5403
  %v5662 = vsel %vm5657, %v5655, %v5405
  %v5663 = vsel %vm5657, %v5656, %v5407
  %vm5664 = vcmask 195584
  %v5665 = vsel %vm5664, %v5658, %v5505
  %v5666 = vsel %vm5664, %v5659, %v5507
  %v5667 = vsel %vm5664, %v5660, %v5509
  %v5668 = vsel %vm5664, %v5661, %v5511
  %v5669 = vsel %vm5664, %v5662, %v5513
  %v5670 = vsel %vm5664, %v5663, %v5515
  %vm5671 = vcmask 228352
  %v5672 = vsel %vm5671, %v5665, %v5613
  %v5673 = vsel %vm5671, %v5666, %v5615
  %v5674 = vsel %vm5671, %v5667, %v5617
  %v5675 = vsel %vm5671, %v5668, %v5619
  %v5676 = vsel %vm5671, %v5669, %v5621
  %v5677 = vsel %vm5671, %v5670, %v5623
  %v5678 = vld [vmem:[%s2] sm:$0xff]
  %v5679 = vld [vmem:[%s2 + $0x8] sm:$0xff]
  %v5680 = vld [vmem:[%s2 + $0x10] sm:$0xff]
  %v5681 = vld [vmem:[%s2 + $0x18] sm:$0xff]
  %v5682 = vpack.c.bf16 %v5673, %v5672
  %v5683 = vpack.c.bf16 %v5675, %v5674
  %v5684 = vpack.c.bf16 %v5677, %v5676
  %v5685 = vpack.c.bf16 %v5679, %v5678
  %v5686 = vpack.c.bf16 %v5681, %v5680
  %v5687 = vld [vmem:[%s3] sm:$0x1]
  %v5689 = vperm.slane %v5687, 0
  %vm5691 = vcmask 261120
  %v5693 = vsel %vm5691, %v5682, 0
  %v5696 = vsel %vm5691, %v5683, 0
  %v5699 = vsel %vm5691, %v5684, 0
  %5701 = vmatpush.bf16.msra.mxu0 0
  %5702 = vmatpush.bf16.msra.mxu0 0
  %5703 = vmatpush.bf16.msra.mxu0 0
  %5704 = vmatpush.bf16.msra.mxu0 0
  %5705 = vmatpush.bf16.msra.mxu0 0
  %5706 = vmatpush.bf16.msra.mxu0 0
  %5707 = vmatpush.bf16.msra.mxu0 %v5686
  %5708 = vmatpush.bf16.msra.mxu0 %v5685
  %5709 = vmatmul.bf16.gmra.mxu0 %v5693
  %v5710 = vpop.f32.mrf.mxu0
  %v5711 = vadd.f32 %v5689, %v5710
  %v5712 = vpop.f32.mrf.mxu0
  %v5713 = vadd.f32 %v5689, %v5712
  %5714 = vmatmul.bf16.gmra.mxu0 %v5696
  %v5715 = vpop.f32.mrf.mxu0
  %v5716 = vadd.f32 %v5689, %v5715
  %v5717 = vpop.f32.mrf.mxu0
  %v5718 = vadd.f32 %v5689, %v5717
  %5719 = vmatmul.bf16.gmra.mxu0 %v5699
  %v5720 = vpop.f32.mrf.mxu0
  %v5721 = vadd.f32 %v5689, %v5720
  %v5722 = vpop.f32.mrf.mxu0
  %v5723 = vadd.f32 %v5689, %v5722
  %5724 = vdwg.mxu0
  %vm5725 = vcmp.ge.f32.partialorder %v5711, 0.0
  %vm5726 = vcmp.ge.f32.partialorder %v5713, 0.0
  %vm5727 = vcmp.ge.f32.partialorder %v5716, 0.0
  %vm5728 = vcmp.ge.f32.partialorder %v5718, 0.0
  %vm5729 = vcmp.ge.f32.partialorder %v5721, 0.0
  %vm5730 = vcmp.ge.f32.partialorder %v5723, 0.0
  %v5731 = vmul.f32 %v5711, 0.1
  %v5732 = vmul.f32 %v5713, 0.1
  %v5733 = vmul.f32 %v5716, 0.1
  %v5734 = vmul.f32 %v5718, 0.1
  %v5735 = vmul.f32 %v5721, 0.1
  %v5736 = vmul.f32 %v5723, 0.1
  %v5737 = vsel %vm5725, %v5711, %v5731
  %v5738 = vsel %vm5726, %v5713, %v5732
  %v5739 = vsel %vm5727, %v5716, %v5733
  %v5740 = vsel %vm5728, %v5718, %v5734
  %v5741 = vsel %vm5729, %v5721, %v5735
  %v5742 = vsel %vm5730, %v5723, %v5736
  %5743 = vst.msk [vmem:[%s4] sm:$0xff] %vm5650, %v5737
  %5744 = vst.msk [vmem:[%s4 + $0x8] sm:$0xff] %vm5650, %v5738
  %5745 = vst.msk [vmem:[%s4 + $0x10] sm:$0xff] %vm5650, %v5739
  %5746 = vst.msk [vmem:[%s4 + $0x18] sm:$0xff] %vm5650, %v5740
  %5747 = vst.msk [vmem:[%s4 + $0x20] sm:$0xff] %vm5650, %v5741
  %5748 = vst.msk [vmem:[%s4 + $0x28] sm:$0xff] %vm5650, %v5742
  // Predicated region
  $region18: #{tpu_custom_call.1} parent=0 // pred_check
    _
  $region19: #{tpu_custom_call.1} parent=0 // pred_check_branch
    %5750 = sbr.rel (0) target = $region21
  $region20: #{tpu_custom_call.1} parent=0 // pred_region
    _
  $region21: #{tpu_custom_call.1} parent=0 // pred_fallthru
    _
  // Predicated region
  $region22: #{tpu_custom_call.1} parent=0 // pred_check
    _
  $region23: #{tpu_custom_call.1} parent=0 // pred_check_branch
    %5752 = sbr.rel (0) target = $region25
  $region24: #{tpu_custom_call.1} parent=0 // pred_region
    _
  $region25: #{tpu_custom_call.1} parent=0 // pred_fallthru
    _

</llo_original>
